<compile_context>
chip_gen: v7x
topology: tpu7x:2x2x1
jax: 0.10.0
libtpu: 0.0.40
codegen_flags: <defaults>
</compile_context>

<pallas_src>
import jax
import jax.numpy as jnp
import numpy as np
from jax import lax
from jax.experimental import pallas as pl
from jax.experimental.pallas import tpu as pltpu

# ---- small, deterministic "hparams" (stand-ins for resemblyzer's params) ----
MEL_N_CHANNELS = 16        # mel_n_channels
MODEL_HIDDEN_SIZE = 32     # model_hidden_size
MODEL_NUM_LAYERS = 3       # model_num_layers
MODEL_EMBEDDING_SIZE = 32  # model_embedding_size


# --------------------------- fused kernel factory -----------------------------
def _make_fused_kernel(num_layers, tt, bb, n_mels, hidden, emb):
    """Builds a kernel processing a (tt timesteps, bb batch rows) block per
    grid step, running all LSTM layers + the embedding head."""
    H = hidden
    del n_mels, emb  # shapes are carried by the refs

    def kernel(*refs):
        # in_refs: x, then (w_ih_T, w_hh_T, bias) per layer, then w_lin_T, b_lin
        x_ref = refs[0]
        pos = 1
        layer_refs = []
        for _ in range(num_layers):
            layer_refs.append((refs[pos], refs[pos + 1], refs[pos + 2]))
            pos += 3
        wlin_ref = refs[pos]
        blin_ref = refs[pos + 1]
        out_ref = refs[pos + 2]
        h_scr, c_scr, hid_scr, gx_scr = refs[pos + 3:pos + 7]

        ti = pl.program_id(1)  # time-block index (serial axis)

        @pl.when(ti == 0)
        def _init():
            h_scr[...] = jnp.zeros_like(h_scr)
            c_scr[...] = jnp.zeros_like(c_scr)

        # Full unroll for short blocks gives the LLO scheduler full visibility;
        # partial unroll keeps code size bounded for long blocks.
        unroll = True if tt <= 16 else 4

        def run_layer(l, x_flat, wih_ref, whh_ref, b_ref, store_hidden):
            # Hoisted input projection + bias for the whole time block:
            # one (tt*bb, C_in) @ (C_in, 4H) MXU matmul, done once per block.
            gx_scr[...] = (jnp.dot(x_flat, wih_ref[...],
                                   preferred_element_type=jnp.float32)
                           + b_ref[...])
            whh = whh_ref[...]  # (H, 4H), hoisted out of the serial loop

            def step(t, carry):
                h, c = carry
                row = pl.multiple_of(t * bb, bb)
                gates = (gx_scr[pl.ds(row, bb), :]
                         + jnp.dot(h, whh, preferred_element_type=jnp.float32))
                # PyTorch gate order [i, f, g, o].  At real resemblyzer size
                # (H=256) each slice is lane-dense (multiple of 128 lanes);
                # at this toy H=32 slicing costs a few lane selects per step.
                i = jax.nn.sigmoid(gates[:, 0 * H:1 * H])
                f = jax.nn.sigmoid(gates[:, 1 * H:2 * H])
                g = jnp.tanh(gates[:, 2 * H:3 * H])
                o = jax.nn.sigmoid(gates[:, 3 * H:4 * H])
                c_new = f * c + i * g
                h_new = o * jnp.tanh(c_new)
                if store_hidden:  # next layer consumes this block from VMEM
                    hid_scr[pl.ds(row, bb), :] = h_new
                return (h_new, c_new)

            h, c = lax.fori_loop(0, tt, step, (h_scr[l], c_scr[l]),
                                 unroll=unroll)
            h_scr[l] = h
            c_scr[l] = c

        x_flat = x_ref[0]  # (tt*bb, n_mels)
        for l, (wih_ref, whh_ref, b_ref) in enumerate(layer_refs):
            last = (l == num_layers - 1)
            run_layer(l, x_flat, wih_ref, whh_ref, b_ref, store_hidden=not last)
            if not last:
                x_flat = hid_scr[...]  # (tt*bb, H) hidden block of layer l

        # Head fused into the final time block: Linear -> ReLU -> L2 norm.
        @pl.when(ti == pl.num_programs(1) - 1)
        def _head():
            h_last = h_scr[num_layers - 1]                       # (bb, H)
            y = (jnp.dot(h_last, wlin_ref[...],
                         preferred_element_type=jnp.float32) + blin_ref[...])
            e = jnp.maximum(y, 0.0)
            # torch.norm(dim=1, keepdim=True) semantics: no epsilon (0/0 -> NaN
            # if an embedding row is entirely zeroed by the ReLU, as in torch).
            inv_norm = lax.rsqrt(jnp.sum(e * e, axis=-1, keepdims=True))
            out_ref[...] = e * inv_norm

    return kernel


def _pick_time_block(T, bb, max_tt=64):
    """Largest time block <= max_tt that keeps blocks (8,128)-legal."""
    if T <= max_tt:
        return T
    for d in range(max_tt, 0, -1):
        if T % d == 0 and (d * bb) % 8 == 0:
            return d
    return T


# ------------------------------ VoiceEncoder ---------------------------------
def init_params(key,
                n_mels=MEL_N_CHANNELS,
                hidden=MODEL_HIDDEN_SIZE,
                num_layers=MODEL_NUM_LAYERS,
                emb=MODEL_EMBEDDING_SIZE):
    """Deterministic init mimicking PyTorch's U(-1/sqrt(H), 1/sqrt(H))."""
    params = {"lstm": [], "linear": {}}
    k = 1.0 / np.sqrt(hidden)
    for layer in range(num_layers):
        c_in = n_mels if layer == 0 else hidden
        key, k1, k2, k3, k4 = jax.random.split(key, 5)
        w_ih = jax.random.uniform(k1, (4 * hidden, c_in), jnp.float32, -k, k)
        w_hh = jax.random.uniform(k2, (4 * hidden, hidden), jnp.float32, -k, k)
        b_ih = jax.random.uniform(k3, (4 * hidden,), jnp.float32, -k, k)
        b_hh = jax.random.uniform(k4, (4 * hidden,), jnp.float32, -k, k)
        params["lstm"].append({
            "w_ih_T": w_ih.T,                                # (C_in, 4H)
            "w_hh_T": w_hh.T,                                # (H, 4H)
            "bias": (b_ih + b_hh).reshape(1, 4 * hidden),    # (1, 4H)
        })
    kl = 1.0 / np.sqrt(hidden)
    key, k5, k6 = jax.random.split(key, 3)
    w_lin = jax.random.uniform(k5, (emb, hidden), jnp.float32, -kl, kl)
    b_lin = jax.random.uniform(k6, (emb,), jnp.float32, -kl, kl)
    params["linear"]["w_T"] = w_lin.T                        # (H, E)
    params["linear"]["b"] = b_lin.reshape(1, emb)            # (1, E)
    return params


def voice_encoder_forward(params, mels, *, time_block=None, batch_block=None):
    """mels: (B, T, n_mels) float32 -> embeddings (B, E), L2-normed, >= 0."""
    mels = mels.astype(jnp.float32)
    B, T, C = mels.shape
    L = len(params["lstm"])
    H = params["lstm"][0]["w_hh_T"].shape[0]
    E = params["linear"]["w_T"].shape[1]

    bb = B if batch_block is None else batch_block
    assert B % bb == 0, "batch_block must divide batch"
    tt = _pick_time_block(T, bb) if time_block is None else time_block
    assert T % tt == 0, "time_block must divide n_frames"

    # Layout so each grid step gets a 2-D (tt*bb, C) slab with no in-kernel
    # reshapes:  x[bi, t*bb + j, :] == mels[bi*bb + j, t, :]   (time-major).
    x = jnp.transpose(mels, (1, 0, 2))                        # (T, B, C)
    x = x.reshape(T, B // bb, bb, C).transpose(1, 0, 2, 3)    # (B//bb, T, bb, C)
    x = x.reshape(B // bb, T * bb, C)

    in_specs = [pl.BlockSpec((1, tt * bb, C), lambda bi, ti: (bi, ti, 0))]
    inputs = [x]
    for lyr in params["lstm"]:
        c_in = lyr["w_ih_T"].shape[0]
        in_specs += [
            pl.BlockSpec((c_in, 4 * H), lambda bi, ti: (0, 0)),
            pl.BlockSpec((H, 4 * H), lambda bi, ti: (0, 0)),
            pl.BlockSpec((1, 4 * H), lambda bi, ti: (0, 0)),
        ]
        inputs += [lyr["w_ih_T"], lyr["w_hh_T"], lyr["bias"]]
    in_specs += [
        pl.BlockSpec((H, E), lambda bi, ti: (0, 0)),
        pl.BlockSpec((1, E), lambda bi, ti: (0, 0)),
    ]
    inputs += [params["linear"]["w_T"], params["linear"]["b"]]

    kernel = _make_fused_kernel(L, tt, bb, C, H, E)

    return pl.pallas_call(
        kernel,
        out_shape=jax.ShapeDtypeStruct((B, E), jnp.float32),
        grid_spec=pltpu.PrefetchScalarGridSpec(
            num_scalar_prefetch=0,
            grid=(B // bb, T // tt),
            in_specs=in_specs,
            # Output block is revisited across the time axis and only written
            # at the last time block -> single HBM writeback per batch block.
            out_specs=pl.BlockSpec((bb, E), lambda bi, ti: (bi, 0)),
            scratch_shapes=[
                pltpu.VMEM((L, bb, H), jnp.float32),          # h carries
                pltpu.VMEM((L, bb, H), jnp.float32),          # c carries
                pltpu.VMEM((tt * bb, H), jnp.float32),        # inter-layer hiddens
                pltpu.VMEM((tt * bb, 4 * H), jnp.float32),    # hoisted x-projection
            ],
        ),
        compiler_params=pltpu.CompilerParams(
            # batch blocks are independent recurrences -> "parallel" (2 TCs on
            # v7x); the time recurrence is serial -> "arbitrary", innermost.
            dimension_semantics=("parallel", "arbitrary"),
            vmem_limit_bytes=32 * 1024 * 1024,
        ),
    )(*inputs)


# ------------------------- pure-JAX reference (check) -------------------------
def _reference_forward(params, mels):
    x = jnp.transpose(mels, (1, 0, 2)).astype(jnp.float32)
    T, B, _ = x.shape
    for lyr in params["lstm"]:
        H = lyr["w_hh_T"].shape[0]
        h = jnp.zeros((B, H), jnp.float32)
        c = jnp.zeros((B, H), jnp.float32)
        outs = []
        for t in range(T):
            gates = x[t] @ lyr["w_ih_T"] + h @ lyr["w_hh_T"] + lyr["bias"]
            i = jax.nn.sigmoid(gates[:, 0 * H:1 * H])
            f = jax.nn.sigmoid(gates[:, 1 * H:2 * H])
            g = jnp.tanh(gates[:, 2 * H:3 * H])
            o = jax.nn.sigmoid(gates[:, 3 * H:4 * H])
            c = f * c + i * g
            h = o * jnp.tanh(c)
            outs.append(h)
        x = jnp.stack(outs, axis=0)
    e = jnp.maximum(x[-1] @ params["linear"]["w_T"] + params["linear"]["b"], 0.0)
    return e / jnp.sqrt(jnp.sum(e * e, axis=-1, keepdims=True))


if __name__ == "__main__":
    key = jax.random.PRNGKey(0)
    kp, kx = jax.random.split(key)
    params = init_params(kp)

    B, T = 2, 8
    mels = jax.random.normal(kx, (B, T, MEL_N_CHANNELS), jnp.float32)

    ref = jax.block_until_ready(_reference_forward(params, mels))

    # 1) whole sequence in a single time block (default path)
    embeds = jax.block_until_ready(voice_encoder_forward(params, mels))
    assert embeds.shape == (B, MODEL_EMBEDDING_SIZE)
    assert np.allclose(np.asarray(embeds), np.asarray(ref), atol=5e-4, rtol=5e-4)

    # 2) multi-block time grid: exercises the VMEM-carried (h, c) across blocks
    embeds2 = jax.block_until_ready(
        voice_encoder_forward(params, mels, time_block=4))
    assert np.allclose(np.asarray(embeds2), np.asarray(ref), atol=5e-4, rtol=5e-4)

    # embeddings are positive and L2-normed (lie in [0, 1])
    e_np = np.asarray(embeds)
    assert np.all(e_np >= 0.0)
    assert np.allclose(np.linalg.norm(e_np, axis=1), 1.0, atol=1e-3)

    print("KERNEL_OK")
</pallas_src>

<mosaic_0001>
module attributes {stable_mosaic.version = 11 : i64} {
  func.func @kernel(%arg0: i32, %arg1: i32, %arg2: memref<1x16x16xf32, #tpu.memory_space<vmem>>, %arg3: memref<16x128xf32, #tpu.memory_space<vmem>>, %arg4: memref<32x128xf32, #tpu.memory_space<vmem>>, %arg5: memref<1x128xf32, #tpu.memory_space<vmem>>, %arg6: memref<32x128xf32, #tpu.memory_space<vmem>>, %arg7: memref<32x128xf32, #tpu.memory_space<vmem>>, %arg8: memref<1x128xf32, #tpu.memory_space<vmem>>, %arg9: memref<32x128xf32, #tpu.memory_space<vmem>>, %arg10: memref<32x128xf32, #tpu.memory_space<vmem>>, %arg11: memref<1x128xf32, #tpu.memory_space<vmem>>, %arg12: memref<32x32xf32, #tpu.memory_space<vmem>>, %arg13: memref<1x32xf32, #tpu.memory_space<vmem>>, %arg14: memref<2x32xf32, #tpu.memory_space<vmem>>, %arg15: memref<3x2x32xf32, #tpu.memory_space<vmem>>, %arg16: memref<3x2x32xf32, #tpu.memory_space<vmem>>, %arg17: memref<16x32xf32, #tpu.memory_space<vmem>>, %arg18: memref<16x128xf32, #tpu.memory_space<vmem>>) attributes {dimension_semantics = [#tpu.dimension_semantics<parallel>, #tpu.dimension_semantics<arbitrary>], iteration_bounds = array<i64: 1, 1>, scalar_prefetch = 0 : i64, scratch_operands = 4 : i64, tpu.core_type = #tpu.core_type<tc>, window_params = [{transform_indices = @transform_0, window_bounds = array<i64: 1, 16, 16>}, {pipeline_mode = #tpu.pipeline_mode<synchronous>, transform_indices = @transform_1, window_bounds = array<i64: 16, 128>}, {pipeline_mode = #tpu.pipeline_mode<synchronous>, transform_indices = @transform_2, window_bounds = array<i64: 32, 128>}, {pipeline_mode = #tpu.pipeline_mode<synchronous>, transform_indices = @transform_3, window_bounds = array<i64: 1, 128>}, {pipeline_mode = #tpu.pipeline_mode<synchronous>, transform_indices = @transform_4, window_bounds = array<i64: 32, 128>}, {pipeline_mode = #tpu.pipeline_mode<synchronous>, transform_indices = @transform_5, window_bounds = array<i64: 32, 128>}, {pipeline_mode = #tpu.pipeline_mode<synchronous>, transform_indices = @transform_6, window_bounds = array<i64: 1, 128>}, {pipeline_mode = #tpu.pipeline_mode<synchronous>, transform_indices = @transform_7, window_bounds = array<i64: 32, 128>}, {pipeline_mode = #tpu.pipeline_mode<synchronous>, transform_indices = @transform_8, window_bounds = array<i64: 32, 128>}, {pipeline_mode = #tpu.pipeline_mode<synchronous>, transform_indices = @transform_9, window_bounds = array<i64: 1, 128>}, {pipeline_mode = #tpu.pipeline_mode<synchronous>, transform_indices = @transform_10, window_bounds = array<i64: 32, 32>}, {pipeline_mode = #tpu.pipeline_mode<synchronous>, transform_indices = @transform_11, window_bounds = array<i64: 1, 32>}, {transform_indices = @transform_12, window_bounds = array<i64: 2, 32>}]} {
    %c0_i32 = arith.constant 0 : i32
    %0 = arith.cmpi eq, %arg1, %c0_i32 : i32
    %1 = arith.extui %0 : i1 to i32
    %c0_i32_0 = arith.constant 0 : i32
    %2 = arith.cmpi ne, %1, %c0_i32_0 : i32
    scf.if %2 {
      %cst_248 = arith.constant 0.000000e+00 : f32
      %837 = vector.broadcast %cst_248 : f32 to vector<3x2x32xf32>
      %c0_249 = arith.constant 0 : index
      %c0_250 = arith.constant 0 : index
      %c0_251 = arith.constant 0 : index
      %838 = vector.load %arg15[%c0_249, %c0_250, %c0_251] : memref<3x2x32xf32, #tpu.memory_space<vmem>>, vector<3x2x32xf32>
      tpu.vector_store %arg15[%c0_249, %c0_250, %c0_251], %837 {strides = array<i32>} : memref<3x2x32xf32, #tpu.memory_space<vmem>>, vector<3x2x32xf32>,
      %cst_252 = arith.constant 0.000000e+00 : f32
      %839 = vector.broadcast %cst_252 : f32 to vector<3x2x32xf32>
      %c0_253 = arith.constant 0 : index
      %c0_254 = arith.constant 0 : index
      %c0_255 = arith.constant 0 : index
      %840 = vector.load %arg16[%c0_253, %c0_254, %c0_255] : memref<3x2x32xf32, #tpu.memory_space<vmem>>, vector<3x2x32xf32>
      tpu.vector_store %arg16[%c0_253, %c0_254, %c0_255], %839 {strides = array<i32>} : memref<3x2x32xf32, #tpu.memory_space<vmem>>, vector<3x2x32xf32>,
    } else {
    }
    %c0 = arith.constant 0 : index
    %c0_1 = arith.constant 0 : index
    %c0_2 = arith.constant 0 : index
    %3 = vector.load %arg2[%c0, %c0_1, %c0_2] : memref<1x16x16xf32, #tpu.memory_space<vmem>>, vector<1x16x16xf32>
    %4 = vector.shape_cast %3 : vector<1x16x16xf32> to vector<16x16xf32>
    %c0_3 = arith.constant 0 : index
    %c0_4 = arith.constant 0 : index
    %5 = vector.load %arg3[%c0_3, %c0_4] : memref<16x128xf32, #tpu.memory_space<vmem>>, vector<16x128xf32>
    %cst = arith.constant dense<0.000000e+00> : vector<16x128xf32>
    %6 = tpu.matmul %4, %5, %cst {dimension_numbers = #tpu.dot_dimension_numbers<[1], [0], [0], [1], [0, 0, 1, 1], [], []>} : vector<16x16xf32>, vector<16x128xf32>, vector<16x128xf32> -> vector<16x128xf32>
    %c0_5 = arith.constant 0 : index
    %c0_6 = arith.constant 0 : index
    %7 = vector.load %arg5[%c0_5, %c0_6] : memref<1x128xf32, #tpu.memory_space<vmem>>, vector<1x128xf32>
    %8 = vector.broadcast %7 : vector<1x128xf32> to vector<16x128xf32>
    %9 = arith.addf %6, %8 : vector<16x128xf32>
    %c0_7 = arith.constant 0 : index
    %c0_8 = arith.constant 0 : index
    %10 = vector.load %arg18[%c0_7, %c0_8] : memref<16x128xf32, #tpu.memory_space<vmem>>, vector<16x128xf32>
    tpu.vector_store %arg18[%c0_7, %c0_8], %9 {strides = array<i32>} : memref<16x128xf32, #tpu.memory_space<vmem>>, vector<16x128xf32>,
    %c0_9 = arith.constant 0 : index
    %c0_10 = arith.constant 0 : index
    %11 = vector.load %arg4[%c0_9, %c0_10] : memref<32x128xf32, #tpu.memory_space<vmem>>, vector<32x128xf32>
    %c0_11 = arith.constant 0 : index
    %c0_12 = arith.constant 0 : index
    %c0_13 = arith.constant 0 : index
    %12 = vector.load %arg15[%c0_11, %c0_12, %c0_13] : memref<3x2x32xf32, #tpu.memory_space<vmem>>, vector<1x2x32xf32>
    %13 = vector.shape_cast %12 : vector<1x2x32xf32> to vector<2x32xf32>
    %c0_14 = arith.constant 0 : index
    %c0_15 = arith.constant 0 : index
    %c0_16 = arith.constant 0 : index
    %14 = vector.load %arg16[%c0_14, %c0_15, %c0_16] : memref<3x2x32xf32, #tpu.memory_space<vmem>>, vector<1x2x32xf32>
    %15 = vector.shape_cast %14 : vector<1x2x32xf32> to vector<2x32xf32>
    %c0_i32_17 = arith.constant 0 : i32
    %c2_i32 = arith.constant 2 : i32
    %16 = arith.muli %c0_i32_17, %c2_i32 : i32
    %17 = tpu.assume_multiple %16, 2 : i32
    %18 = arith.index_cast %17 : i32 to index
    %c0_18 = arith.constant 0 : index
    %19 = vector.load %arg18[%18, %c0_18] : memref<16x128xf32, #tpu.memory_space<vmem>>, vector<2x128xf32>
    %cst_19 = arith.constant dense<0.000000e+00> : vector<2x128xf32>
    %20 = tpu.matmul %13, %11, %cst_19 {dimension_numbers = #tpu.dot_dimension_numbers<[1], [0], [0], [1], [0, 0, 1, 1], [], []>} : vector<2x32xf32>, vector<32x128xf32>, vector<2x128xf32> -> vector<2x128xf32>
    %21 = arith.addf %19, %20 : vector<2x128xf32>
    %22 = vector.extract_strided_slice %21 {offsets = [0, 0], sizes = [2, 32], strides = [1, 1]} : vector<2x128xf32> to vector<2x32xf32>
    %23 = arith.negf %22 : vector<2x32xf32>
    %24 = math.exp %23 : vector<2x32xf32>
    %cst_20 = arith.constant 1.000000e+00 : f32
    %25 = vector.broadcast %cst_20 : f32 to vector<2x32xf32>
    %26 = arith.addf %25, %24 : vector<2x32xf32>
    %27 = arith.divf %25, %26 : vector<2x32xf32>
    %28 = vector.extract_strided_slice %21 {offsets = [0, 32], sizes = [2, 32], strides = [1, 1]} : vector<2x128xf32> to vector<2x32xf32>
    %29 = arith.negf %28 : vector<2x32xf32>
    %30 = math.exp %29 : vector<2x32xf32>
    %cst_21 = arith.constant 1.000000e+00 : f32
    %31 = vector.broadcast %cst_21 : f32 to vector<2x32xf32>
    %32 = arith.addf %31, %30 : vector<2x32xf32>
    %33 = arith.divf %31, %32 : vector<2x32xf32>
    %34 = vector.extract_strided_slice %21 {offsets = [0, 64], sizes = [2, 32], strides = [1, 1]} : vector<2x128xf32> to vector<2x32xf32>
    %35 = math.tanh %34 : vector<2x32xf32>
    %36 = vector.extract_strided_slice %21 {offsets = [0, 96], sizes = [2, 32], strides = [1, 1]} : vector<2x128xf32> to vector<2x32xf32>
    %37 = arith.negf %36 : vector<2x32xf32>
    %38 = math.exp %37 : vector<2x32xf32>
    %cst_22 = arith.constant 1.000000e+00 : f32
    %39 = vector.broadcast %cst_22 : f32 to vector<2x32xf32>
    %40 = arith.addf %39, %38 : vector<2x32xf32>
    %41 = arith.divf %39, %40 : vector<2x32xf32>
    %42 = arith.mulf %33, %15 : vector<2x32xf32>
    %43 = arith.mulf %27, %35 : vector<2x32xf32>
    %44 = arith.addf %42, %43 : vector<2x32xf32>
    %45 = math.tanh %44 : vector<2x32xf32>
    %46 = arith.mulf %41, %45 : vector<2x32xf32>
    %47 = arith.index_cast %17 : i32 to index
    %c0_23 = arith.constant 0 : index
    %48 = vector.load %arg17[%47, %c0_23] : memref<16x32xf32, #tpu.memory_space<vmem>>, vector<2x32xf32>
    tpu.vector_store %arg17[%47, %c0_23], %46 {strides = array<i32>} : memref<16x32xf32, #tpu.memory_space<vmem>>, vector<2x32xf32>,
    %c1_i32 = arith.constant 1 : i32
    %c2_i32_24 = arith.constant 2 : i32
    %49 = arith.muli %c1_i32, %c2_i32_24 : i32
    %50 = tpu.assume_multiple %49, 2 : i32
    %51 = arith.index_cast %50 : i32 to index
    %c0_25 = arith.constant 0 : index
    %52 = vector.load %arg18[%51, %c0_25] : memref<16x128xf32, #tpu.memory_space<vmem>>, vector<2x128xf32>
    %cst_26 = arith.constant dense<0.000000e+00> : vector<2x128xf32>
    %53 = tpu.matmul %46, %11, %cst_26 {dimension_numbers = #tpu.dot_dimension_numbers<[1], [0], [0], [1], [0, 0, 1, 1], [], []>} : vector<2x32xf32>, vector<32x128xf32>, vector<2x128xf32> -> vector<2x128xf32>
    %54 = arith.addf %52, %53 : vector<2x128xf32>
    %55 = vector.extract_strided_slice %54 {offsets = [0, 0], sizes = [2, 32], strides = [1, 1]} : vector<2x128xf32> to vector<2x32xf32>
    %56 = arith.negf %55 : vector<2x32xf32>
    %57 = math.exp %56 : vector<2x32xf32>
    %cst_27 = arith.constant 1.000000e+00 : f32
    %58 = vector.broadcast %cst_27 : f32 to vector<2x32xf32>
    %59 = arith.addf %58, %57 : vector<2x32xf32>
    %60 = arith.divf %58, %59 : vector<2x32xf32>
    %61 = vector.extract_strided_slice %54 {offsets = [0, 32], sizes = [2, 32], strides = [1, 1]} : vector<2x128xf32> to vector<2x32xf32>
    %62 = arith.negf %61 : vector<2x32xf32>
    %63 = math.exp %62 : vector<2x32xf32>
    %cst_28 = arith.constant 1.000000e+00 : f32
    %64 = vector.broadcast %cst_28 : f32 to vector<2x32xf32>
    %65 = arith.addf %64, %63 : vector<2x32xf32>
    %66 = arith.divf %64, %65 : vector<2x32xf32>
    %67 = vector.extract_strided_slice %54 {offsets = [0, 64], sizes = [2, 32], strides = [1, 1]} : vector<2x128xf32> to vector<2x32xf32>
    %68 = math.tanh %67 : vector<2x32xf32>
    %69 = vector.extract_strided_slice %54 {offsets = [0, 96], sizes = [2, 32], strides = [1, 1]} : vector<2x128xf32> to vector<2x32xf32>
    %70 = arith.negf %69 : vector<2x32xf32>
    %71 = math.exp %70 : vector<2x32xf32>
    %cst_29 = arith.constant 1.000000e+00 : f32
    %72 = vector.broadcast %cst_29 : f32 to vector<2x32xf32>
    %73 = arith.addf %72, %71 : vector<2x32xf32>
    %74 = arith.divf %72, %73 : vector<2x32xf32>
    %75 = arith.mulf %66, %44 : vector<2x32xf32>
    %76 = arith.mulf %60, %68 : vector<2x32xf32>
    %77 = arith.addf %75, %76 : vector<2x32xf32>
    %78 = math.tanh %77 : vector<2x32xf32>
    %79 = arith.mulf %74, %78 : vector<2x32xf32>
    %80 = arith.index_cast %50 : i32 to index
    %c0_30 = arith.constant 0 : index
    %81 = vector.load %arg17[%80, %c0_30] : memref<16x32xf32, #tpu.memory_space<vmem>>, vector<2x32xf32>
    tpu.vector_store %arg17[%80, %c0_30], %79 {strides = array<i32>} : memref<16x32xf32, #tpu.memory_space<vmem>>, vector<2x32xf32>,
    %c2_i32_31 = arith.constant 2 : i32
    %c2_i32_32 = arith.constant 2 : i32
    %82 = arith.muli %c2_i32_31, %c2_i32_32 : i32
    %83 = tpu.assume_multiple %82, 2 : i32
    %84 = arith.index_cast %83 : i32 to index
    %c0_33 = arith.constant 0 : index
    %85 = vector.load %arg18[%84, %c0_33] : memref<16x128xf32, #tpu.memory_space<vmem>>, vector<2x128xf32>
    %cst_34 = arith.constant dense<0.000000e+00> : vector<2x128xf32>
    %86 = tpu.matmul %79, %11, %cst_34 {dimension_numbers = #tpu.dot_dimension_numbers<[1], [0], [0], [1], [0, 0, 1, 1], [], []>} : vector<2x32xf32>, vector<32x128xf32>, vector<2x128xf32> -> vector<2x128xf32>
    %87 = arith.addf %85, %86 : vector<2x128xf32>
    %88 = vector.extract_strided_slice %87 {offsets = [0, 0], sizes = [2, 32], strides = [1, 1]} : vector<2x128xf32> to vector<2x32xf32>
    %89 = arith.negf %88 : vector<2x32xf32>
    %90 = math.exp %89 : vector<2x32xf32>
    %cst_35 = arith.constant 1.000000e+00 : f32
    %91 = vector.broadcast %cst_35 : f32 to vector<2x32xf32>
    %92 = arith.addf %91, %90 : vector<2x32xf32>
    %93 = arith.divf %91, %92 : vector<2x32xf32>
    %94 = vector.extract_strided_slice %87 {offsets = [0, 32], sizes = [2, 32], strides = [1, 1]} : vector<2x128xf32> to vector<2x32xf32>
    %95 = arith.negf %94 : vector<2x32xf32>
    %96 = math.exp %95 : vector<2x32xf32>
    %cst_36 = arith.constant 1.000000e+00 : f32
    %97 = vector.broadcast %cst_36 : f32 to vector<2x32xf32>
    %98 = arith.addf %97, %96 : vector<2x32xf32>
    %99 = arith.divf %97, %98 : vector<2x32xf32>
    %100 = vector.extract_strided_slice %87 {offsets = [0, 64], sizes = [2, 32], strides = [1, 1]} : vector<2x128xf32> to vector<2x32xf32>
    %101 = math.tanh %100 : vector<2x32xf32>
    %102 = vector.extract_strided_slice %87 {offsets = [0, 96], sizes = [2, 32], strides = [1, 1]} : vector<2x128xf32> to vector<2x32xf32>
    %103 = arith.negf %102 : vector<2x32xf32>
    %104 = math.exp %103 : vector<2x32xf32>
    %cst_37 = arith.constant 1.000000e+00 : f32
    %105 = vector.broadcast %cst_37 : f32 to vector<2x32xf32>
    %106 = arith.addf %105, %104 : vector<2x32xf32>
    %107 = arith.divf %105, %106 : vector<2x32xf32>
    %108 = arith.mulf %99, %77 : vector<2x32xf32>
    %109 = arith.mulf %93, %101 : vector<2x32xf32>
    %110 = arith.addf %108, %109 : vector<2x32xf32>
    %111 = math.tanh %110 : vector<2x32xf32>
    %112 = arith.mulf %107, %111 : vector<2x32xf32>
    %113 = arith.index_cast %83 : i32 to index
    %c0_38 = arith.constant 0 : index
    %114 = vector.load %arg17[%113, %c0_38] : memref<16x32xf32, #tpu.memory_space<vmem>>, vector<2x32xf32>
    tpu.vector_store %arg17[%113, %c0_38], %112 {strides = array<i32>} : memref<16x32xf32, #tpu.memory_space<vmem>>, vector<2x32xf32>,
    %c3_i32 = arith.constant 3 : i32
    %c2_i32_39 = arith.constant 2 : i32
    %115 = arith.muli %c3_i32, %c2_i32_39 : i32
    %116 = tpu.assume_multiple %115, 2 : i32
    %117 = arith.index_cast %116 : i32 to index
    %c0_40 = arith.constant 0 : index
    %118 = vector.load %arg18[%117, %c0_40] : memref<16x128xf32, #tpu.memory_space<vmem>>, vector<2x128xf32>
    %cst_41 = arith.constant dense<0.000000e+00> : vector<2x128xf32>
    %119 = tpu.matmul %112, %11, %cst_41 {dimension_numbers = #tpu.dot_dimension_numbers<[1], [0], [0], [1], [0, 0, 1, 1], [], []>} : vector<2x32xf32>, vector<32x128xf32>, vector<2x128xf32> -> vector<2x128xf32>
    %120 = arith.addf %118, %119 : vector<2x128xf32>
    %121 = vector.extract_strided_slice %120 {offsets = [0, 0], sizes = [2, 32], strides = [1, 1]} : vector<2x128xf32> to vector<2x32xf32>
    %122 = arith.negf %121 : vector<2x32xf32>
    %123 = math.exp %122 : vector<2x32xf32>
    %cst_42 = arith.constant 1.000000e+00 : f32
    %124 = vector.broadcast %cst_42 : f32 to vector<2x32xf32>
    %125 = arith.addf %124, %123 : vector<2x32xf32>
    %126 = arith.divf %124, %125 : vector<2x32xf32>
    %127 = vector.extract_strided_slice %120 {offsets = [0, 32], sizes = [2, 32], strides = [1, 1]} : vector<2x128xf32> to vector<2x32xf32>
    %128 = arith.negf %127 : vector<2x32xf32>
    %129 = math.exp %128 : vector<2x32xf32>
    %cst_43 = arith.constant 1.000000e+00 : f32
    %130 = vector.broadcast %cst_43 : f32 to vector<2x32xf32>
    %131 = arith.addf %130, %129 : vector<2x32xf32>
    %132 = arith.divf %130, %131 : vector<2x32xf32>
    %133 = vector.extract_strided_slice %120 {offsets = [0, 64], sizes = [2, 32], strides = [1, 1]} : vector<2x128xf32> to vector<2x32xf32>
    %134 = math.tanh %133 : vector<2x32xf32>
    %135 = vector.extract_strided_slice %120 {offsets = [0, 96], sizes = [2, 32], strides = [1, 1]} : vector<2x128xf32> to vector<2x32xf32>
    %136 = arith.negf %135 : vector<2x32xf32>
    %137 = math.exp %136 : vector<2x32xf32>
    %cst_44 = arith.constant 1.000000e+00 : f32
    %138 = vector.broadcast %cst_44 : f32 to vector<2x32xf32>
    %139 = arith.addf %138, %137 : vector<2x32xf32>
    %140 = arith.divf %138, %139 : vector<2x32xf32>
    %141 = arith.mulf %132, %110 : vector<2x32xf32>
    %142 = arith.mulf %126, %134 : vector<2x32xf32>
    %143 = arith.addf %141, %142 : vector<2x32xf32>
    %144 = math.tanh %143 : vector<2x32xf32>
    %145 = arith.mulf %140, %144 : vector<2x32xf32>
    %146 = arith.index_cast %116 : i32 to index
    %c0_45 = arith.constant 0 : index
    %147 = vector.load %arg17[%146, %c0_45] : memref<16x32xf32, #tpu.memory_space<vmem>>, vector<2x32xf32>
    tpu.vector_store %arg17[%146, %c0_45], %145 {strides = array<i32>} : memref<16x32xf32, #tpu.memory_space<vmem>>, vector<2x32xf32>,
    %c4_i32 = arith.constant 4 : i32
    %c2_i32_46 = arith.constant 2 : i32
    %148 = arith.muli %c4_i32, %c2_i32_46 : i32
    %149 = tpu.assume_multiple %148, 2 : i32
    %150 = arith.index_cast %149 : i32 to index
    %c0_47 = arith.constant 0 : index
    %151 = vector.load %arg18[%150, %c0_47] : memref<16x128xf32, #tpu.memory_space<vmem>>, vector<2x128xf32>
    %cst_48 = arith.constant dense<0.000000e+00> : vector<2x128xf32>
    %152 = tpu.matmul %145, %11, %cst_48 {dimension_numbers = #tpu.dot_dimension_numbers<[1], [0], [0], [1], [0, 0, 1, 1], [], []>} : vector<2x32xf32>, vector<32x128xf32>, vector<2x128xf32> -> vector<2x128xf32>
    %153 = arith.addf %151, %152 : vector<2x128xf32>
    %154 = vector.extract_strided_slice %153 {offsets = [0, 0], sizes = [2, 32], strides = [1, 1]} : vector<2x128xf32> to vector<2x32xf32>
    %155 = arith.negf %154 : vector<2x32xf32>
    %156 = math.exp %155 : vector<2x32xf32>
    %cst_49 = arith.constant 1.000000e+00 : f32
    %157 = vector.broadcast %cst_49 : f32 to vector<2x32xf32>
    %158 = arith.addf %157, %156 : vector<2x32xf32>
    %159 = arith.divf %157, %158 : vector<2x32xf32>
    %160 = vector.extract_strided_slice %153 {offsets = [0, 32], sizes = [2, 32], strides = [1, 1]} : vector<2x128xf32> to vector<2x32xf32>
    %161 = arith.negf %160 : vector<2x32xf32>
    %162 = math.exp %161 : vector<2x32xf32>
    %cst_50 = arith.constant 1.000000e+00 : f32
    %163 = vector.broadcast %cst_50 : f32 to vector<2x32xf32>
    %164 = arith.addf %163, %162 : vector<2x32xf32>
    %165 = arith.divf %163, %164 : vector<2x32xf32>
    %166 = vector.extract_strided_slice %153 {offsets = [0, 64], sizes = [2, 32], strides = [1, 1]} : vector<2x128xf32> to vector<2x32xf32>
    %167 = math.tanh %166 : vector<2x32xf32>
    %168 = vector.extract_strided_slice %153 {offsets = [0, 96], sizes = [2, 32], strides = [1, 1]} : vector<2x128xf32> to vector<2x32xf32>
    %169 = arith.negf %168 : vector<2x32xf32>
    %170 = math.exp %169 : vector<2x32xf32>
    %cst_51 = arith.constant 1.000000e+00 : f32
    %171 = vector.broadcast %cst_51 : f32 to vector<2x32xf32>
    %172 = arith.addf %171, %170 : vector<2x32xf32>
    %173 = arith.divf %171, %172 : vector<2x32xf32>
    %174 = arith.mulf %165, %143 : vector<2x32xf32>
    %175 = arith.mulf %159, %167 : vector<2x32xf32>
    %176 = arith.addf %174, %175 : vector<2x32xf32>
    %177 = math.tanh %176 : vector<2x32xf32>
    %178 = arith.mulf %173, %177 : vector<2x32xf32>
    %179 = arith.index_cast %149 : i32 to index
    %c0_52 = arith.constant 0 : index
    %180 = vector.load %arg17[%179, %c0_52] : memref<16x32xf32, #tpu.memory_space<vmem>>, vector<2x32xf32>
    tpu.vector_store %arg17[%179, %c0_52], %178 {strides = array<i32>} : memref<16x32xf32, #tpu.memory_space<vmem>>, vector<2x32xf32>,
    %c5_i32 = arith.constant 5 : i32
    %c2_i32_53 = arith.constant 2 : i32
    %181 = arith.muli %c5_i32, %c2_i32_53 : i32
    %182 = tpu.assume_multiple %181, 2 : i32
    %183 = arith.index_cast %182 : i32 to index
    %c0_54 = arith.constant 0 : index
    %184 = vector.load %arg18[%183, %c0_54] : memref<16x128xf32, #tpu.memory_space<vmem>>, vector<2x128xf32>
    %cst_55 = arith.constant dense<0.000000e+00> : vector<2x128xf32>
    %185 = tpu.matmul %178, %11, %cst_55 {dimension_numbers = #tpu.dot_dimension_numbers<[1], [0], [0], [1], [0, 0, 1, 1], [], []>} : vector<2x32xf32>, vector<32x128xf32>, vector<2x128xf32> -> vector<2x128xf32>
    %186 = arith.addf %184, %185 : vector<2x128xf32>
    %187 = vector.extract_strided_slice %186 {offsets = [0, 0], sizes = [2, 32], strides = [1, 1]} : vector<2x128xf32> to vector<2x32xf32>
    %188 = arith.negf %187 : vector<2x32xf32>
    %189 = math.exp %188 : vector<2x32xf32>
    %cst_56 = arith.constant 1.000000e+00 : f32
    %190 = vector.broadcast %cst_56 : f32 to vector<2x32xf32>
    %191 = arith.addf %190, %189 : vector<2x32xf32>
    %192 = arith.divf %190, %191 : vector<2x32xf32>
    %193 = vector.extract_strided_slice %186 {offsets = [0, 32], sizes = [2, 32], strides = [1, 1]} : vector<2x128xf32> to vector<2x32xf32>
    %194 = arith.negf %193 : vector<2x32xf32>
    %195 = math.exp %194 : vector<2x32xf32>
    %cst_57 = arith.constant 1.000000e+00 : f32
    %196 = vector.broadcast %cst_57 : f32 to vector<2x32xf32>
    %197 = arith.addf %196, %195 : vector<2x32xf32>
    %198 = arith.divf %196, %197 : vector<2x32xf32>
    %199 = vector.extract_strided_slice %186 {offsets = [0, 64], sizes = [2, 32], strides = [1, 1]} : vector<2x128xf32> to vector<2x32xf32>
    %200 = math.tanh %199 : vector<2x32xf32>
    %201 = vector.extract_strided_slice %186 {offsets = [0, 96], sizes = [2, 32], strides = [1, 1]} : vector<2x128xf32> to vector<2x32xf32>
    %202 = arith.negf %201 : vector<2x32xf32>
    %203 = math.exp %202 : vector<2x32xf32>
    %cst_58 = arith.constant 1.000000e+00 : f32
    %204 = vector.broadcast %cst_58 : f32 to vector<2x32xf32>
    %205 = arith.addf %204, %203 : vector<2x32xf32>
    %206 = arith.divf %204, %205 : vector<2x32xf32>
    %207 = arith.mulf %198, %176 : vector<2x32xf32>
    %208 = arith.mulf %192, %200 : vector<2x32xf32>
    %209 = arith.addf %207, %208 : vector<2x32xf32>
    %210 = math.tanh %209 : vector<2x32xf32>
    %211 = arith.mulf %206, %210 : vector<2x32xf32>
    %212 = arith.index_cast %182 : i32 to index
    %c0_59 = arith.constant 0 : index
    %213 = vector.load %arg17[%212, %c0_59] : memref<16x32xf32, #tpu.memory_space<vmem>>, vector<2x32xf32>
    tpu.vector_store %arg17[%212, %c0_59], %211 {strides = array<i32>} : memref<16x32xf32, #tpu.memory_space<vmem>>, vector<2x32xf32>,
    %c6_i32 = arith.constant 6 : i32
    %c2_i32_60 = arith.constant 2 : i32
    %214 = arith.muli %c6_i32, %c2_i32_60 : i32
    %215 = tpu.assume_multiple %214, 2 : i32
    %216 = arith.index_cast %215 : i32 to index
    %c0_61 = arith.constant 0 : index
    %217 = vector.load %arg18[%216, %c0_61] : memref<16x128xf32, #tpu.memory_space<vmem>>, vector<2x128xf32>
    %cst_62 = arith.constant dense<0.000000e+00> : vector<2x128xf32>
    %218 = tpu.matmul %211, %11, %cst_62 {dimension_numbers = #tpu.dot_dimension_numbers<[1], [0], [0], [1], [0, 0, 1, 1], [], []>} : vector<2x32xf32>, vector<32x128xf32>, vector<2x128xf32> -> vector<2x128xf32>
    %219 = arith.addf %217, %218 : vector<2x128xf32>
    %220 = vector.extract_strided_slice %219 {offsets = [0, 0], sizes = [2, 32], strides = [1, 1]} : vector<2x128xf32> to vector<2x32xf32>
    %221 = arith.negf %220 : vector<2x32xf32>
    %222 = math.exp %221 : vector<2x32xf32>
    %cst_63 = arith.constant 1.000000e+00 : f32
    %223 = vector.broadcast %cst_63 : f32 to vector<2x32xf32>
    %224 = arith.addf %223, %222 : vector<2x32xf32>
    %225 = arith.divf %223, %224 : vector<2x32xf32>
    %226 = vector.extract_strided_slice %219 {offsets = [0, 32], sizes = [2, 32], strides = [1, 1]} : vector<2x128xf32> to vector<2x32xf32>
    %227 = arith.negf %226 : vector<2x32xf32>
    %228 = math.exp %227 : vector<2x32xf32>
    %cst_64 = arith.constant 1.000000e+00 : f32
    %229 = vector.broadcast %cst_64 : f32 to vector<2x32xf32>
    %230 = arith.addf %229, %228 : vector<2x32xf32>
    %231 = arith.divf %229, %230 : vector<2x32xf32>
    %232 = vector.extract_strided_slice %219 {offsets = [0, 64], sizes = [2, 32], strides = [1, 1]} : vector<2x128xf32> to vector<2x32xf32>
    %233 = math.tanh %232 : vector<2x32xf32>
    %234 = vector.extract_strided_slice %219 {offsets = [0, 96], sizes = [2, 32], strides = [1, 1]} : vector<2x128xf32> to vector<2x32xf32>
    %235 = arith.negf %234 : vector<2x32xf32>
    %236 = math.exp %235 : vector<2x32xf32>
    %cst_65 = arith.constant 1.000000e+00 : f32
    %237 = vector.broadcast %cst_65 : f32 to vector<2x32xf32>
    %238 = arith.addf %237, %236 : vector<2x32xf32>
    %239 = arith.divf %237, %238 : vector<2x32xf32>
    %240 = arith.mulf %231, %209 : vector<2x32xf32>
    %241 = arith.mulf %225, %233 : vector<2x32xf32>
    %242 = arith.addf %240, %241 : vector<2x32xf32>
    %243 = math.tanh %242 : vector<2x32xf32>
    %244 = arith.mulf %239, %243 : vector<2x32xf32>
    %245 = arith.index_cast %215 : i32 to index
    %c0_66 = arith.constant 0 : index
    %246 = vector.load %arg17[%245, %c0_66] : memref<16x32xf32, #tpu.memory_space<vmem>>, vector<2x32xf32>
    tpu.vector_store %arg17[%245, %c0_66], %244 {strides = array<i32>} : memref<16x32xf32, #tpu.memory_space<vmem>>, vector<2x32xf32>,
    %c7_i32 = arith.constant 7 : i32
    %c2_i32_67 = arith.constant 2 : i32
    %247 = arith.muli %c7_i32, %c2_i32_67 : i32
    %248 = tpu.assume_multiple %247, 2 : i32
    %249 = arith.index_cast %248 : i32 to index
    %c0_68 = arith.constant 0 : index
    %250 = vector.load %arg18[%249, %c0_68] : memref<16x128xf32, #tpu.memory_space<vmem>>, vector<2x128xf32>
    %cst_69 = arith.constant dense<0.000000e+00> : vector<2x128xf32>
    %251 = tpu.matmul %244, %11, %cst_69 {dimension_numbers = #tpu.dot_dimension_numbers<[1], [0], [0], [1], [0, 0, 1, 1], [], []>} : vector<2x32xf32>, vector<32x128xf32>, vector<2x128xf32> -> vector<2x128xf32>
    %252 = arith.addf %250, %251 : vector<2x128xf32>
    %253 = vector.extract_strided_slice %252 {offsets = [0, 0], sizes = [2, 32], strides = [1, 1]} : vector<2x128xf32> to vector<2x32xf32>
    %254 = arith.negf %253 : vector<2x32xf32>
    %255 = math.exp %254 : vector<2x32xf32>
    %cst_70 = arith.constant 1.000000e+00 : f32
    %256 = vector.broadcast %cst_70 : f32 to vector<2x32xf32>
    %257 = arith.addf %256, %255 : vector<2x32xf32>
    %258 = arith.divf %256, %257 : vector<2x32xf32>
    %259 = vector.extract_strided_slice %252 {offsets = [0, 32], sizes = [2, 32], strides = [1, 1]} : vector<2x128xf32> to vector<2x32xf32>
    %260 = arith.negf %259 : vector<2x32xf32>
    %261 = math.exp %260 : vector<2x32xf32>
    %cst_71 = arith.constant 1.000000e+00 : f32
    %262 = vector.broadcast %cst_71 : f32 to vector<2x32xf32>
    %263 = arith.addf %262, %261 : vector<2x32xf32>
    %264 = arith.divf %262, %263 : vector<2x32xf32>
    %265 = vector.extract_strided_slice %252 {offsets = [0, 64], sizes = [2, 32], strides = [1, 1]} : vector<2x128xf32> to vector<2x32xf32>
    %266 = math.tanh %265 : vector<2x32xf32>
    %267 = vector.extract_strided_slice %252 {offsets = [0, 96], sizes = [2, 32], strides = [1, 1]} : vector<2x128xf32> to vector<2x32xf32>
    %268 = arith.negf %267 : vector<2x32xf32>
    %269 = math.exp %268 : vector<2x32xf32>
    %cst_72 = arith.constant 1.000000e+00 : f32
    %270 = vector.broadcast %cst_72 : f32 to vector<2x32xf32>
    %271 = arith.addf %270, %269 : vector<2x32xf32>
    %272 = arith.divf %270, %271 : vector<2x32xf32>
    %273 = arith.mulf %264, %242 : vector<2x32xf32>
    %274 = arith.mulf %258, %266 : vector<2x32xf32>
    %275 = arith.addf %273, %274 : vector<2x32xf32>
    %276 = math.tanh %275 : vector<2x32xf32>
    %277 = arith.mulf %272, %276 : vector<2x32xf32>
    %278 = arith.index_cast %248 : i32 to index
    %c0_73 = arith.constant 0 : index
    %279 = vector.load %arg17[%278, %c0_73] : memref<16x32xf32, #tpu.memory_space<vmem>>, vector<2x32xf32>
    tpu.vector_store %arg17[%278, %c0_73], %277 {strides = array<i32>} : memref<16x32xf32, #tpu.memory_space<vmem>>, vector<2x32xf32>,
    %c8_i32 = arith.constant 8 : i32
    %c0_74 = arith.constant 0 : index
    %c0_75 = arith.constant 0 : index
    %c0_76 = arith.constant 0 : index
    %280 = vector.load %arg15[%c0_74, %c0_75, %c0_76] : memref<3x2x32xf32, #tpu.memory_space<vmem>>, vector<1x2x32xf32>
    %281 = vector.shape_cast %280 : vector<1x2x32xf32> to vector<2x32xf32>
    %282 = vector.shape_cast %277 : vector<2x32xf32> to vector<1x2x32xf32>
    tpu.vector_store %arg15[%c0_74, %c0_75, %c0_76], %282 {strides = array<i32>} : memref<3x2x32xf32, #tpu.memory_space<vmem>>, vector<1x2x32xf32>,
    %c0_77 = arith.constant 0 : index
    %c0_78 = arith.constant 0 : index
    %c0_79 = arith.constant 0 : index
    %283 = vector.load %arg16[%c0_77, %c0_78, %c0_79] : memref<3x2x32xf32, #tpu.memory_space<vmem>>, vector<1x2x32xf32>
    %284 = vector.shape_cast %283 : vector<1x2x32xf32> to vector<2x32xf32>
    %285 = vector.shape_cast %275 : vector<2x32xf32> to vector<1x2x32xf32>
    tpu.vector_store %arg16[%c0_77, %c0_78, %c0_79], %285 {strides = array<i32>} : memref<3x2x32xf32, #tpu.memory_space<vmem>>, vector<1x2x32xf32>,
    %c0_80 = arith.constant 0 : index
    %c0_81 = arith.constant 0 : index
    %286 = vector.load %arg17[%c0_80, %c0_81] : memref<16x32xf32, #tpu.memory_space<vmem>>, vector<16x32xf32>
    %c0_82 = arith.constant 0 : index
    %c0_83 = arith.constant 0 : index
    %287 = vector.load %arg6[%c0_82, %c0_83] : memref<32x128xf32, #tpu.memory_space<vmem>>, vector<32x128xf32>
    %cst_84 = arith.constant dense<0.000000e+00> : vector<16x128xf32>
    %288 = tpu.matmul %286, %287, %cst_84 {dimension_numbers = #tpu.dot_dimension_numbers<[1], [0], [0], [1], [0, 0, 1, 1], [], []>} : vector<16x32xf32>, vector<32x128xf32>, vector<16x128xf32> -> vector<16x128xf32>
    %c0_85 = arith.constant 0 : index
    %c0_86 = arith.constant 0 : index
    %289 = vector.load %arg8[%c0_85, %c0_86] : memref<1x128xf32, #tpu.memory_space<vmem>>, vector<1x128xf32>
    %290 = vector.broadcast %289 : vector<1x128xf32> to vector<16x128xf32>
    %291 = arith.addf %288, %290 : vector<16x128xf32>
    %c0_87 = arith.constant 0 : index
    %c0_88 = arith.constant 0 : index
    %292 = vector.load %arg18[%c0_87, %c0_88] : memref<16x128xf32, #tpu.memory_space<vmem>>, vector<16x128xf32>
    tpu.vector_store %arg18[%c0_87, %c0_88], %291 {strides = array<i32>} : memref<16x128xf32, #tpu.memory_space<vmem>>, vector<16x128xf32>,
    %c0_89 = arith.constant 0 : index
    %c0_90 = arith.constant 0 : index
    %293 = vector.load %arg7[%c0_89, %c0_90] : memref<32x128xf32, #tpu.memory_space<vmem>>, vector<32x128xf32>
    %c1 = arith.constant 1 : index
    %c0_91 = arith.constant 0 : index
    %c0_92 = arith.constant 0 : index
    %294 = vector.load %arg15[%c1, %c0_91, %c0_92] : memref<3x2x32xf32, #tpu.memory_space<vmem>>, vector<1x2x32xf32>
    %295 = vector.shape_cast %294 : vector<1x2x32xf32> to vector<2x32xf32>
    %c1_93 = arith.constant 1 : index
    %c0_94 = arith.constant 0 : index
    %c0_95 = arith.constant 0 : index
    %296 = vector.load %arg16[%c1_93, %c0_94, %c0_95] : memref<3x2x32xf32, #tpu.memory_space<vmem>>, vector<1x2x32xf32>
    %297 = vector.shape_cast %296 : vector<1x2x32xf32> to vector<2x32xf32>
    %c0_i32_96 = arith.constant 0 : i32
    %c2_i32_97 = arith.constant 2 : i32
    %298 = arith.muli %c0_i32_96, %c2_i32_97 : i32
    %299 = tpu.assume_multiple %298, 2 : i32
    %300 = arith.index_cast %299 : i32 to index
    %c0_98 = arith.constant 0 : index
    %301 = vector.load %arg18[%300, %c0_98] : memref<16x128xf32, #tpu.memory_space<vmem>>, vector<2x128xf32>
    %cst_99 = arith.constant dense<0.000000e+00> : vector<2x128xf32>
    %302 = tpu.matmul %295, %293, %cst_99 {dimension_numbers = #tpu.dot_dimension_numbers<[1], [0], [0], [1], [0, 0, 1, 1], [], []>} : vector<2x32xf32>, vector<32x128xf32>, vector<2x128xf32> -> vector<2x128xf32>
    %303 = arith.addf %301, %302 : vector<2x128xf32>
    %304 = vector.extract_strided_slice %303 {offsets = [0, 0], sizes = [2, 32], strides = [1, 1]} : vector<2x128xf32> to vector<2x32xf32>
    %305 = arith.negf %304 : vector<2x32xf32>
    %306 = math.exp %305 : vector<2x32xf32>
    %cst_100 = arith.constant 1.000000e+00 : f32
    %307 = vector.broadcast %cst_100 : f32 to vector<2x32xf32>
    %308 = arith.addf %307, %306 : vector<2x32xf32>
    %309 = arith.divf %307, %308 : vector<2x32xf32>
    %310 = vector.extract_strided_slice %303 {offsets = [0, 32], sizes = [2, 32], strides = [1, 1]} : vector<2x128xf32> to vector<2x32xf32>
    %311 = arith.negf %310 : vector<2x32xf32>
    %312 = math.exp %311 : vector<2x32xf32>
    %cst_101 = arith.constant 1.000000e+00 : f32
    %313 = vector.broadcast %cst_101 : f32 to vector<2x32xf32>
    %314 = arith.addf %313, %312 : vector<2x32xf32>
    %315 = arith.divf %313, %314 : vector<2x32xf32>
    %316 = vector.extract_strided_slice %303 {offsets = [0, 64], sizes = [2, 32], strides = [1, 1]} : vector<2x128xf32> to vector<2x32xf32>
    %317 = math.tanh %316 : vector<2x32xf32>
    %318 = vector.extract_strided_slice %303 {offsets = [0, 96], sizes = [2, 32], strides = [1, 1]} : vector<2x128xf32> to vector<2x32xf32>
    %319 = arith.negf %318 : vector<2x32xf32>
    %320 = math.exp %319 : vector<2x32xf32>
    %cst_102 = arith.constant 1.000000e+00 : f32
    %321 = vector.broadcast %cst_102 : f32 to vector<2x32xf32>
    %322 = arith.addf %321, %320 : vector<2x32xf32>
    %323 = arith.divf %321, %322 : vector<2x32xf32>
    %324 = arith.mulf %315, %297 : vector<2x32xf32>
    %325 = arith.mulf %309, %317 : vector<2x32xf32>
    %326 = arith.addf %324, %325 : vector<2x32xf32>
    %327 = math.tanh %326 : vector<2x32xf32>
    %328 = arith.mulf %323, %327 : vector<2x32xf32>
    %329 = arith.index_cast %299 : i32 to index
    %c0_103 = arith.constant 0 : index
    %330 = vector.load %arg17[%329, %c0_103] : memref<16x32xf32, #tpu.memory_space<vmem>>, vector<2x32xf32>
    tpu.vector_store %arg17[%329, %c0_103], %328 {strides = array<i32>} : memref<16x32xf32, #tpu.memory_space<vmem>>, vector<2x32xf32>,
    %c1_i32_104 = arith.constant 1 : i32
    %c2_i32_105 = arith.constant 2 : i32
    %331 = arith.muli %c1_i32_104, %c2_i32_105 : i32
    %332 = tpu.assume_multiple %331, 2 : i32
    %333 = arith.index_cast %332 : i32 to index
    %c0_106 = arith.constant 0 : index
    %334 = vector.load %arg18[%333, %c0_106] : memref<16x128xf32, #tpu.memory_space<vmem>>, vector<2x128xf32>
    %cst_107 = arith.constant dense<0.000000e+00> : vector<2x128xf32>
    %335 = tpu.matmul %328, %293, %cst_107 {dimension_numbers = #tpu.dot_dimension_numbers<[1], [0], [0], [1], [0, 0, 1, 1], [], []>} : vector<2x32xf32>, vector<32x128xf32>, vector<2x128xf32> -> vector<2x128xf32>
    %336 = arith.addf %334, %335 : vector<2x128xf32>
    %337 = vector.extract_strided_slice %336 {offsets = [0, 0], sizes = [2, 32], strides = [1, 1]} : vector<2x128xf32> to vector<2x32xf32>
    %338 = arith.negf %337 : vector<2x32xf32>
    %339 = math.exp %338 : vector<2x32xf32>
    %cst_108 = arith.constant 1.000000e+00 : f32
    %340 = vector.broadcast %cst_108 : f32 to vector<2x32xf32>
    %341 = arith.addf %340, %339 : vector<2x32xf32>
    %342 = arith.divf %340, %341 : vector<2x32xf32>
    %343 = vector.extract_strided_slice %336 {offsets = [0, 32], sizes = [2, 32], strides = [1, 1]} : vector<2x128xf32> to vector<2x32xf32>
    %344 = arith.negf %343 : vector<2x32xf32>
    %345 = math.exp %344 : vector<2x32xf32>
    %cst_109 = arith.constant 1.000000e+00 : f32
    %346 = vector.broadcast %cst_109 : f32 to vector<2x32xf32>
    %347 = arith.addf %346, %345 : vector<2x32xf32>
    %348 = arith.divf %346, %347 : vector<2x32xf32>
    %349 = vector.extract_strided_slice %336 {offsets = [0, 64], sizes = [2, 32], strides = [1, 1]} : vector<2x128xf32> to vector<2x32xf32>
    %350 = math.tanh %349 : vector<2x32xf32>
    %351 = vector.extract_strided_slice %336 {offsets = [0, 96], sizes = [2, 32], strides = [1, 1]} : vector<2x128xf32> to vector<2x32xf32>
    %352 = arith.negf %351 : vector<2x32xf32>
    %353 = math.exp %352 : vector<2x32xf32>
    %cst_110 = arith.constant 1.000000e+00 : f32
    %354 = vector.broadcast %cst_110 : f32 to vector<2x32xf32>
    %355 = arith.addf %354, %353 : vector<2x32xf32>
    %356 = arith.divf %354, %355 : vector<2x32xf32>
    %357 = arith.mulf %348, %326 : vector<2x32xf32>
    %358 = arith.mulf %342, %350 : vector<2x32xf32>
    %359 = arith.addf %357, %358 : vector<2x32xf32>
    %360 = math.tanh %359 : vector<2x32xf32>
    %361 = arith.mulf %356, %360 : vector<2x32xf32>
    %362 = arith.index_cast %332 : i32 to index
    %c0_111 = arith.constant 0 : index
    %363 = vector.load %arg17[%362, %c0_111] : memref<16x32xf32, #tpu.memory_space<vmem>>, vector<2x32xf32>
    tpu.vector_store %arg17[%362, %c0_111], %361 {strides = array<i32>} : memref<16x32xf32, #tpu.memory_space<vmem>>, vector<2x32xf32>,
    %c2_i32_112 = arith.constant 2 : i32
    %c2_i32_113 = arith.constant 2 : i32
    %364 = arith.muli %c2_i32_112, %c2_i32_113 : i32
    %365 = tpu.assume_multiple %364, 2 : i32
    %366 = arith.index_cast %365 : i32 to index
    %c0_114 = arith.constant 0 : index
    %367 = vector.load %arg18[%366, %c0_114] : memref<16x128xf32, #tpu.memory_space<vmem>>, vector<2x128xf32>
    %cst_115 = arith.constant dense<0.000000e+00> : vector<2x128xf32>
    %368 = tpu.matmul %361, %293, %cst_115 {dimension_numbers = #tpu.dot_dimension_numbers<[1], [0], [0], [1], [0, 0, 1, 1], [], []>} : vector<2x32xf32>, vector<32x128xf32>, vector<2x128xf32> -> vector<2x128xf32>
    %369 = arith.addf %367, %368 : vector<2x128xf32>
    %370 = vector.extract_strided_slice %369 {offsets = [0, 0], sizes = [2, 32], strides = [1, 1]} : vector<2x128xf32> to vector<2x32xf32>
    %371 = arith.negf %370 : vector<2x32xf32>
    %372 = math.exp %371 : vector<2x32xf32>
    %cst_116 = arith.constant 1.000000e+00 : f32
    %373 = vector.broadcast %cst_116 : f32 to vector<2x32xf32>
    %374 = arith.addf %373, %372 : vector<2x32xf32>
    %375 = arith.divf %373, %374 : vector<2x32xf32>
    %376 = vector.extract_strided_slice %369 {offsets = [0, 32], sizes = [2, 32], strides = [1, 1]} : vector<2x128xf32> to vector<2x32xf32>
    %377 = arith.negf %376 : vector<2x32xf32>
    %378 = math.exp %377 : vector<2x32xf32>
    %cst_117 = arith.constant 1.000000e+00 : f32
    %379 = vector.broadcast %cst_117 : f32 to vector<2x32xf32>
    %380 = arith.addf %379, %378 : vector<2x32xf32>
    %381 = arith.divf %379, %380 : vector<2x32xf32>
    %382 = vector.extract_strided_slice %369 {offsets = [0, 64], sizes = [2, 32], strides = [1, 1]} : vector<2x128xf32> to vector<2x32xf32>
    %383 = math.tanh %382 : vector<2x32xf32>
    %384 = vector.extract_strided_slice %369 {offsets = [0, 96], sizes = [2, 32], strides = [1, 1]} : vector<2x128xf32> to vector<2x32xf32>
    %385 = arith.negf %384 : vector<2x32xf32>
    %386 = math.exp %385 : vector<2x32xf32>
    %cst_118 = arith.constant 1.000000e+00 : f32
    %387 = vector.broadcast %cst_118 : f32 to vector<2x32xf32>
    %388 = arith.addf %387, %386 : vector<2x32xf32>
    %389 = arith.divf %387, %388 : vector<2x32xf32>
    %390 = arith.mulf %381, %359 : vector<2x32xf32>
    %391 = arith.mulf %375, %383 : vector<2x32xf32>
    %392 = arith.addf %390, %391 : vector<2x32xf32>
    %393 = math.tanh %392 : vector<2x32xf32>
    %394 = arith.mulf %389, %393 : vector<2x32xf32>
    %395 = arith.index_cast %365 : i32 to index
    %c0_119 = arith.constant 0 : index
    %396 = vector.load %arg17[%395, %c0_119] : memref<16x32xf32, #tpu.memory_space<vmem>>, vector<2x32xf32>
    tpu.vector_store %arg17[%395, %c0_119], %394 {strides = array<i32>} : memref<16x32xf32, #tpu.memory_space<vmem>>, vector<2x32xf32>,
    %c3_i32_120 = arith.constant 3 : i32
    %c2_i32_121 = arith.constant 2 : i32
    %397 = arith.muli %c3_i32_120, %c2_i32_121 : i32
    %398 = tpu.assume_multiple %397, 2 : i32
    %399 = arith.index_cast %398 : i32 to index
    %c0_122 = arith.constant 0 : index
    %400 = vector.load %arg18[%399, %c0_122] : memref<16x128xf32, #tpu.memory_space<vmem>>, vector<2x128xf32>
    %cst_123 = arith.constant dense<0.000000e+00> : vector<2x128xf32>
    %401 = tpu.matmul %394, %293, %cst_123 {dimension_numbers = #tpu.dot_dimension_numbers<[1], [0], [0], [1], [0, 0, 1, 1], [], []>} : vector<2x32xf32>, vector<32x128xf32>, vector<2x128xf32> -> vector<2x128xf32>
    %402 = arith.addf %400, %401 : vector<2x128xf32>
    %403 = vector.extract_strided_slice %402 {offsets = [0, 0], sizes = [2, 32], strides = [1, 1]} : vector<2x128xf32> to vector<2x32xf32>
    %404 = arith.negf %403 : vector<2x32xf32>
    %405 = math.exp %404 : vector<2x32xf32>
    %cst_124 = arith.constant 1.000000e+00 : f32
    %406 = vector.broadcast %cst_124 : f32 to vector<2x32xf32>
    %407 = arith.addf %406, %405 : vector<2x32xf32>
    %408 = arith.divf %406, %407 : vector<2x32xf32>
    %409 = vector.extract_strided_slice %402 {offsets = [0, 32], sizes = [2, 32], strides = [1, 1]} : vector<2x128xf32> to vector<2x32xf32>
    %410 = arith.negf %409 : vector<2x32xf32>
    %411 = math.exp %410 : vector<2x32xf32>
    %cst_125 = arith.constant 1.000000e+00 : f32
    %412 = vector.broadcast %cst_125 : f32 to vector<2x32xf32>
    %413 = arith.addf %412, %411 : vector<2x32xf32>
    %414 = arith.divf %412, %413 : vector<2x32xf32>
    %415 = vector.extract_strided_slice %402 {offsets = [0, 64], sizes = [2, 32], strides = [1, 1]} : vector<2x128xf32> to vector<2x32xf32>
    %416 = math.tanh %415 : vector<2x32xf32>
    %417 = vector.extract_strided_slice %402 {offsets = [0, 96], sizes = [2, 32], strides = [1, 1]} : vector<2x128xf32> to vector<2x32xf32>
    %418 = arith.negf %417 : vector<2x32xf32>
    %419 = math.exp %418 : vector<2x32xf32>
    %cst_126 = arith.constant 1.000000e+00 : f32
    %420 = vector.broadcast %cst_126 : f32 to vector<2x32xf32>
    %421 = arith.addf %420, %419 : vector<2x32xf32>
    %422 = arith.divf %420, %421 : vector<2x32xf32>
    %423 = arith.mulf %414, %392 : vector<2x32xf32>
    %424 = arith.mulf %408, %416 : vector<2x32xf32>
    %425 = arith.addf %423, %424 : vector<2x32xf32>
    %426 = math.tanh %425 : vector<2x32xf32>
    %427 = arith.mulf %422, %426 : vector<2x32xf32>
    %428 = arith.index_cast %398 : i32 to index
    %c0_127 = arith.constant 0 : index
    %429 = vector.load %arg17[%428, %c0_127] : memref<16x32xf32, #tpu.memory_space<vmem>>, vector<2x32xf32>
    tpu.vector_store %arg17[%428, %c0_127], %427 {strides = array<i32>} : memref<16x32xf32, #tpu.memory_space<vmem>>, vector<2x32xf32>,
    %c4_i32_128 = arith.constant 4 : i32
    %c2_i32_129 = arith.constant 2 : i32
    %430 = arith.muli %c4_i32_128, %c2_i32_129 : i32
    %431 = tpu.assume_multiple %430, 2 : i32
    %432 = arith.index_cast %431 : i32 to index
    %c0_130 = arith.constant 0 : index
    %433 = vector.load %arg18[%432, %c0_130] : memref<16x128xf32, #tpu.memory_space<vmem>>, vector<2x128xf32>
    %cst_131 = arith.constant dense<0.000000e+00> : vector<2x128xf32>
    %434 = tpu.matmul %427, %293, %cst_131 {dimension_numbers = #tpu.dot_dimension_numbers<[1], [0], [0], [1], [0, 0, 1, 1], [], []>} : vector<2x32xf32>, vector<32x128xf32>, vector<2x128xf32> -> vector<2x128xf32>
    %435 = arith.addf %433, %434 : vector<2x128xf32>
    %436 = vector.extract_strided_slice %435 {offsets = [0, 0], sizes = [2, 32], strides = [1, 1]} : vector<2x128xf32> to vector<2x32xf32>
    %437 = arith.negf %436 : vector<2x32xf32>
    %438 = math.exp %437 : vector<2x32xf32>
    %cst_132 = arith.constant 1.000000e+00 : f32
    %439 = vector.broadcast %cst_132 : f32 to vector<2x32xf32>
    %440 = arith.addf %439, %438 : vector<2x32xf32>
    %441 = arith.divf %439, %440 : vector<2x32xf32>
    %442 = vector.extract_strided_slice %435 {offsets = [0, 32], sizes = [2, 32], strides = [1, 1]} : vector<2x128xf32> to vector<2x32xf32>
    %443 = arith.negf %442 : vector<2x32xf32>
    %444 = math.exp %443 : vector<2x32xf32>
    %cst_133 = arith.constant 1.000000e+00 : f32
    %445 = vector.broadcast %cst_133 : f32 to vector<2x32xf32>
    %446 = arith.addf %445, %444 : vector<2x32xf32>
    %447 = arith.divf %445, %446 : vector<2x32xf32>
    %448 = vector.extract_strided_slice %435 {offsets = [0, 64], sizes = [2, 32], strides = [1, 1]} : vector<2x128xf32> to vector<2x32xf32>
    %449 = math.tanh %448 : vector<2x32xf32>
    %450 = vector.extract_strided_slice %435 {offsets = [0, 96], sizes = [2, 32], strides = [1, 1]} : vector<2x128xf32> to vector<2x32xf32>
    %451 = arith.negf %450 : vector<2x32xf32>
    %452 = math.exp %451 : vector<2x32xf32>
    %cst_134 = arith.constant 1.000000e+00 : f32
    %453 = vector.broadcast %cst_134 : f32 to vector<2x32xf32>
    %454 = arith.addf %453, %452 : vector<2x32xf32>
    %455 = arith.divf %453, %454 : vector<2x32xf32>
    %456 = arith.mulf %447, %425 : vector<2x32xf32>
    %457 = arith.mulf %441, %449 : vector<2x32xf32>
    %458 = arith.addf %456, %457 : vector<2x32xf32>
    %459 = math.tanh %458 : vector<2x32xf32>
    %460 = arith.mulf %455, %459 : vector<2x32xf32>
    %461 = arith.index_cast %431 : i32 to index
    %c0_135 = arith.constant 0 : index
    %462 = vector.load %arg17[%461, %c0_135] : memref<16x32xf32, #tpu.memory_space<vmem>>, vector<2x32xf32>
    tpu.vector_store %arg17[%461, %c0_135], %460 {strides = array<i32>} : memref<16x32xf32, #tpu.memory_space<vmem>>, vector<2x32xf32>,
    %c5_i32_136 = arith.constant 5 : i32
    %c2_i32_137 = arith.constant 2 : i32
    %463 = arith.muli %c5_i32_136, %c2_i32_137 : i32
    %464 = tpu.assume_multiple %463, 2 : i32
    %465 = arith.index_cast %464 : i32 to index
    %c0_138 = arith.constant 0 : index
    %466 = vector.load %arg18[%465, %c0_138] : memref<16x128xf32, #tpu.memory_space<vmem>>, vector<2x128xf32>
    %cst_139 = arith.constant dense<0.000000e+00> : vector<2x128xf32>
    %467 = tpu.matmul %460, %293, %cst_139 {dimension_numbers = #tpu.dot_dimension_numbers<[1], [0], [0], [1], [0, 0, 1, 1], [], []>} : vector<2x32xf32>, vector<32x128xf32>, vector<2x128xf32> -> vector<2x128xf32>
    %468 = arith.addf %466, %467 : vector<2x128xf32>
    %469 = vector.extract_strided_slice %468 {offsets = [0, 0], sizes = [2, 32], strides = [1, 1]} : vector<2x128xf32> to vector<2x32xf32>
    %470 = arith.negf %469 : vector<2x32xf32>
    %471 = math.exp %470 : vector<2x32xf32>
    %cst_140 = arith.constant 1.000000e+00 : f32
    %472 = vector.broadcast %cst_140 : f32 to vector<2x32xf32>
    %473 = arith.addf %472, %471 : vector<2x32xf32>
    %474 = arith.divf %472, %473 : vector<2x32xf32>
    %475 = vector.extract_strided_slice %468 {offsets = [0, 32], sizes = [2, 32], strides = [1, 1]} : vector<2x128xf32> to vector<2x32xf32>
    %476 = arith.negf %475 : vector<2x32xf32>
    %477 = math.exp %476 : vector<2x32xf32>
    %cst_141 = arith.constant 1.000000e+00 : f32
    %478 = vector.broadcast %cst_141 : f32 to vector<2x32xf32>
    %479 = arith.addf %478, %477 : vector<2x32xf32>
    %480 = arith.divf %478, %479 : vector<2x32xf32>
    %481 = vector.extract_strided_slice %468 {offsets = [0, 64], sizes = [2, 32], strides = [1, 1]} : vector<2x128xf32> to vector<2x32xf32>
    %482 = math.tanh %481 : vector<2x32xf32>
    %483 = vector.extract_strided_slice %468 {offsets = [0, 96], sizes = [2, 32], strides = [1, 1]} : vector<2x128xf32> to vector<2x32xf32>
    %484 = arith.negf %483 : vector<2x32xf32>
    %485 = math.exp %484 : vector<2x32xf32>
    %cst_142 = arith.constant 1.000000e+00 : f32
    %486 = vector.broadcast %cst_142 : f32 to vector<2x32xf32>
    %487 = arith.addf %486, %485 : vector<2x32xf32>
    %488 = arith.divf %486, %487 : vector<2x32xf32>
    %489 = arith.mulf %480, %458 : vector<2x32xf32>
    %490 = arith.mulf %474, %482 : vector<2x32xf32>
    %491 = arith.addf %489, %490 : vector<2x32xf32>
    %492 = math.tanh %491 : vector<2x32xf32>
    %493 = arith.mulf %488, %492 : vector<2x32xf32>
    %494 = arith.index_cast %464 : i32 to index
    %c0_143 = arith.constant 0 : index
    %495 = vector.load %arg17[%494, %c0_143] : memref<16x32xf32, #tpu.memory_space<vmem>>, vector<2x32xf32>
    tpu.vector_store %arg17[%494, %c0_143], %493 {strides = array<i32>} : memref<16x32xf32, #tpu.memory_space<vmem>>, vector<2x32xf32>,
    %c6_i32_144 = arith.constant 6 : i32
    %c2_i32_145 = arith.constant 2 : i32
    %496 = arith.muli %c6_i32_144, %c2_i32_145 : i32
    %497 = tpu.assume_multiple %496, 2 : i32
    %498 = arith.index_cast %497 : i32 to index
    %c0_146 = arith.constant 0 : index
    %499 = vector.load %arg18[%498, %c0_146] : memref<16x128xf32, #tpu.memory_space<vmem>>, vector<2x128xf32>
    %cst_147 = arith.constant dense<0.000000e+00> : vector<2x128xf32>
    %500 = tpu.matmul %493, %293, %cst_147 {dimension_numbers = #tpu.dot_dimension_numbers<[1], [0], [0], [1], [0, 0, 1, 1], [], []>} : vector<2x32xf32>, vector<32x128xf32>, vector<2x128xf32> -> vector<2x128xf32>
    %501 = arith.addf %499, %500 : vector<2x128xf32>
    %502 = vector.extract_strided_slice %501 {offsets = [0, 0], sizes = [2, 32], strides = [1, 1]} : vector<2x128xf32> to vector<2x32xf32>
    %503 = arith.negf %502 : vector<2x32xf32>
    %504 = math.exp %503 : vector<2x32xf32>
    %cst_148 = arith.constant 1.000000e+00 : f32
    %505 = vector.broadcast %cst_148 : f32 to vector<2x32xf32>
    %506 = arith.addf %505, %504 : vector<2x32xf32>
    %507 = arith.divf %505, %506 : vector<2x32xf32>
    %508 = vector.extract_strided_slice %501 {offsets = [0, 32], sizes = [2, 32], strides = [1, 1]} : vector<2x128xf32> to vector<2x32xf32>
    %509 = arith.negf %508 : vector<2x32xf32>
    %510 = math.exp %509 : vector<2x32xf32>
    %cst_149 = arith.constant 1.000000e+00 : f32
    %511 = vector.broadcast %cst_149 : f32 to vector<2x32xf32>
    %512 = arith.addf %511, %510 : vector<2x32xf32>
    %513 = arith.divf %511, %512 : vector<2x32xf32>
    %514 = vector.extract_strided_slice %501 {offsets = [0, 64], sizes = [2, 32], strides = [1, 1]} : vector<2x128xf32> to vector<2x32xf32>
    %515 = math.tanh %514 : vector<2x32xf32>
    %516 = vector.extract_strided_slice %501 {offsets = [0, 96], sizes = [2, 32], strides = [1, 1]} : vector<2x128xf32> to vector<2x32xf32>
    %517 = arith.negf %516 : vector<2x32xf32>
    %518 = math.exp %517 : vector<2x32xf32>
    %cst_150 = arith.constant 1.000000e+00 : f32
    %519 = vector.broadcast %cst_150 : f32 to vector<2x32xf32>
    %520 = arith.addf %519, %518 : vector<2x32xf32>
    %521 = arith.divf %519, %520 : vector<2x32xf32>
    %522 = arith.mulf %513, %491 : vector<2x32xf32>
    %523 = arith.mulf %507, %515 : vector<2x32xf32>
    %524 = arith.addf %522, %523 : vector<2x32xf32>
    %525 = math.tanh %524 : vector<2x32xf32>
    %526 = arith.mulf %521, %525 : vector<2x32xf32>
    %527 = arith.index_cast %497 : i32 to index
    %c0_151 = arith.constant 0 : index
    %528 = vector.load %arg17[%527, %c0_151] : memref<16x32xf32, #tpu.memory_space<vmem>>, vector<2x32xf32>
    tpu.vector_store %arg17[%527, %c0_151], %526 {strides = array<i32>} : memref<16x32xf32, #tpu.memory_space<vmem>>, vector<2x32xf32>,
    %c7_i32_152 = arith.constant 7 : i32
    %c2_i32_153 = arith.constant 2 : i32
    %529 = arith.muli %c7_i32_152, %c2_i32_153 : i32
    %530 = tpu.assume_multiple %529, 2 : i32
    %531 = arith.index_cast %530 : i32 to index
    %c0_154 = arith.constant 0 : index
    %532 = vector.load %arg18[%531, %c0_154] : memref<16x128xf32, #tpu.memory_space<vmem>>, vector<2x128xf32>
    %cst_155 = arith.constant dense<0.000000e+00> : vector<2x128xf32>
    %533 = tpu.matmul %526, %293, %cst_155 {dimension_numbers = #tpu.dot_dimension_numbers<[1], [0], [0], [1], [0, 0, 1, 1], [], []>} : vector<2x32xf32>, vector<32x128xf32>, vector<2x128xf32> -> vector<2x128xf32>
    %534 = arith.addf %532, %533 : vector<2x128xf32>
    %535 = vector.extract_strided_slice %534 {offsets = [0, 0], sizes = [2, 32], strides = [1, 1]} : vector<2x128xf32> to vector<2x32xf32>
    %536 = arith.negf %535 : vector<2x32xf32>
    %537 = math.exp %536 : vector<2x32xf32>
    %cst_156 = arith.constant 1.000000e+00 : f32
    %538 = vector.broadcast %cst_156 : f32 to vector<2x32xf32>
    %539 = arith.addf %538, %537 : vector<2x32xf32>
    %540 = arith.divf %538, %539 : vector<2x32xf32>
    %541 = vector.extract_strided_slice %534 {offsets = [0, 32], sizes = [2, 32], strides = [1, 1]} : vector<2x128xf32> to vector<2x32xf32>
    %542 = arith.negf %541 : vector<2x32xf32>
    %543 = math.exp %542 : vector<2x32xf32>
    %cst_157 = arith.constant 1.000000e+00 : f32
    %544 = vector.broadcast %cst_157 : f32 to vector<2x32xf32>
    %545 = arith.addf %544, %543 : vector<2x32xf32>
    %546 = arith.divf %544, %545 : vector<2x32xf32>
    %547 = vector.extract_strided_slice %534 {offsets = [0, 64], sizes = [2, 32], strides = [1, 1]} : vector<2x128xf32> to vector<2x32xf32>
    %548 = math.tanh %547 : vector<2x32xf32>
    %549 = vector.extract_strided_slice %534 {offsets = [0, 96], sizes = [2, 32], strides = [1, 1]} : vector<2x128xf32> to vector<2x32xf32>
    %550 = arith.negf %549 : vector<2x32xf32>
    %551 = math.exp %550 : vector<2x32xf32>
    %cst_158 = arith.constant 1.000000e+00 : f32
    %552 = vector.broadcast %cst_158 : f32 to vector<2x32xf32>
    %553 = arith.addf %552, %551 : vector<2x32xf32>
    %554 = arith.divf %552, %553 : vector<2x32xf32>
    %555 = arith.mulf %546, %524 : vector<2x32xf32>
    %556 = arith.mulf %540, %548 : vector<2x32xf32>
    %557 = arith.addf %555, %556 : vector<2x32xf32>
    %558 = math.tanh %557 : vector<2x32xf32>
    %559 = arith.mulf %554, %558 : vector<2x32xf32>
    %560 = arith.index_cast %530 : i32 to index
    %c0_159 = arith.constant 0 : index
    %561 = vector.load %arg17[%560, %c0_159] : memref<16x32xf32, #tpu.memory_space<vmem>>, vector<2x32xf32>
    tpu.vector_store %arg17[%560, %c0_159], %559 {strides = array<i32>} : memref<16x32xf32, #tpu.memory_space<vmem>>, vector<2x32xf32>,
    %c8_i32_160 = arith.constant 8 : i32
    %c1_161 = arith.constant 1 : index
    %c0_162 = arith.constant 0 : index
    %c0_163 = arith.constant 0 : index
    %562 = vector.load %arg15[%c1_161, %c0_162, %c0_163] : memref<3x2x32xf32, #tpu.memory_space<vmem>>, vector<1x2x32xf32>
    %563 = vector.shape_cast %562 : vector<1x2x32xf32> to vector<2x32xf32>
    %564 = vector.shape_cast %559 : vector<2x32xf32> to vector<1x2x32xf32>
    tpu.vector_store %arg15[%c1_161, %c0_162, %c0_163], %564 {strides = array<i32>} : memref<3x2x32xf32, #tpu.memory_space<vmem>>, vector<1x2x32xf32>,
    %c1_164 = arith.constant 1 : index
    %c0_165 = arith.constant 0 : index
    %c0_166 = arith.constant 0 : index
    %565 = vector.load %arg16[%c1_164, %c0_165, %c0_166] : memref<3x2x32xf32, #tpu.memory_space<vmem>>, vector<1x2x32xf32>
    %566 = vector.shape_cast %565 : vector<1x2x32xf32> to vector<2x32xf32>
    %567 = vector.shape_cast %557 : vector<2x32xf32> to vector<1x2x32xf32>
    tpu.vector_store %arg16[%c1_164, %c0_165, %c0_166], %567 {strides = array<i32>} : memref<3x2x32xf32, #tpu.memory_space<vmem>>, vector<1x2x32xf32>,
    %c0_167 = arith.constant 0 : index
    %c0_168 = arith.constant 0 : index
    %568 = vector.load %arg17[%c0_167, %c0_168] : memref<16x32xf32, #tpu.memory_space<vmem>>, vector<16x32xf32>
    %c0_169 = arith.constant 0 : index
    %c0_170 = arith.constant 0 : index
    %569 = vector.load %arg9[%c0_169, %c0_170] : memref<32x128xf32, #tpu.memory_space<vmem>>, vector<32x128xf32>
    %cst_171 = arith.constant dense<0.000000e+00> : vector<16x128xf32>
    %570 = tpu.matmul %568, %569, %cst_171 {dimension_numbers = #tpu.dot_dimension_numbers<[1], [0], [0], [1], [0, 0, 1, 1], [], []>} : vector<16x32xf32>, vector<32x128xf32>, vector<16x128xf32> -> vector<16x128xf32>
    %c0_172 = arith.constant 0 : index
    %c0_173 = arith.constant 0 : index
    %571 = vector.load %arg11[%c0_172, %c0_173] : memref<1x128xf32, #tpu.memory_space<vmem>>, vector<1x128xf32>
    %572 = vector.broadcast %571 : vector<1x128xf32> to vector<16x128xf32>
    %573 = arith.addf %570, %572 : vector<16x128xf32>
    %c0_174 = arith.constant 0 : index
    %c0_175 = arith.constant 0 : index
    %574 = vector.load %arg18[%c0_174, %c0_175] : memref<16x128xf32, #tpu.memory_space<vmem>>, vector<16x128xf32>
    tpu.vector_store %arg18[%c0_174, %c0_175], %573 {strides = array<i32>} : memref<16x128xf32, #tpu.memory_space<vmem>>, vector<16x128xf32>,
    %c0_176 = arith.constant 0 : index
    %c0_177 = arith.constant 0 : index
    %575 = vector.load %arg10[%c0_176, %c0_177] : memref<32x128xf32, #tpu.memory_space<vmem>>, vector<32x128xf32>
    %c2 = arith.constant 2 : index
    %c0_178 = arith.constant 0 : index
    %c0_179 = arith.constant 0 : index
    %576 = vector.load %arg15[%c2, %c0_178, %c0_179] : memref<3x2x32xf32, #tpu.memory_space<vmem>>, vector<1x2x32xf32>
    %577 = vector.shape_cast %576 : vector<1x2x32xf32> to vector<2x32xf32>
    %c2_180 = arith.constant 2 : index
    %c0_181 = arith.constant 0 : index
    %c0_182 = arith.constant 0 : index
    %578 = vector.load %arg16[%c2_180, %c0_181, %c0_182] : memref<3x2x32xf32, #tpu.memory_space<vmem>>, vector<1x2x32xf32>
    %579 = vector.shape_cast %578 : vector<1x2x32xf32> to vector<2x32xf32>
    %c0_i32_183 = arith.constant 0 : i32
    %c2_i32_184 = arith.constant 2 : i32
    %580 = arith.muli %c0_i32_183, %c2_i32_184 : i32
    %581 = tpu.assume_multiple %580, 2 : i32
    %582 = arith.index_cast %581 : i32 to index
    %c0_185 = arith.constant 0 : index
    %583 = vector.load %arg18[%582, %c0_185] : memref<16x128xf32, #tpu.memory_space<vmem>>, vector<2x128xf32>
    %cst_186 = arith.constant dense<0.000000e+00> : vector<2x128xf32>
    %584 = tpu.matmul %577, %575, %cst_186 {dimension_numbers = #tpu.dot_dimension_numbers<[1], [0], [0], [1], [0, 0, 1, 1], [], []>} : vector<2x32xf32>, vector<32x128xf32>, vector<2x128xf32> -> vector<2x128xf32>
    %585 = arith.addf %583, %584 : vector<2x128xf32>
    %586 = vector.extract_strided_slice %585 {offsets = [0, 0], sizes = [2, 32], strides = [1, 1]} : vector<2x128xf32> to vector<2x32xf32>
    %587 = arith.negf %586 : vector<2x32xf32>
    %588 = math.exp %587 : vector<2x32xf32>
    %cst_187 = arith.constant 1.000000e+00 : f32
    %589 = vector.broadcast %cst_187 : f32 to vector<2x32xf32>
    %590 = arith.addf %589, %588 : vector<2x32xf32>
    %591 = arith.divf %589, %590 : vector<2x32xf32>
    %592 = vector.extract_strided_slice %585 {offsets = [0, 32], sizes = [2, 32], strides = [1, 1]} : vector<2x128xf32> to vector<2x32xf32>
    %593 = arith.negf %592 : vector<2x32xf32>
    %594 = math.exp %593 : vector<2x32xf32>
    %cst_188 = arith.constant 1.000000e+00 : f32
    %595 = vector.broadcast %cst_188 : f32 to vector<2x32xf32>
    %596 = arith.addf %595, %594 : vector<2x32xf32>
    %597 = arith.divf %595, %596 : vector<2x32xf32>
    %598 = vector.extract_strided_slice %585 {offsets = [0, 64], sizes = [2, 32], strides = [1, 1]} : vector<2x128xf32> to vector<2x32xf32>
    %599 = math.tanh %598 : vector<2x32xf32>
    %600 = vector.extract_strided_slice %585 {offsets = [0, 96], sizes = [2, 32], strides = [1, 1]} : vector<2x128xf32> to vector<2x32xf32>
    %601 = arith.negf %600 : vector<2x32xf32>
    %602 = math.exp %601 : vector<2x32xf32>
    %cst_189 = arith.constant 1.000000e+00 : f32
    %603 = vector.broadcast %cst_189 : f32 to vector<2x32xf32>
    %604 = arith.addf %603, %602 : vector<2x32xf32>
    %605 = arith.divf %603, %604 : vector<2x32xf32>
    %606 = arith.mulf %597, %579 : vector<2x32xf32>
    %607 = arith.mulf %591, %599 : vector<2x32xf32>
    %608 = arith.addf %606, %607 : vector<2x32xf32>
    %609 = math.tanh %608 : vector<2x32xf32>
    %610 = arith.mulf %605, %609 : vector<2x32xf32>
    %c1_i32_190 = arith.constant 1 : i32
    %c2_i32_191 = arith.constant 2 : i32
    %611 = arith.muli %c1_i32_190, %c2_i32_191 : i32
    %612 = tpu.assume_multiple %611, 2 : i32
    %613 = arith.index_cast %612 : i32 to index
    %c0_192 = arith.constant 0 : index
    %614 = vector.load %arg18[%613, %c0_192] : memref<16x128xf32, #tpu.memory_space<vmem>>, vector<2x128xf32>
    %cst_193 = arith.constant dense<0.000000e+00> : vector<2x128xf32>
    %615 = tpu.matmul %610, %575, %cst_193 {dimension_numbers = #tpu.dot_dimension_numbers<[1], [0], [0], [1], [0, 0, 1, 1], [], []>} : vector<2x32xf32>, vector<32x128xf32>, vector<2x128xf32> -> vector<2x128xf32>
    %616 = arith.addf %614, %615 : vector<2x128xf32>
    %617 = vector.extract_strided_slice %616 {offsets = [0, 0], sizes = [2, 32], strides = [1, 1]} : vector<2x128xf32> to vector<2x32xf32>
    %618 = arith.negf %617 : vector<2x32xf32>
    %619 = math.exp %618 : vector<2x32xf32>
    %cst_194 = arith.constant 1.000000e+00 : f32
    %620 = vector.broadcast %cst_194 : f32 to vector<2x32xf32>
    %621 = arith.addf %620, %619 : vector<2x32xf32>
    %622 = arith.divf %620, %621 : vector<2x32xf32>
    %623 = vector.extract_strided_slice %616 {offsets = [0, 32], sizes = [2, 32], strides = [1, 1]} : vector<2x128xf32> to vector<2x32xf32>
    %624 = arith.negf %623 : vector<2x32xf32>
    %625 = math.exp %624 : vector<2x32xf32>
    %cst_195 = arith.constant 1.000000e+00 : f32
    %626 = vector.broadcast %cst_195 : f32 to vector<2x32xf32>
    %627 = arith.addf %626, %625 : vector<2x32xf32>
    %628 = arith.divf %626, %627 : vector<2x32xf32>
    %629 = vector.extract_strided_slice %616 {offsets = [0, 64], sizes = [2, 32], strides = [1, 1]} : vector<2x128xf32> to vector<2x32xf32>
    %630 = math.tanh %629 : vector<2x32xf32>
    %631 = vector.extract_strided_slice %616 {offsets = [0, 96], sizes = [2, 32], strides = [1, 1]} : vector<2x128xf32> to vector<2x32xf32>
    %632 = arith.negf %631 : vector<2x32xf32>
    %633 = math.exp %632 : vector<2x32xf32>
    %cst_196 = arith.constant 1.000000e+00 : f32
    %634 = vector.broadcast %cst_196 : f32 to vector<2x32xf32>
    %635 = arith.addf %634, %633 : vector<2x32xf32>
    %636 = arith.divf %634, %635 : vector<2x32xf32>
    %637 = arith.mulf %628, %608 : vector<2x32xf32>
    %638 = arith.mulf %622, %630 : vector<2x32xf32>
    %639 = arith.addf %637, %638 : vector<2x32xf32>
    %640 = math.tanh %639 : vector<2x32xf32>
    %641 = arith.mulf %636, %640 : vector<2x32xf32>
    %c2_i32_197 = arith.constant 2 : i32
    %c2_i32_198 = arith.constant 2 : i32
    %642 = arith.muli %c2_i32_197, %c2_i32_198 : i32
    %643 = tpu.assume_multiple %642, 2 : i32
    %644 = arith.index_cast %643 : i32 to index
    %c0_199 = arith.constant 0 : index
    %645 = vector.load %arg18[%644, %c0_199] : memref<16x128xf32, #tpu.memory_space<vmem>>, vector<2x128xf32>
    %cst_200 = arith.constant dense<0.000000e+00> : vector<2x128xf32>
    %646 = tpu.matmul %641, %575, %cst_200 {dimension_numbers = #tpu.dot_dimension_numbers<[1], [0], [0], [1], [0, 0, 1, 1], [], []>} : vector<2x32xf32>, vector<32x128xf32>, vector<2x128xf32> -> vector<2x128xf32>
    %647 = arith.addf %645, %646 : vector<2x128xf32>
    %648 = vector.extract_strided_slice %647 {offsets = [0, 0], sizes = [2, 32], strides = [1, 1]} : vector<2x128xf32> to vector<2x32xf32>
    %649 = arith.negf %648 : vector<2x32xf32>
    %650 = math.exp %649 : vector<2x32xf32>
    %cst_201 = arith.constant 1.000000e+00 : f32
    %651 = vector.broadcast %cst_201 : f32 to vector<2x32xf32>
    %652 = arith.addf %651, %650 : vector<2x32xf32>
    %653 = arith.divf %651, %652 : vector<2x32xf32>
    %654 = vector.extract_strided_slice %647 {offsets = [0, 32], sizes = [2, 32], strides = [1, 1]} : vector<2x128xf32> to vector<2x32xf32>
    %655 = arith.negf %654 : vector<2x32xf32>
    %656 = math.exp %655 : vector<2x32xf32>
    %cst_202 = arith.constant 1.000000e+00 : f32
    %657 = vector.broadcast %cst_202 : f32 to vector<2x32xf32>
    %658 = arith.addf %657, %656 : vector<2x32xf32>
    %659 = arith.divf %657, %658 : vector<2x32xf32>
    %660 = vector.extract_strided_slice %647 {offsets = [0, 64], sizes = [2, 32], strides = [1, 1]} : vector<2x128xf32> to vector<2x32xf32>
    %661 = math.tanh %660 : vector<2x32xf32>
    %662 = vector.extract_strided_slice %647 {offsets = [0, 96], sizes = [2, 32], strides = [1, 1]} : vector<2x128xf32> to vector<2x32xf32>
    %663 = arith.negf %662 : vector<2x32xf32>
    %664 = math.exp %663 : vector<2x32xf32>
    %cst_203 = arith.constant 1.000000e+00 : f32
    %665 = vector.broadcast %cst_203 : f32 to vector<2x32xf32>
    %666 = arith.addf %665, %664 : vector<2x32xf32>
    %667 = arith.divf %665, %666 : vector<2x32xf32>
    %668 = arith.mulf %659, %639 : vector<2x32xf32>
    %669 = arith.mulf %653, %661 : vector<2x32xf32>
    %670 = arith.addf %668, %669 : vector<2x32xf32>
    %671 = math.tanh %670 : vector<2x32xf32>
    %672 = arith.mulf %667, %671 : vector<2x32xf32>
    %c3_i32_204 = arith.constant 3 : i32
    %c2_i32_205 = arith.constant 2 : i32
    %673 = arith.muli %c3_i32_204, %c2_i32_205 : i32
    %674 = tpu.assume_multiple %673, 2 : i32
    %675 = arith.index_cast %674 : i32 to index
    %c0_206 = arith.constant 0 : index
    %676 = vector.load %arg18[%675, %c0_206] : memref<16x128xf32, #tpu.memory_space<vmem>>, vector<2x128xf32>
    %cst_207 = arith.constant dense<0.000000e+00> : vector<2x128xf32>
    %677 = tpu.matmul %672, %575, %cst_207 {dimension_numbers = #tpu.dot_dimension_numbers<[1], [0], [0], [1], [0, 0, 1, 1], [], []>} : vector<2x32xf32>, vector<32x128xf32>, vector<2x128xf32> -> vector<2x128xf32>
    %678 = arith.addf %676, %677 : vector<2x128xf32>
    %679 = vector.extract_strided_slice %678 {offsets = [0, 0], sizes = [2, 32], strides = [1, 1]} : vector<2x128xf32> to vector<2x32xf32>
    %680 = arith.negf %679 : vector<2x32xf32>
    %681 = math.exp %680 : vector<2x32xf32>
    %cst_208 = arith.constant 1.000000e+00 : f32
    %682 = vector.broadcast %cst_208 : f32 to vector<2x32xf32>
    %683 = arith.addf %682, %681 : vector<2x32xf32>
    %684 = arith.divf %682, %683 : vector<2x32xf32>
    %685 = vector.extract_strided_slice %678 {offsets = [0, 32], sizes = [2, 32], strides = [1, 1]} : vector<2x128xf32> to vector<2x32xf32>
    %686 = arith.negf %685 : vector<2x32xf32>
    %687 = math.exp %686 : vector<2x32xf32>
    %cst_209 = arith.constant 1.000000e+00 : f32
    %688 = vector.broadcast %cst_209 : f32 to vector<2x32xf32>
    %689 = arith.addf %688, %687 : vector<2x32xf32>
    %690 = arith.divf %688, %689 : vector<2x32xf32>
    %691 = vector.extract_strided_slice %678 {offsets = [0, 64], sizes = [2, 32], strides = [1, 1]} : vector<2x128xf32> to vector<2x32xf32>
    %692 = math.tanh %691 : vector<2x32xf32>
    %693 = vector.extract_strided_slice %678 {offsets = [0, 96], sizes = [2, 32], strides = [1, 1]} : vector<2x128xf32> to vector<2x32xf32>
    %694 = arith.negf %693 : vector<2x32xf32>
    %695 = math.exp %694 : vector<2x32xf32>
    %cst_210 = arith.constant 1.000000e+00 : f32
    %696 = vector.broadcast %cst_210 : f32 to vector<2x32xf32>
    %697 = arith.addf %696, %695 : vector<2x32xf32>
    %698 = arith.divf %696, %697 : vector<2x32xf32>
    %699 = arith.mulf %690, %670 : vector<2x32xf32>
    %700 = arith.mulf %684, %692 : vector<2x32xf32>
    %701 = arith.addf %699, %700 : vector<2x32xf32>
    %702 = math.tanh %701 : vector<2x32xf32>
    %703 = arith.mulf %698, %702 : vector<2x32xf32>
    %c4_i32_211 = arith.constant 4 : i32
    %c2_i32_212 = arith.constant 2 : i32
    %704 = arith.muli %c4_i32_211, %c2_i32_212 : i32
    %705 = tpu.assume_multiple %704, 2 : i32
    %706 = arith.index_cast %705 : i32 to index
    %c0_213 = arith.constant 0 : index
    %707 = vector.load %arg18[%706, %c0_213] : memref<16x128xf32, #tpu.memory_space<vmem>>, vector<2x128xf32>
    %cst_214 = arith.constant dense<0.000000e+00> : vector<2x128xf32>
    %708 = tpu.matmul %703, %575, %cst_214 {dimension_numbers = #tpu.dot_dimension_numbers<[1], [0], [0], [1], [0, 0, 1, 1], [], []>} : vector<2x32xf32>, vector<32x128xf32>, vector<2x128xf32> -> vector<2x128xf32>
    %709 = arith.addf %707, %708 : vector<2x128xf32>
    %710 = vector.extract_strided_slice %709 {offsets = [0, 0], sizes = [2, 32], strides = [1, 1]} : vector<2x128xf32> to vector<2x32xf32>
    %711 = arith.negf %710 : vector<2x32xf32>
    %712 = math.exp %711 : vector<2x32xf32>
    %cst_215 = arith.constant 1.000000e+00 : f32
    %713 = vector.broadcast %cst_215 : f32 to vector<2x32xf32>
    %714 = arith.addf %713, %712 : vector<2x32xf32>
    %715 = arith.divf %713, %714 : vector<2x32xf32>
    %716 = vector.extract_strided_slice %709 {offsets = [0, 32], sizes = [2, 32], strides = [1, 1]} : vector<2x128xf32> to vector<2x32xf32>
    %717 = arith.negf %716 : vector<2x32xf32>
    %718 = math.exp %717 : vector<2x32xf32>
    %cst_216 = arith.constant 1.000000e+00 : f32
    %719 = vector.broadcast %cst_216 : f32 to vector<2x32xf32>
    %720 = arith.addf %719, %718 : vector<2x32xf32>
    %721 = arith.divf %719, %720 : vector<2x32xf32>
    %722 = vector.extract_strided_slice %709 {offsets = [0, 64], sizes = [2, 32], strides = [1, 1]} : vector<2x128xf32> to vector<2x32xf32>
    %723 = math.tanh %722 : vector<2x32xf32>
    %724 = vector.extract_strided_slice %709 {offsets = [0, 96], sizes = [2, 32], strides = [1, 1]} : vector<2x128xf32> to vector<2x32xf32>
    %725 = arith.negf %724 : vector<2x32xf32>
    %726 = math.exp %725 : vector<2x32xf32>
    %cst_217 = arith.constant 1.000000e+00 : f32
    %727 = vector.broadcast %cst_217 : f32 to vector<2x32xf32>
    %728 = arith.addf %727, %726 : vector<2x32xf32>
    %729 = arith.divf %727, %728 : vector<2x32xf32>
    %730 = arith.mulf %721, %701 : vector<2x32xf32>
    %731 = arith.mulf %715, %723 : vector<2x32xf32>
    %732 = arith.addf %730, %731 : vector<2x32xf32>
    %733 = math.tanh %732 : vector<2x32xf32>
    %734 = arith.mulf %729, %733 : vector<2x32xf32>
    %c5_i32_218 = arith.constant 5 : i32
    %c2_i32_219 = arith.constant 2 : i32
    %735 = arith.muli %c5_i32_218, %c2_i32_219 : i32
    %736 = tpu.assume_multiple %735, 2 : i32
    %737 = arith.index_cast %736 : i32 to index
    %c0_220 = arith.constant 0 : index
    %738 = vector.load %arg18[%737, %c0_220] : memref<16x128xf32, #tpu.memory_space<vmem>>, vector<2x128xf32>
    %cst_221 = arith.constant dense<0.000000e+00> : vector<2x128xf32>
    %739 = tpu.matmul %734, %575, %cst_221 {dimension_numbers = #tpu.dot_dimension_numbers<[1], [0], [0], [1], [0, 0, 1, 1], [], []>} : vector<2x32xf32>, vector<32x128xf32>, vector<2x128xf32> -> vector<2x128xf32>
    %740 = arith.addf %738, %739 : vector<2x128xf32>
    %741 = vector.extract_strided_slice %740 {offsets = [0, 0], sizes = [2, 32], strides = [1, 1]} : vector<2x128xf32> to vector<2x32xf32>
    %742 = arith.negf %741 : vector<2x32xf32>
    %743 = math.exp %742 : vector<2x32xf32>
    %cst_222 = arith.constant 1.000000e+00 : f32
    %744 = vector.broadcast %cst_222 : f32 to vector<2x32xf32>
    %745 = arith.addf %744, %743 : vector<2x32xf32>
    %746 = arith.divf %744, %745 : vector<2x32xf32>
    %747 = vector.extract_strided_slice %740 {offsets = [0, 32], sizes = [2, 32], strides = [1, 1]} : vector<2x128xf32> to vector<2x32xf32>
    %748 = arith.negf %747 : vector<2x32xf32>
    %749 = math.exp %748 : vector<2x32xf32>
    %cst_223 = arith.constant 1.000000e+00 : f32
    %750 = vector.broadcast %cst_223 : f32 to vector<2x32xf32>
    %751 = arith.addf %750, %749 : vector<2x32xf32>
    %752 = arith.divf %750, %751 : vector<2x32xf32>
    %753 = vector.extract_strided_slice %740 {offsets = [0, 64], sizes = [2, 32], strides = [1, 1]} : vector<2x128xf32> to vector<2x32xf32>
    %754 = math.tanh %753 : vector<2x32xf32>
    %755 = vector.extract_strided_slice %740 {offsets = [0, 96], sizes = [2, 32], strides = [1, 1]} : vector<2x128xf32> to vector<2x32xf32>
    %756 = arith.negf %755 : vector<2x32xf32>
    %757 = math.exp %756 : vector<2x32xf32>
    %cst_224 = arith.constant 1.000000e+00 : f32
    %758 = vector.broadcast %cst_224 : f32 to vector<2x32xf32>
    %759 = arith.addf %758, %757 : vector<2x32xf32>
    %760 = arith.divf %758, %759 : vector<2x32xf32>
    %761 = arith.mulf %752, %732 : vector<2x32xf32>
    %762 = arith.mulf %746, %754 : vector<2x32xf32>
    %763 = arith.addf %761, %762 : vector<2x32xf32>
    %764 = math.tanh %763 : vector<2x32xf32>
    %765 = arith.mulf %760, %764 : vector<2x32xf32>
    %c6_i32_225 = arith.constant 6 : i32
    %c2_i32_226 = arith.constant 2 : i32
    %766 = arith.muli %c6_i32_225, %c2_i32_226 : i32
    %767 = tpu.assume_multiple %766, 2 : i32
    %768 = arith.index_cast %767 : i32 to index
    %c0_227 = arith.constant 0 : index
    %769 = vector.load %arg18[%768, %c0_227] : memref<16x128xf32, #tpu.memory_space<vmem>>, vector<2x128xf32>
    %cst_228 = arith.constant dense<0.000000e+00> : vector<2x128xf32>
    %770 = tpu.matmul %765, %575, %cst_228 {dimension_numbers = #tpu.dot_dimension_numbers<[1], [0], [0], [1], [0, 0, 1, 1], [], []>} : vector<2x32xf32>, vector<32x128xf32>, vector<2x128xf32> -> vector<2x128xf32>
    %771 = arith.addf %769, %770 : vector<2x128xf32>
    %772 = vector.extract_strided_slice %771 {offsets = [0, 0], sizes = [2, 32], strides = [1, 1]} : vector<2x128xf32> to vector<2x32xf32>
    %773 = arith.negf %772 : vector<2x32xf32>
    %774 = math.exp %773 : vector<2x32xf32>
    %cst_229 = arith.constant 1.000000e+00 : f32
    %775 = vector.broadcast %cst_229 : f32 to vector<2x32xf32>
    %776 = arith.addf %775, %774 : vector<2x32xf32>
    %777 = arith.divf %775, %776 : vector<2x32xf32>
    %778 = vector.extract_strided_slice %771 {offsets = [0, 32], sizes = [2, 32], strides = [1, 1]} : vector<2x128xf32> to vector<2x32xf32>
    %779 = arith.negf %778 : vector<2x32xf32>
    %780 = math.exp %779 : vector<2x32xf32>
    %cst_230 = arith.constant 1.000000e+00 : f32
    %781 = vector.broadcast %cst_230 : f32 to vector<2x32xf32>
    %782 = arith.addf %781, %780 : vector<2x32xf32>
    %783 = arith.divf %781, %782 : vector<2x32xf32>
    %784 = vector.extract_strided_slice %771 {offsets = [0, 64], sizes = [2, 32], strides = [1, 1]} : vector<2x128xf32> to vector<2x32xf32>
    %785 = math.tanh %784 : vector<2x32xf32>
    %786 = vector.extract_strided_slice %771 {offsets = [0, 96], sizes = [2, 32], strides = [1, 1]} : vector<2x128xf32> to vector<2x32xf32>
    %787 = arith.negf %786 : vector<2x32xf32>
    %788 = math.exp %787 : vector<2x32xf32>
    %cst_231 = arith.constant 1.000000e+00 : f32
    %789 = vector.broadcast %cst_231 : f32 to vector<2x32xf32>
    %790 = arith.addf %789, %788 : vector<2x32xf32>
    %791 = arith.divf %789, %790 : vector<2x32xf32>
    %792 = arith.mulf %783, %763 : vector<2x32xf32>
    %793 = arith.mulf %777, %785 : vector<2x32xf32>
    %794 = arith.addf %792, %793 : vector<2x32xf32>
    %795 = math.tanh %794 : vector<2x32xf32>
    %796 = arith.mulf %791, %795 : vector<2x32xf32>
    %c7_i32_232 = arith.constant 7 : i32
    %c2_i32_233 = arith.constant 2 : i32
    %797 = arith.muli %c7_i32_232, %c2_i32_233 : i32
    %798 = tpu.assume_multiple %797, 2 : i32
    %799 = arith.index_cast %798 : i32 to index
    %c0_234 = arith.constant 0 : index
    %800 = vector.load %arg18[%799, %c0_234] : memref<16x128xf32, #tpu.memory_space<vmem>>, vector<2x128xf32>
    %cst_235 = arith.constant dense<0.000000e+00> : vector<2x128xf32>
    %801 = tpu.matmul %796, %575, %cst_235 {dimension_numbers = #tpu.dot_dimension_numbers<[1], [0], [0], [1], [0, 0, 1, 1], [], []>} : vector<2x32xf32>, vector<32x128xf32>, vector<2x128xf32> -> vector<2x128xf32>
    %802 = arith.addf %800, %801 : vector<2x128xf32>
    %803 = vector.extract_strided_slice %802 {offsets = [0, 0], sizes = [2, 32], strides = [1, 1]} : vector<2x128xf32> to vector<2x32xf32>
    %804 = arith.negf %803 : vector<2x32xf32>
    %805 = math.exp %804 : vector<2x32xf32>
    %cst_236 = arith.constant 1.000000e+00 : f32
    %806 = vector.broadcast %cst_236 : f32 to vector<2x32xf32>
    %807 = arith.addf %806, %805 : vector<2x32xf32>
    %808 = arith.divf %806, %807 : vector<2x32xf32>
    %809 = vector.extract_strided_slice %802 {offsets = [0, 32], sizes = [2, 32], strides = [1, 1]} : vector<2x128xf32> to vector<2x32xf32>
    %810 = arith.negf %809 : vector<2x32xf32>
    %811 = math.exp %810 : vector<2x32xf32>
    %cst_237 = arith.constant 1.000000e+00 : f32
    %812 = vector.broadcast %cst_237 : f32 to vector<2x32xf32>
    %813 = arith.addf %812, %811 : vector<2x32xf32>
    %814 = arith.divf %812, %813 : vector<2x32xf32>
    %815 = vector.extract_strided_slice %802 {offsets = [0, 64], sizes = [2, 32], strides = [1, 1]} : vector<2x128xf32> to vector<2x32xf32>
    %816 = math.tanh %815 : vector<2x32xf32>
    %817 = vector.extract_strided_slice %802 {offsets = [0, 96], sizes = [2, 32], strides = [1, 1]} : vector<2x128xf32> to vector<2x32xf32>
    %818 = arith.negf %817 : vector<2x32xf32>
    %819 = math.exp %818 : vector<2x32xf32>
    %cst_238 = arith.constant 1.000000e+00 : f32
    %820 = vector.broadcast %cst_238 : f32 to vector<2x32xf32>
    %821 = arith.addf %820, %819 : vector<2x32xf32>
    %822 = arith.divf %820, %821 : vector<2x32xf32>
    %823 = arith.mulf %814, %794 : vector<2x32xf32>
    %824 = arith.mulf %808, %816 : vector<2x32xf32>
    %825 = arith.addf %823, %824 : vector<2x32xf32>
    %826 = math.tanh %825 : vector<2x32xf32>
    %827 = arith.mulf %822, %826 : vector<2x32xf32>
    %c8_i32_239 = arith.constant 8 : i32
    %c2_240 = arith.constant 2 : index
    %c0_241 = arith.constant 0 : index
    %c0_242 = arith.constant 0 : index
    %828 = vector.load %arg15[%c2_240, %c0_241, %c0_242] : memref<3x2x32xf32, #tpu.memory_space<vmem>>, vector<1x2x32xf32>
    %829 = vector.shape_cast %828 : vector<1x2x32xf32> to vector<2x32xf32>
    %830 = vector.shape_cast %827 : vector<2x32xf32> to vector<1x2x32xf32>
    tpu.vector_store %arg15[%c2_240, %c0_241, %c0_242], %830 {strides = array<i32>} : memref<3x2x32xf32, #tpu.memory_space<vmem>>, vector<1x2x32xf32>,
    %c2_243 = arith.constant 2 : index
    %c0_244 = arith.constant 0 : index
    %c0_245 = arith.constant 0 : index
    %831 = vector.load %arg16[%c2_243, %c0_244, %c0_245] : memref<3x2x32xf32, #tpu.memory_space<vmem>>, vector<1x2x32xf32>
    %832 = vector.shape_cast %831 : vector<1x2x32xf32> to vector<2x32xf32>
    %833 = vector.shape_cast %825 : vector<2x32xf32> to vector<1x2x32xf32>
    tpu.vector_store %arg16[%c2_243, %c0_244, %c0_245], %833 {strides = array<i32>} : memref<3x2x32xf32, #tpu.memory_space<vmem>>, vector<1x2x32xf32>,
    %c0_i32_246 = arith.constant 0 : i32
    %834 = arith.cmpi eq, %arg1, %c0_i32_246 : i32
    %835 = arith.extui %834 : i1 to i32
    %c0_i32_247 = arith.constant 0 : i32
    %836 = arith.cmpi ne, %835, %c0_i32_247 : i32
    scf.if %836 {
      %c2_248 = arith.constant 2 : index
      %c0_249 = arith.constant 0 : index
      %c0_250 = arith.constant 0 : index
      %837 = vector.load %arg15[%c2_248, %c0_249, %c0_250] : memref<3x2x32xf32, #tpu.memory_space<vmem>>, vector<1x2x32xf32>
      %838 = vector.shape_cast %837 : vector<1x2x32xf32> to vector<2x32xf32>
      %c0_251 = arith.constant 0 : index
      %c0_252 = arith.constant 0 : index
      %839 = vector.load %arg12[%c0_251, %c0_252] : memref<32x32xf32, #tpu.memory_space<vmem>>, vector<32x32xf32>
      %cst_253 = arith.constant dense<0.000000e+00> : vector<2x32xf32>
      %840 = tpu.matmul %838, %839, %cst_253 {dimension_numbers = #tpu.dot_dimension_numbers<[1], [0], [0], [1], [0, 0, 1, 1], [], []>} : vector<2x32xf32>, vector<32x32xf32>, vector<2x32xf32> -> vector<2x32xf32>
      %c0_254 = arith.constant 0 : index
      %c0_255 = arith.constant 0 : index
      %841 = vector.load %arg13[%c0_254, %c0_255] : memref<1x32xf32, #tpu.memory_space<vmem>>, vector<1x32xf32>
      %842 = vector.broadcast %841 : vector<1x32xf32> to vector<2x32xf32>
      %843 = arith.addf %840, %842 : vector<2x32xf32>
      %cst_256 = arith.constant 0.000000e+00 : f32
      %844 = vector.broadcast %cst_256 : f32 to vector<2x32xf32>
      %845 = arith.maximumf %843, %844 : vector<2x32xf32>
      %846 = arith.mulf %845, %845 : vector<2x32xf32>
      %cst_257 = arith.constant dense<0.000000e+00> : vector<2xf32>
      %847 = vector.multi_reduction <add>, %846, %cst_257 [1] : vector<2x32xf32> to vector<2xf32>
      %848 = vector.shape_cast %847 : vector<2xf32> to vector<2x1xf32>
      %849 = math.rsqrt %848 : vector<2x1xf32>
      %850 = vector.broadcast %849 : vector<2x1xf32> to vector<2x32xf32>
      %851 = arith.mulf %845, %850 : vector<2x32xf32>
      %c0_258 = arith.constant 0 : index
      %c0_259 = arith.constant 0 : index
      %852 = vector.load %arg14[%c0_258, %c0_259] : memref<2x32xf32, #tpu.memory_space<vmem>>, vector<2x32xf32>
      tpu.vector_store %arg14[%c0_258, %c0_259], %851 {strides = array<i32>} : memref<2x32xf32, #tpu.memory_space<vmem>>, vector<2x32xf32>,
    } else {
    }
    return
  }
  func.func @transform_0(%arg0: i32, %arg1: i32) -> (i32, i32, i32) {
    %c0_i32 = arith.constant 0 : i32
    %c0_i32_0 = arith.constant 0 : i32
    return %arg0, %arg1, %c0_i32 : i32, i32, i32
  }
  func.func @transform_1(%arg0: i32, %arg1: i32) -> (i32, i32) {
    %c0_i32 = arith.constant 0 : i32
    %c0_i32_0 = arith.constant 0 : i32
    %c0_i32_1 = arith.constant 0 : i32
    return %c0_i32, %c0_i32_0 : i32, i32
  }
  func.func @transform_2(%arg0: i32, %arg1: i32) -> (i32, i32) {
    %c0_i32 = arith.constant 0 : i32
    %c0_i32_0 = arith.constant 0 : i32
    %c0_i32_1 = arith.constant 0 : i32
    return %c0_i32, %c0_i32_0 : i32, i32
  }
  func.func @transform_3(%arg0: i32, %arg1: i32) -> (i32, i32) {
    %c0_i32 = arith.constant 0 : i32
    %c0_i32_0 = arith.constant 0 : i32
    %c0_i32_1 = arith.constant 0 : i32
    return %c0_i32, %c0_i32_0 : i32, i32
  }
  func.func @transform_4(%arg0: i32, %arg1: i32) -> (i32, i32) {
    %c0_i32 = arith.constant 0 : i32
    %c0_i32_0 = arith.constant 0 : i32
    %c0_i32_1 = arith.constant 0 : i32
    return %c0_i32, %c0_i32_0 : i32, i32
  }
  func.func @transform_5(%arg0: i32, %arg1: i32) -> (i32, i32) {
    %c0_i32 = arith.constant 0 : i32
    %c0_i32_0 = arith.constant 0 : i32
    %c0_i32_1 = arith.constant 0 : i32
    return %c0_i32, %c0_i32_0 : i32, i32
  }
  func.func @transform_6(%arg0: i32, %arg1: i32) -> (i32, i32) {
    %c0_i32 = arith.constant 0 : i32
    %c0_i32_0 = arith.constant 0 : i32
    %c0_i32_1 = arith.constant 0 : i32
    return %c0_i32, %c0_i32_0 : i32, i32
  }
  func.func @transform_7(%arg0: i32, %arg1: i32) -> (i32, i32) {
    %c0_i32 = arith.constant 0 : i32
    %c0_i32_0 = arith.constant 0 : i32
    %c0_i32_1 = arith.constant 0 : i32
    return %c0_i32, %c0_i32_0 : i32, i32
  }
  func.func @transform_8(%arg0: i32, %arg1: i32) -> (i32, i32) {
    %c0_i32 = arith.constant 0 : i32
    %c0_i32_0 = arith.constant 0 : i32
    %c0_i32_1 = arith.constant 0 : i32
    return %c0_i32, %c0_i32_0 : i32, i32
  }
  func.func @transform_9(%arg0: i32, %arg1: i32) -> (i32, i32) {
    %c0_i32 = arith.constant 0 : i32
    %c0_i32_0 = arith.constant 0 : i32
    %c0_i32_1 = arith.constant 0 : i32
    return %c0_i32, %c0_i32_0 : i32, i32
  }
  func.func @transform_10(%arg0: i32, %arg1: i32) -> (i32, i32) {
    %c0_i32 = arith.constant 0 : i32
    %c0_i32_0 = arith.constant 0 : i32
    %c0_i32_1 = arith.constant 0 : i32
    return %c0_i32, %c0_i32_0 : i32, i32
  }
  func.func @transform_11(%arg0: i32, %arg1: i32) -> (i32, i32) {
    %c0_i32 = arith.constant 0 : i32
    %c0_i32_0 = arith.constant 0 : i32
    %c0_i32_1 = arith.constant 0 : i32
    return %c0_i32, %c0_i32_0 : i32, i32
  }
  func.func @transform_12(%arg0: i32, %arg1: i32) -> (i32, i32) {
    %c0_i32 = arith.constant 0 : i32
    %c0_i32_0 = arith.constant 0 : i32
    return %arg0, %c0_i32 : i32, i32
  }
}

</mosaic_0001>

<llo_original>
// kernel: tpu_custom_call.1
$region0: #{tpu_custom_call.1}
  #allocation0 [shape = 'u32[]', space=smem, size = 0x4, offset = 0x4, fixed_abs, tag = 'smem constant byte address 0x4 - core index']
  #allocation1 [shape = 'u32[144,128]{1,0:T(1,128)}', space=vmem, size = 0x12000, scoped, tag = 'internal scratch']
  #allocation2 [shape = 'f32[3,2,32]{2,1,0:T(2,128)}', space=vmem, size = 0xc00, scoped, tag = 'scratch operand']
  #allocation3 [shape = 'f32[3,2,32]{2,1,0:T(2,128)}', space=vmem, size = 0xc00, scoped, tag = 'scratch operand']
  #allocation4 [shape = 'f32[16,32]{1,0:T(8,128)}', space=vmem, size = 0x2000, scoped, tag = 'scratch operand']
  #allocation5 [shape = 'f32[16,128]{1,0:T(8,128)}', space=vmem, size = 0x2000, scoped, tag = 'scratch operand']
  %s0 = inlined_call_operand.hbm [shape: f32[1,16,16], index: 0, kind: input, shape index: {}]
  %s1 = inlined_call_operand.hbm [shape: f32[16,128], index: 1, kind: input, shape index: {}]
  %s2 = inlined_call_operand.hbm [shape: f32[32,128], index: 2, kind: input, shape index: {}]
  %s3 = inlined_call_operand.vmem [shape: f32[1,128], index: 3, kind: input, shape index: {}]
  %s4 = inlined_call_operand.hbm [shape: f32[32,128], index: 4, kind: input, shape index: {}]
  %s5 = inlined_call_operand.hbm [shape: f32[32,128], index: 5, kind: input, shape index: {}]
  %s6 = inlined_call_operand.vmem [shape: f32[1,128], index: 6, kind: input, shape index: {}]
  %s7 = inlined_call_operand.hbm [shape: f32[32,128], index: 7, kind: input, shape index: {}]
  %s8 = inlined_call_operand.hbm [shape: f32[32,128], index: 8, kind: input, shape index: {}]
  %s9 = inlined_call_operand.vmem [shape: f32[1,128], index: 9, kind: input, shape index: {}]
  %s10 = inlined_call_operand.vmem [shape: f32[32,32], index: 10, kind: input, shape index: {}]
  %s11 = inlined_call_operand.vmem [shape: f32[1,32], index: 11, kind: input, shape index: {}]
  %s12 = inlined_call_operand.hbm [shape: f32[2,32], index: 12, kind: output, shape index: {}]
  %s13 = sld [smem:[#allocation0]]
  $region94: #{tpu_custom_call.1} parent=0
    _
  %s15 = ssub.s32 1, %s13
  %s16 = scalar_select 0, %s15, %s13
  $region1: #{tpu_custom_call.1} parent=0
    #allocation6 [shape = 'u8[8192]{0}', space=vmem, size = 0x2000, scoped, tag = 'input window, operand 0, single buffered']
    #allocation7 [shape = 's32[1]{0}', space=sflag, size = 0x4, scoped, tag = 'scoped memory for tpu_custom_call.1']
    #allocation8 [shape = 's32[1]{0}', space=sflag, size = 0x4, scoped, tag = 'scoped memory for tpu_custom_call.1']
    #allocation9 [shape = 'u8[8192]{0}', space=vmem, size = 0x2000, scoped, tag = 'input window, operand 1, single buffered']
    #allocation10 [shape = 's32[1]{0}', space=sflag, size = 0x4, scoped, tag = 'scoped memory for tpu_custom_call.1']
    #allocation11 [shape = 'u8[16384]{0}', space=vmem, size = 0x4000, scoped, tag = 'input window, operand 2, single buffered']
    #allocation12 [shape = 'u8[16384]{0}', space=vmem, size = 0x4000, scoped, tag = 'input window, operand 4, single buffered']
    #allocation13 [shape = 's32[1]{0}', space=sflag, size = 0x4, scoped, tag = 'scoped memory for tpu_custom_call.1']
    #allocation14 [shape = 'u8[16384]{0}', space=vmem, size = 0x4000, scoped, tag = 'input window, operand 5, single buffered']
    #allocation15 [shape = 'u8[16384]{0}', space=vmem, size = 0x4000, scoped, tag = 'input window, operand 7, single buffered']
    #allocation16 [shape = 's32[1]{0}', space=sflag, size = 0x4, scoped, tag = 'scoped memory for tpu_custom_call.1']
    #allocation17 [shape = 'u8[16384]{0}', space=vmem, size = 0x4000, scoped, tag = 'input window, operand 8, single buffered']
    #allocation18 [shape = 'u8[1024]{0}', space=vmem, size = 0x400, scoped, tag = 'output window, operand 0, single buffered']
    %17 = vsyncpa [#allocation7], 0
    %18 = vsyncpa [#allocation10], 0
    %19 = vsyncpa [#allocation13], 0
    %20 = vsyncpa [#allocation16], 0
    %21 = vsyncpa [#allocation8], 0
    // Predicated region
    $region2: #{tpu_custom_call.1} parent=1 // pred_check
      _
    $region3: #{tpu_custom_call.1} parent=1 // pred_check_branch
      %23 = sbr.rel (0) target = $region5
    $region4: #{tpu_custom_call.1} parent=1 // pred_region
      %s25 = ssub.s32 256, 256
      %26 = vsyncadd [#allocation7], %s25
      %s27 = sshll.u32 [#allocation6], 4
      %s28 = int_to_ptr.vmem [resolvable:$true] %s27
      %33 = dma.hbm_to_vmem [thread:$0]  %s0, 256, %s28, [#allocation7], 128, 128, 8
    $region5: #{tpu_custom_call.1} parent=1 // pred_fallthru
      _
    // Predicated region
    $region6: #{tpu_custom_call.1} parent=1 // pred_check
      _
    $region7: #{tpu_custom_call.1} parent=1 // pred_check_branch
      %35 = sbr.rel (0) target = $region9
    $region8: #{tpu_custom_call.1} parent=1 // pred_region
      %s37 = ssub.s32 256, 256
      %38 = vsyncadd [#allocation10], %s37
      %s39 = sshll.u32 [#allocation9], 4
      %s40 = int_to_ptr.vmem [resolvable:$true] %s39
      %45 = dma.hbm_to_vmem [thread:$0]  %s1, 256, %s40, [#allocation10], 128, 128, 8
    $region9: #{tpu_custom_call.1} parent=1 // pred_fallthru
      _
    // Predicated region
    $region10: #{tpu_custom_call.1} parent=1 // pred_check
      _
    $region11: #{tpu_custom_call.1} parent=1 // pred_check_branch
      %47 = sbr.rel (0) target = $region13
    $region12: #{tpu_custom_call.1} parent=1 // pred_region
      %s49 = ssub.s32 512, 512
      %50 = vsyncadd [#allocation10], %s49
      %s51 = sshll.u32 [#allocation11], 4
      %s52 = int_to_ptr.vmem [resolvable:$true] %s51
      %57 = dma.hbm_to_vmem [thread:$0]  %s2, 512, %s52, [#allocation10], 128, 128, 8
    $region13: #{tpu_custom_call.1} parent=1 // pred_fallthru
      _
    // Predicated region
    $region14: #{tpu_custom_call.1} parent=1 // pred_check
      _
    $region15: #{tpu_custom_call.1} parent=1 // pred_check_branch
      %59 = sbr.rel (0) target = $region17
    $region16: #{tpu_custom_call.1} parent=1 // pred_region
      _
    $region17: #{tpu_custom_call.1} parent=1 // pred_fallthru
      _
    // Predicated region
    $region18: #{tpu_custom_call.1} parent=1 // pred_check
      _
    $region19: #{tpu_custom_call.1} parent=1 // pred_check_branch
      %61 = sbr.rel (0) target = $region21
    $region20: #{tpu_custom_call.1} parent=1 // pred_region
      %s63 = ssub.s32 512, 512
      %64 = vsyncadd [#allocation13], %s63
      %s65 = sshll.u32 [#allocation12], 4
      %s66 = int_to_ptr.vmem [resolvable:$true] %s65
      %71 = dma.hbm_to_vmem [thread:$0]  %s4, 512, %s66, [#allocation13], 128, 128, 8
    $region21: #{tpu_custom_call.1} parent=1 // pred_fallthru
      _
    // Predicated region
    $region22: #{tpu_custom_call.1} parent=1 // pred_check
      _
    $region23: #{tpu_custom_call.1} parent=1 // pred_check_branch
      %73 = sbr.rel (0) target = $region25
    $region24: #{tpu_custom_call.1} parent=1 // pred_region
      %s75 = ssub.s32 512, 512
      %76 = vsyncadd [#allocation13], %s75
      %s77 = sshll.u32 [#allocation14], 4
      %s78 = int_to_ptr.vmem [resolvable:$true] %s77
      %83 = dma.hbm_to_vmem [thread:$0]  %s5, 512, %s78, [#allocation13], 128, 128, 8
    $region25: #{tpu_custom_call.1} parent=1 // pred_fallthru
      _
    // Predicated region
    $region26: #{tpu_custom_call.1} parent=1 // pred_check
      _
    $region27: #{tpu_custom_call.1} parent=1 // pred_check_branch
      %85 = sbr.rel (0) target = $region29
    $region28: #{tpu_custom_call.1} parent=1 // pred_region
      _
    $region29: #{tpu_custom_call.1} parent=1 // pred_fallthru
      _
    // Predicated region
    $region30: #{tpu_custom_call.1} parent=1 // pred_check
      _
    $region31: #{tpu_custom_call.1} parent=1 // pred_check_branch
      %87 = sbr.rel (0) target = $region33
    $region32: #{tpu_custom_call.1} parent=1 // pred_region
      %s89 = ssub.s32 512, 512
      %90 = vsyncadd [#allocation16], %s89
      %s91 = sshll.u32 [#allocation15], 4
      %s92 = int_to_ptr.vmem [resolvable:$true] %s91
      %97 = dma.hbm_to_vmem [thread:$0]  %s7, 512, %s92, [#allocation16], 128, 128, 8
    $region33: #{tpu_custom_call.1} parent=1 // pred_fallthru
      _
    // Predicated region
    $region34: #{tpu_custom_call.1} parent=1 // pred_check
      _
    $region35: #{tpu_custom_call.1} parent=1 // pred_check_branch
      %99 = sbr.rel (0) target = $region37
    $region36: #{tpu_custom_call.1} parent=1 // pred_region
      %s101 = ssub.s32 512, 512
      %102 = vsyncadd [#allocation16], %s101
      %s103 = sshll.u32 [#allocation17], 4
      %s104 = int_to_ptr.vmem [resolvable:$true] %s103
      %109 = dma.hbm_to_vmem [thread:$0]  %s8, 512, %s104, [#allocation16], 128, 128, 8
    $region37: #{tpu_custom_call.1} parent=1 // pred_fallthru
      _
    // Predicated region
    $region38: #{tpu_custom_call.1} parent=1 // pred_check
      _
    $region39: #{tpu_custom_call.1} parent=1 // pred_check_branch
      %111 = sbr.rel (0) target = $region41
    $region40: #{tpu_custom_call.1} parent=1 // pred_region
      _
    $region41: #{tpu_custom_call.1} parent=1 // pred_fallthru
      _
    // Predicated region
    $region42: #{tpu_custom_call.1} parent=1 // pred_check
      _
    $region43: #{tpu_custom_call.1} parent=1 // pred_check_branch
      %113 = sbr.rel (0) target = $region45
    $region44: #{tpu_custom_call.1} parent=1 // pred_region
      _
    $region45: #{tpu_custom_call.1} parent=1 // pred_fallthru
      _
    // Predicated region
    $region46: #{tpu_custom_call.1} parent=1 // pred_check
      _
    $region47: #{tpu_custom_call.1} parent=1 // pred_check_branch
      %115 = sbr.rel (0) target = $region49
    $region48: #{tpu_custom_call.1} parent=1 // pred_region
      _
    $region49: #{tpu_custom_call.1} parent=1 // pred_fallthru
      _
    // Predicated region
    $region50: #{tpu_custom_call.1} parent=1 // pred_check
      _
    $region51: #{tpu_custom_call.1} parent=1 // pred_check_branch
      %117 = sbr.rel (0) target = $region53
    $region52: #{tpu_custom_call.1} parent=1 // pred_region
      %118 = dma.done [#allocation7], 256
    $region53: #{tpu_custom_call.1} parent=1 // pred_fallthru
      _
    // Predicated region
    $region54: #{tpu_custom_call.1} parent=1 // pred_check
      _
    $region55: #{tpu_custom_call.1} parent=1 // pred_check_branch
      %120 = sbr.rel (0) target = $region57
    $region56: #{tpu_custom_call.1} parent=1 // pred_region
      %121 = dma.done [#allocation10], 256
    $region57: #{tpu_custom_call.1} parent=1 // pred_fallthru
      _
    // Predicated region
    $region58: #{tpu_custom_call.1} parent=1 // pred_check
      _
    $region59: #{tpu_custom_call.1} parent=1 // pred_check_branch
      %123 = sbr.rel (0) target = $region61
    $region60: #{tpu_custom_call.1} parent=1 // pred_region
      %124 = dma.done [#allocation10], 512
    $region61: #{tpu_custom_call.1} parent=1 // pred_fallthru
      _
    // Predicated region
    $region62: #{tpu_custom_call.1} parent=1 // pred_check
      _
    $region63: #{tpu_custom_call.1} parent=1 // pred_check_branch
      %126 = sbr.rel (0) target = $region65
    $region64: #{tpu_custom_call.1} parent=1 // pred_region
      %127 = dma.done [#allocation13], 512
    $region65: #{tpu_custom_call.1} parent=1 // pred_fallthru
      _
    // Predicated region
    $region66: #{tpu_custom_call.1} parent=1 // pred_check
      _
    $region67: #{tpu_custom_call.1} parent=1 // pred_check_branch
      %129 = sbr.rel (0) target = $region69
    $region68: #{tpu_custom_call.1} parent=1 // pred_region
      %130 = dma.done [#allocation13], 512
    $region69: #{tpu_custom_call.1} parent=1 // pred_fallthru
      _
    // Predicated region
    $region70: #{tpu_custom_call.1} parent=1 // pred_check
      _
    $region71: #{tpu_custom_call.1} parent=1 // pred_check_branch
      %132 = sbr.rel (0) target = $region73
    $region72: #{tpu_custom_call.1} parent=1 // pred_region
      %133 = dma.done [#allocation16], 512
    $region73: #{tpu_custom_call.1} parent=1 // pred_fallthru
      _
    // Predicated region
    $region74: #{tpu_custom_call.1} parent=1 // pred_check
      _
    $region75: #{tpu_custom_call.1} parent=1 // pred_check_branch
      %135 = sbr.rel (0) target = $region77
    $region76: #{tpu_custom_call.1} parent=1 // pred_region
      %136 = dma.done [#allocation16], 512
    $region77: #{tpu_custom_call.1} parent=1 // pred_fallthru
      _
    %p137 = scmp.eq.s32.totalorder 0, 0
    // Predicated region
    $region78: #{tpu_custom_call.1} parent=1 // pred_check
      %p138 = pneg %p137
    $region79: #{tpu_custom_call.1} parent=1 // pred_check_branch
      %140 = sbr.rel (%p138) target = $region81
    $region80: #{tpu_custom_call.1} parent=1 // pred_region
      %vm141 = vcmask 254976
      %142 = vst.msk [vmem:[#allocation2] sm:$0x3] %vm141, 0.0
      %143 = vst.msk [vmem:[#allocation2 + $0x2] sm:$0x3] %vm141, 0.0
      %144 = vst.msk [vmem:[#allocation2 + $0x4] sm:$0x3] %vm141, 0.0
      %145 = vst.msk [vmem:[#allocation3] sm:$0x3] %vm141, 0.0
      %146 = vst.msk [vmem:[#allocation3 + $0x2] sm:$0x3] %vm141, 0.0
      %147 = vst.msk [vmem:[#allocation3 + $0x4] sm:$0x3] %vm141, 0.0
    $region81: #{tpu_custom_call.1} parent=1 // pred_fallthru
      _
    %v148 = vld [vmem:[#allocation6] sm:$0xff]
    %v149 = vld [vmem:[#allocation6 + $0x8] sm:$0xff]
    %v150 = vld [vmem:[#allocation9] sm:$0xff]
    %v151 = vld [vmem:[#allocation9 + $0x8] sm:$0xff]
    %v152 = vld [vmem:[%s3] sm:$0x1]
    %v154 = vlaneseq
    %v155 = vshrl.u32 %v154, 7
    %v156 = vsub.s32 0, %v155
    %v157 = vrot.slane %v152, %v156
    %vm159 = vcmask 130048
    %v161 = vsel %vm159, %v148, 0
    %v164 = vsel %vm159, %v149, 0
    %166 = vmatprep.subr.mxu0 0.0
    %167 = vmatpush1.msra.mxu0 %v150
    %168 = vmatprep.subr.mxu0 0.0
    %169 = vmatpush1.msra.mxu0 %v151
    %170 = vmatprep.subr.mxu0 0.0
    %171 = vmatpush1.msra.mxu0 0.0
    %172 = vmatprep.subr.mxu0 0.0
    %173 = vmatpush1.msra.mxu0 0.0
    %174 = vmatprep.subr.mxu0 0.0
    %175 = vmatpush1.msra.mxu0 0.0
    %176 = vmatprep.subr.mxu0 0.0
    %177 = vmatpush1.msra.mxu0 0.0
    %178 = vmatprep.subr.mxu0 0.0
    %179 = vmatpush1.msra.mxu0 0.0
    %180 = vmatprep.subr.mxu0 0.0
    %181 = vmatpush1.msra.mxu0 0.0
    %182 = vmatprep.subr.mxu0 0.0
    %183 = vmatpush1.msra.mxu0 0.0
    %184 = vmatprep.subr.mxu0 0.0
    %185 = vmatpush1.msra.mxu0 0.0
    %186 = vmatprep.subr.mxu0 0.0
    %187 = vmatpush1.msra.mxu0 0.0
    %188 = vmatprep.subr.mxu0 0.0
    %189 = vmatpush1.msra.mxu0 0.0
    %190 = vmatprep.subr.mxu0 0.0
    %191 = vmatpush1.msra.mxu0 0.0
    %192 = vmatprep.subr.mxu0 0.0
    %193 = vmatpush1.msra.mxu0 0.0
    %194 = vmatprep.subr.mxu0 0.0
    %195 = vmatpush1.msra.mxu0 0.0
    %196 = vmatprep.subr.mxu0 0.0
    %197 = vmatpush1.msra.mxu0 0.0
    %198 = vmatprep.subr.mxu0 0.0
    %199 = vmatpush1.msra.mxu0 0.0
    %200 = vmatprep.subr.mxu0 0.0
    %201 = vmatpush1.msra.mxu0 0.0
    %202 = vmatprep.subr.mxu0 0.0
    %203 = vmatpush1.msra.mxu0 0.0
    %204 = vmatprep.subr.mxu0 0.0
    %205 = vmatpush1.msra.mxu0 0.0
    %206 = vmatprep.subr.mxu0 0.0
    %207 = vmatpush1.msra.mxu0 0.0
    %208 = vmatprep.subr.mxu0 0.0
    %209 = vmatpush1.msra.mxu0 0.0
    %210 = vmatprep.subr.mxu0 0.0
    %211 = vmatpush1.msra.mxu0 0.0
    %212 = vmatprep.subr.mxu0 0.0
    %213 = vmatpush1.msra.mxu0 0.0
    %214 = vmatprep.subr.mxu0 0.0
    %215 = vmatpush1.msra.mxu0 0.0
    %216 = vmatprep.subr.mxu0 0.0
    %217 = vmatpush1.msra.mxu0 0.0
    %218 = vmatprep.subr.mxu0 0.0
    %219 = vmatpush1.msra.mxu0 0.0
    %220 = vmatprep.subr.mxu0 0.0
    %221 = vmatpush1.msra.mxu0 0.0
    %222 = vmatprep.subr.mxu0 0.0
    %223 = vmatpush1.msra.mxu0 0.0
    %224 = vmatprep.subr.mxu0 0.0
    %225 = vmatpush1.msra.mxu0 0.0
    %226 = vmatprep.subr.mxu0 0.0
    %227 = vmatpush1.msra.mxu0 0.0
    %228 = vmatprep.subr.mxu0 0.0
    %229 = vmatpush1.msra.mxu0 0.0
    %230 = vmatprep.mubr.f32.mxu0 0.0
    %231 = vmatmul.mubr.f32.gmra.mrb[0].mxu0 %v161
    %v232 = vpop.f32.mrb[0].mxu0
    %v233 = vadd.f32 %v157, %v232
    %v234 = vpop.f32.mrb[0].mxu0
    %235 = vmatprep.mubr.f32.mxu0 0.0
    %236 = vmatmul.mubr.f32.gmra.mrb[0].mxu0 %v164
    %v237 = vpop.f32.mrb[0].mxu0
    %v238 = vadd.f32 %v157, %v237
    %v239 = vpop.f32.mrb[0].mxu0
    %240 = vdwg.mxu0
    %241 = vst [vmem:[#allocation5] sm:$0xff] %v233
    %242 = vst [vmem:[#allocation5 + $0x8] sm:$0xff] %v238
    %v243 = vld [vmem:[#allocation11] sm:$0xff]
    %v244 = vld [vmem:[#allocation11 + $0x8] sm:$0xff]
    %v245 = vld [vmem:[#allocation11 + $0x10] sm:$0xff]
    %v246 = vld [vmem:[#allocation11 + $0x18] sm:$0xff]
    %v247 = vld [vmem:[#allocation2] sm:$0x3]
    %v248 = vld [vmem:[#allocation3] sm:$0x3]
    %v249 = vld [vmem:[#allocation5] sm:$0x3]
    %vm250 = vcmask 261120
    %v252 = vsel %vm250, %v247, 0
    %254 = vmatprep.subr.mxu0 0.0
    %255 = vmatpush1.msra.mxu0 %v243
    %256 = vmatprep.subr.mxu0 0.0
    %257 = vmatpush1.msra.mxu0 %v244
    %258 = vmatprep.subr.mxu0 0.0
    %259 = vmatpush1.msra.mxu0 %v245
    %260 = vmatprep.subr.mxu0 0.0
    %261 = vmatpush1.msra.mxu0 %v246
    %262 = vmatprep.subr.mxu0 0.0
    %263 = vmatpush1.msra.mxu0 0.0
    %264 = vmatprep.subr.mxu0 0.0
    %265 = vmatpush1.msra.mxu0 0.0
    %266 = vmatprep.subr.mxu0 0.0
    %267 = vmatpush1.msra.mxu0 0.0
    %268 = vmatprep.subr.mxu0 0.0
    %269 = vmatpush1.msra.mxu0 0.0
    %270 = vmatprep.subr.mxu0 0.0
    %271 = vmatpush1.msra.mxu0 0.0
    %272 = vmatprep.subr.mxu0 0.0
    %273 = vmatpush1.msra.mxu0 0.0
    %274 = vmatprep.subr.mxu0 0.0
    %275 = vmatpush1.msra.mxu0 0.0
    %276 = vmatprep.subr.mxu0 0.0
    %277 = vmatpush1.msra.mxu0 0.0
    %278 = vmatprep.subr.mxu0 0.0
    %279 = vmatpush1.msra.mxu0 0.0
    %280 = vmatprep.subr.mxu0 0.0
    %281 = vmatpush1.msra.mxu0 0.0
    %282 = vmatprep.subr.mxu0 0.0
    %283 = vmatpush1.msra.mxu0 0.0
    %284 = vmatprep.subr.mxu0 0.0
    %285 = vmatpush1.msra.mxu0 0.0
    %286 = vmatprep.subr.mxu0 0.0
    %287 = vmatpush1.msra.mxu0 0.0
    %288 = vmatprep.subr.mxu0 0.0
    %289 = vmatpush1.msra.mxu0 0.0
    %290 = vmatprep.subr.mxu0 0.0
    %291 = vmatpush1.msra.mxu0 0.0
    %292 = vmatprep.subr.mxu0 0.0
    %293 = vmatpush1.msra.mxu0 0.0
    %294 = vmatprep.subr.mxu0 0.0
    %295 = vmatpush1.msra.mxu0 0.0
    %296 = vmatprep.subr.mxu0 0.0
    %297 = vmatpush1.msra.mxu0 0.0
    %298 = vmatprep.subr.mxu0 0.0
    %299 = vmatpush1.msra.mxu0 0.0
    %300 = vmatprep.subr.mxu0 0.0
    %301 = vmatpush1.msra.mxu0 0.0
    %302 = vmatprep.subr.mxu0 0.0
    %303 = vmatpush1.msra.mxu0 0.0
    %304 = vmatprep.subr.mxu0 0.0
    %305 = vmatpush1.msra.mxu0 0.0
    %306 = vmatprep.subr.mxu0 0.0
    %307 = vmatpush1.msra.mxu0 0.0
    %308 = vmatprep.subr.mxu0 0.0
    %309 = vmatpush1.msra.mxu0 0.0
    %310 = vmatprep.subr.mxu0 0.0
    %311 = vmatpush1.msra.mxu0 0.0
    %312 = vmatprep.subr.mxu0 0.0
    %313 = vmatpush1.msra.mxu0 0.0
    %314 = vmatprep.subr.mxu0 0.0
    %315 = vmatpush1.msra.mxu0 0.0
    %316 = vmatprep.subr.mxu0 0.0
    %317 = vmatpush1.msra.mxu0 0.0
    %318 = vmatprep.mubr.f32.mxu0 0.0
    %319 = vmatmul.mubr.f32.gmra.mrb[0].mxu0 %v252
    %v320 = vpop.f32.mrb[0].mxu0
    %v321 = vadd.f32 0.0, %v320
    %v322 = vpop.f32.mrb[0].mxu0
    %323 = vdwg.mxu0
    %v324 = vadd.f32 %v249, %v321
    %v325 = vxor.u32 %v324, 2147483648
    %v326 = vmul.f32 %v325, 1.442695
    %v327 = vpow.pop %v326
    %v328 = vadd.f32 %v327, 1.0
    %v329 = vrcp.pop %v328
    %v330 = vmul.f32 1.0, %v329
    %v331 = vtanh.pop %v324
    %333 = vrot.lane.b32.xlu0 %v248, 32
    %v334 = vpop.permute.xlu0 %333
    %v336 = vmul.f32 %v330, %v334
    %338 = vrot.lane.b32.xlu0 %v331, 64
    %v339 = vpop.permute.xlu0 %338
    %v341 = vmul.f32 %v330, %v339
    %343 = vrot.lane.b32.xlu0 %v341, 32
    %v344 = vpop.permute.xlu0 %343
    %v346 = vadd.f32 %v336, %v344
    %v347 = vtanh.pop %v346
    %349 = vrot.lane.b32.xlu0 %v347, 64
    %v350 = vpop.permute.xlu0 %349
    %v352 = vmul.f32 %v330, %v350
    %354 = vrot.lane.b32.xlu0 %v352, 32
    %v355 = vpop.permute.xlu0 %354
    %vm357 = vcmask 254976
    %358 = vst.msk [vmem:[#allocation4] sm:$0x3] %vm357, %v355
    %s359 = scalar_lea.vmem [#allocation5], 2
    %v360 = vld [vmem:[%s359] sm:$0x3]
    %v361 = vsel %vm250, %v355, 0
    %363 = vmatprep.subr.mxu0 0.0
    %364 = vmatpush1.msra.mxu0 %v243
    %365 = vmatprep.subr.mxu0 0.0
    %366 = vmatpush1.msra.mxu0 %v244
    %367 = vmatprep.subr.mxu0 0.0
    %368 = vmatpush1.msra.mxu0 %v245
    %369 = vmatprep.subr.mxu0 0.0
    %370 = vmatpush1.msra.mxu0 %v246
    %371 = vmatprep.subr.mxu0 0.0
    %372 = vmatpush1.msra.mxu0 0.0
    %373 = vmatprep.subr.mxu0 0.0
    %374 = vmatpush1.msra.mxu0 0.0
    %375 = vmatprep.subr.mxu0 0.0
    %376 = vmatpush1.msra.mxu0 0.0
    %377 = vmatprep.subr.mxu0 0.0
    %378 = vmatpush1.msra.mxu0 0.0
    %379 = vmatprep.subr.mxu0 0.0
    %380 = vmatpush1.msra.mxu0 0.0
    %381 = vmatprep.subr.mxu0 0.0
    %382 = vmatpush1.msra.mxu0 0.0
    %383 = vmatprep.subr.mxu0 0.0
    %384 = vmatpush1.msra.mxu0 0.0
    %385 = vmatprep.subr.mxu0 0.0
    %386 = vmatpush1.msra.mxu0 0.0
    %387 = vmatprep.subr.mxu0 0.0
    %388 = vmatpush1.msra.mxu0 0.0
    %389 = vmatprep.subr.mxu0 0.0
    %390 = vmatpush1.msra.mxu0 0.0
    %391 = vmatprep.subr.mxu0 0.0
    %392 = vmatpush1.msra.mxu0 0.0
    %393 = vmatprep.subr.mxu0 0.0
    %394 = vmatpush1.msra.mxu0 0.0
    %395 = vmatprep.subr.mxu0 0.0
    %396 = vmatpush1.msra.mxu0 0.0
    %397 = vmatprep.subr.mxu0 0.0
    %398 = vmatpush1.msra.mxu0 0.0
    %399 = vmatprep.subr.mxu0 0.0
    %400 = vmatpush1.msra.mxu0 0.0
    %401 = vmatprep.subr.mxu0 0.0
    %402 = vmatpush1.msra.mxu0 0.0
    %403 = vmatprep.subr.mxu0 0.0
    %404 = vmatpush1.msra.mxu0 0.0
    %405 = vmatprep.subr.mxu0 0.0
    %406 = vmatpush1.msra.mxu0 0.0
    %407 = vmatprep.subr.mxu0 0.0
    %408 = vmatpush1.msra.mxu0 0.0
    %409 = vmatprep.subr.mxu0 0.0
    %410 = vmatpush1.msra.mxu0 0.0
    %411 = vmatprep.subr.mxu0 0.0
    %412 = vmatpush1.msra.mxu0 0.0
    %413 = vmatprep.subr.mxu0 0.0
    %414 = vmatpush1.msra.mxu0 0.0
    %415 = vmatprep.subr.mxu0 0.0
    %416 = vmatpush1.msra.mxu0 0.0
    %417 = vmatprep.subr.mxu0 0.0
    %418 = vmatpush1.msra.mxu0 0.0
    %419 = vmatprep.subr.mxu0 0.0
    %420 = vmatpush1.msra.mxu0 0.0
    %421 = vmatprep.subr.mxu0 0.0
    %422 = vmatpush1.msra.mxu0 0.0
    %423 = vmatprep.subr.mxu0 0.0
    %424 = vmatpush1.msra.mxu0 0.0
    %425 = vmatprep.subr.mxu0 0.0
    %426 = vmatpush1.msra.mxu0 0.0
    %427 = vmatprep.mubr.f32.mxu0 0.0
    %428 = vmatmul.mubr.f32.gmra.mrb[0].mxu0 %v361
    %v429 = vpop.f32.mrb[0].mxu0
    %v430 = vadd.f32 0.0, %v429
    %v431 = vpop.f32.mrb[0].mxu0
    %432 = vdwg.mxu0
    %v433 = vadd.f32 %v360, %v430
    %v434 = vxor.u32 %v433, 2147483648
    %v435 = vmul.f32 %v434, 1.442695
    %v436 = vpow.pop %v435
    %v437 = vadd.f32 %v436, 1.0
    %v438 = vrcp.pop %v437
    %v439 = vmul.f32 1.0, %v438
    %v440 = vtanh.pop %v433
    %v441 = vmul.f32 %v439, %v346
    %443 = vrot.lane.b32.xlu0 %v440, 64
    %v444 = vpop.permute.xlu0 %443
    %v446 = vmul.f32 %v439, %v444
    %448 = vrot.lane.b32.xlu0 %v446, 32
    %v449 = vpop.permute.xlu0 %448
    %v451 = vadd.f32 %v441, %v449
    %v452 = vtanh.pop %v451
    %454 = vrot.lane.b32.xlu0 %v452, 64
    %v455 = vpop.permute.xlu0 %454
    %v457 = vmul.f32 %v439, %v455
    %459 = vrot.lane.b32.xlu0 %v457, 32
    %v460 = vpop.permute.xlu0 %459
    %s462 = scalar_lea.vmem [#allocation4], 2
    %463 = vst.msk [vmem:[%s462] sm:$0x3] %vm357, %v460
    %s464 = scalar_lea.vmem [#allocation5], 4
    %v465 = vld [vmem:[%s464] sm:$0x3]
    %v466 = vsel %vm250, %v460, 0
    %468 = vmatprep.subr.mxu0 0.0
    %469 = vmatpush1.msra.mxu0 %v243
    %470 = vmatprep.subr.mxu0 0.0
    %471 = vmatpush1.msra.mxu0 %v244
    %472 = vmatprep.subr.mxu0 0.0
    %473 = vmatpush1.msra.mxu0 %v245
    %474 = vmatprep.subr.mxu0 0.0
    %475 = vmatpush1.msra.mxu0 %v246
    %476 = vmatprep.subr.mxu0 0.0
    %477 = vmatpush1.msra.mxu0 0.0
    %478 = vmatprep.subr.mxu0 0.0
    %479 = vmatpush1.msra.mxu0 0.0
    %480 = vmatprep.subr.mxu0 0.0
    %481 = vmatpush1.msra.mxu0 0.0
    %482 = vmatprep.subr.mxu0 0.0
    %483 = vmatpush1.msra.mxu0 0.0
    %484 = vmatprep.subr.mxu0 0.0
    %485 = vmatpush1.msra.mxu0 0.0
    %486 = vmatprep.subr.mxu0 0.0
    %487 = vmatpush1.msra.mxu0 0.0
    %488 = vmatprep.subr.mxu0 0.0
    %489 = vmatpush1.msra.mxu0 0.0
    %490 = vmatprep.subr.mxu0 0.0
    %491 = vmatpush1.msra.mxu0 0.0
    %492 = vmatprep.subr.mxu0 0.0
    %493 = vmatpush1.msra.mxu0 0.0
    %494 = vmatprep.subr.mxu0 0.0
    %495 = vmatpush1.msra.mxu0 0.0
    %496 = vmatprep.subr.mxu0 0.0
    %497 = vmatpush1.msra.mxu0 0.0
    %498 = vmatprep.subr.mxu0 0.0
    %499 = vmatpush1.msra.mxu0 0.0
    %500 = vmatprep.subr.mxu0 0.0
    %501 = vmatpush1.msra.mxu0 0.0
    %502 = vmatprep.subr.mxu0 0.0
    %503 = vmatpush1.msra.mxu0 0.0
    %504 = vmatprep.subr.mxu0 0.0
    %505 = vmatpush1.msra.mxu0 0.0
    %506 = vmatprep.subr.mxu0 0.0
    %507 = vmatpush1.msra.mxu0 0.0
    %508 = vmatprep.subr.mxu0 0.0
    %509 = vmatpush1.msra.mxu0 0.0
    %510 = vmatprep.subr.mxu0 0.0
    %511 = vmatpush1.msra.mxu0 0.0
    %512 = vmatprep.subr.mxu0 0.0
    %513 = vmatpush1.msra.mxu0 0.0
    %514 = vmatprep.subr.mxu0 0.0
    %515 = vmatpush1.msra.mxu0 0.0
    %516 = vmatprep.subr.mxu0 0.0
    %517 = vmatpush1.msra.mxu0 0.0
    %518 = vmatprep.subr.mxu0 0.0
    %519 = vmatpush1.msra.mxu0 0.0
    %520 = vmatprep.subr.mxu0 0.0
    %521 = vmatpush1.msra.mxu0 0.0
    %522 = vmatprep.subr.mxu0 0.0
    %523 = vmatpush1.msra.mxu0 0.0
    %524 = vmatprep.subr.mxu0 0.0
    %525 = vmatpush1.msra.mxu0 0.0
    %526 = vmatprep.subr.mxu0 0.0
    %527 = vmatpush1.msra.mxu0 0.0
    %528 = vmatprep.subr.mxu0 0.0
    %529 = vmatpush1.msra.mxu0 0.0
    %530 = vmatprep.subr.mxu0 0.0
    %531 = vmatpush1.msra.mxu0 0.0
    %532 = vmatprep.mubr.f32.mxu0 0.0
    %533 = vmatmul.mubr.f32.gmra.mrb[0].mxu0 %v466
    %v534 = vpop.f32.mrb[0].mxu0
    %v535 = vadd.f32 0.0, %v534
    %v536 = vpop.f32.mrb[0].mxu0
    %537 = vdwg.mxu0
    %v538 = vadd.f32 %v465, %v535
    %v539 = vxor.u32 %v538, 2147483648
    %v540 = vmul.f32 %v539, 1.442695
    %v541 = vpow.pop %v540
    %v542 = vadd.f32 %v541, 1.0
    %v543 = vrcp.pop %v542
    %v544 = vmul.f32 1.0, %v543
    %v545 = vtanh.pop %v538
    %v546 = vmul.f32 %v544, %v451
    %548 = vrot.lane.b32.xlu0 %v545, 64
    %v549 = vpop.permute.xlu0 %548
    %v551 = vmul.f32 %v544, %v549
    %553 = vrot.lane.b32.xlu0 %v551, 32
    %v554 = vpop.permute.xlu0 %553
    %v556 = vadd.f32 %v546, %v554
    %v557 = vtanh.pop %v556
    %559 = vrot.lane.b32.xlu0 %v557, 64
    %v560 = vpop.permute.xlu0 %559
    %v562 = vmul.f32 %v544, %v560
    %564 = vrot.lane.b32.xlu0 %v562, 32
    %v565 = vpop.permute.xlu0 %564
    %s567 = scalar_lea.vmem [#allocation4], 4
    %568 = vst.msk [vmem:[%s567] sm:$0x3] %vm357, %v565
    %s569 = scalar_lea.vmem [#allocation5], 6
    %v570 = vld [vmem:[%s569] sm:$0x3]
    %v571 = vsel %vm250, %v565, 0
    %573 = vmatprep.subr.mxu0 0.0
    %574 = vmatpush1.msra.mxu0 %v243
    %575 = vmatprep.subr.mxu0 0.0
    %576 = vmatpush1.msra.mxu0 %v244
    %577 = vmatprep.subr.mxu0 0.0
    %578 = vmatpush1.msra.mxu0 %v245
    %579 = vmatprep.subr.mxu0 0.0
    %580 = vmatpush1.msra.mxu0 %v246
    %581 = vmatprep.subr.mxu0 0.0
    %582 = vmatpush1.msra.mxu0 0.0
    %583 = vmatprep.subr.mxu0 0.0
    %584 = vmatpush1.msra.mxu0 0.0
    %585 = vmatprep.subr.mxu0 0.0
    %586 = vmatpush1.msra.mxu0 0.0
    %587 = vmatprep.subr.mxu0 0.0
    %588 = vmatpush1.msra.mxu0 0.0
    %589 = vmatprep.subr.mxu0 0.0
    %590 = vmatpush1.msra.mxu0 0.0
    %591 = vmatprep.subr.mxu0 0.0
    %592 = vmatpush1.msra.mxu0 0.0
    %593 = vmatprep.subr.mxu0 0.0
    %594 = vmatpush1.msra.mxu0 0.0
    %595 = vmatprep.subr.mxu0 0.0
    %596 = vmatpush1.msra.mxu0 0.0
    %597 = vmatprep.subr.mxu0 0.0
    %598 = vmatpush1.msra.mxu0 0.0
    %599 = vmatprep.subr.mxu0 0.0
    %600 = vmatpush1.msra.mxu0 0.0
    %601 = vmatprep.subr.mxu0 0.0
    %602 = vmatpush1.msra.mxu0 0.0
    %603 = vmatprep.subr.mxu0 0.0
    %604 = vmatpush1.msra.mxu0 0.0
    %605 = vmatprep.subr.mxu0 0.0
    %606 = vmatpush1.msra.mxu0 0.0
    %607 = vmatprep.subr.mxu0 0.0
    %608 = vmatpush1.msra.mxu0 0.0
    %609 = vmatprep.subr.mxu0 0.0
    %610 = vmatpush1.msra.mxu0 0.0
    %611 = vmatprep.subr.mxu0 0.0
    %612 = vmatpush1.msra.mxu0 0.0
    %613 = vmatprep.subr.mxu0 0.0
    %614 = vmatpush1.msra.mxu0 0.0
    %615 = vmatprep.subr.mxu0 0.0
    %616 = vmatpush1.msra.mxu0 0.0
    %617 = vmatprep.subr.mxu0 0.0
    %618 = vmatpush1.msra.mxu0 0.0
    %619 = vmatprep.subr.mxu0 0.0
    %620 = vmatpush1.msra.mxu0 0.0
    %621 = vmatprep.subr.mxu0 0.0
    %622 = vmatpush1.msra.mxu0 0.0
    %623 = vmatprep.subr.mxu0 0.0
    %624 = vmatpush1.msra.mxu0 0.0
    %625 = vmatprep.subr.mxu0 0.0
    %626 = vmatpush1.msra.mxu0 0.0
    %627 = vmatprep.subr.mxu0 0.0
    %628 = vmatpush1.msra.mxu0 0.0
    %629 = vmatprep.subr.mxu0 0.0
    %630 = vmatpush1.msra.mxu0 0.0
    %631 = vmatprep.subr.mxu0 0.0
    %632 = vmatpush1.msra.mxu0 0.0
    %633 = vmatprep.subr.mxu0 0.0
    %634 = vmatpush1.msra.mxu0 0.0
    %635 = vmatprep.subr.mxu0 0.0
    %636 = vmatpush1.msra.mxu0 0.0
    %637 = vmatprep.mubr.f32.mxu0 0.0
    %638 = vmatmul.mubr.f32.gmra.mrb[0].mxu0 %v571
    %v639 = vpop.f32.mrb[0].mxu0
    %v640 = vadd.f32 0.0, %v639
    %v641 = vpop.f32.mrb[0].mxu0
    %642 = vdwg.mxu0
    %v643 = vadd.f32 %v570, %v640
    %v644 = vxor.u32 %v643, 2147483648
    %v645 = vmul.f32 %v644, 1.442695
    %v646 = vpow.pop %v645
    %v647 = vadd.f32 %v646, 1.0
    %v648 = vrcp.pop %v647
    %v649 = vmul.f32 1.0, %v648
    %v650 = vtanh.pop %v643
    %v651 = vmul.f32 %v649, %v556
    %653 = vrot.lane.b32.xlu0 %v650, 64
    %v654 = vpop.permute.xlu0 %653
    %v656 = vmul.f32 %v649, %v654
    %658 = vrot.lane.b32.xlu0 %v656, 32
    %v659 = vpop.permute.xlu0 %658
    %v661 = vadd.f32 %v651, %v659
    %v662 = vtanh.pop %v661
    %664 = vrot.lane.b32.xlu0 %v662, 64
    %v665 = vpop.permute.xlu0 %664
    %v667 = vmul.f32 %v649, %v665
    %669 = vrot.lane.b32.xlu0 %v667, 32
    %v670 = vpop.permute.xlu0 %669
    %s672 = scalar_lea.vmem [#allocation4], 6
    %673 = vst.msk [vmem:[%s672] sm:$0x3] %vm357, %v670
    %s674 = scalar_lea.vmem [#allocation5], 8
    %v675 = vld [vmem:[%s674] sm:$0x3]
    %v676 = vsel %vm250, %v670, 0
    %678 = vmatprep.subr.mxu0 0.0
    %679 = vmatpush1.msra.mxu0 %v243
    %680 = vmatprep.subr.mxu0 0.0
    %681 = vmatpush1.msra.mxu0 %v244
    %682 = vmatprep.subr.mxu0 0.0
    %683 = vmatpush1.msra.mxu0 %v245
    %684 = vmatprep.subr.mxu0 0.0
    %685 = vmatpush1.msra.mxu0 %v246
    %686 = vmatprep.subr.mxu0 0.0
    %687 = vmatpush1.msra.mxu0 0.0
    %688 = vmatprep.subr.mxu0 0.0
    %689 = vmatpush1.msra.mxu0 0.0
    %690 = vmatprep.subr.mxu0 0.0
    %691 = vmatpush1.msra.mxu0 0.0
    %692 = vmatprep.subr.mxu0 0.0
    %693 = vmatpush1.msra.mxu0 0.0
    %694 = vmatprep.subr.mxu0 0.0
    %695 = vmatpush1.msra.mxu0 0.0
    %696 = vmatprep.subr.mxu0 0.0
    %697 = vmatpush1.msra.mxu0 0.0
    %698 = vmatprep.subr.mxu0 0.0
    %699 = vmatpush1.msra.mxu0 0.0
    %700 = vmatprep.subr.mxu0 0.0
    %701 = vmatpush1.msra.mxu0 0.0
    %702 = vmatprep.subr.mxu0 0.0
    %703 = vmatpush1.msra.mxu0 0.0
    %704 = vmatprep.subr.mxu0 0.0
    %705 = vmatpush1.msra.mxu0 0.0
    %706 = vmatprep.subr.mxu0 0.0
    %707 = vmatpush1.msra.mxu0 0.0
    %708 = vmatprep.subr.mxu0 0.0
    %709 = vmatpush1.msra.mxu0 0.0
    %710 = vmatprep.subr.mxu0 0.0
    %711 = vmatpush1.msra.mxu0 0.0
    %712 = vmatprep.subr.mxu0 0.0
    %713 = vmatpush1.msra.mxu0 0.0
    %714 = vmatprep.subr.mxu0 0.0
    %715 = vmatpush1.msra.mxu0 0.0
    %716 = vmatprep.subr.mxu0 0.0
    %717 = vmatpush1.msra.mxu0 0.0
    %718 = vmatprep.subr.mxu0 0.0
    %719 = vmatpush1.msra.mxu0 0.0
    %720 = vmatprep.subr.mxu0 0.0
    %721 = vmatpush1.msra.mxu0 0.0
    %722 = vmatprep.subr.mxu0 0.0
    %723 = vmatpush1.msra.mxu0 0.0
    %724 = vmatprep.subr.mxu0 0.0
    %725 = vmatpush1.msra.mxu0 0.0
    %726 = vmatprep.subr.mxu0 0.0
    %727 = vmatpush1.msra.mxu0 0.0
    %728 = vmatprep.subr.mxu0 0.0
    %729 = vmatpush1.msra.mxu0 0.0
    %730 = vmatprep.subr.mxu0 0.0
    %731 = vmatpush1.msra.mxu0 0.0
    %732 = vmatprep.subr.mxu0 0.0
    %733 = vmatpush1.msra.mxu0 0.0
    %734 = vmatprep.subr.mxu0 0.0
    %735 = vmatpush1.msra.mxu0 0.0
    %736 = vmatprep.subr.mxu0 0.0
    %737 = vmatpush1.msra.mxu0 0.0
    %738 = vmatprep.subr.mxu0 0.0
    %739 = vmatpush1.msra.mxu0 0.0
    %740 = vmatprep.subr.mxu0 0.0
    %741 = vmatpush1.msra.mxu0 0.0
    %742 = vmatprep.mubr.f32.mxu0 0.0
    %743 = vmatmul.mubr.f32.gmra.mrb[0].mxu0 %v676
    %v744 = vpop.f32.mrb[0].mxu0
    %v745 = vadd.f32 0.0, %v744
    %v746 = vpop.f32.mrb[0].mxu0
    %747 = vdwg.mxu0
    %v748 = vadd.f32 %v675, %v745
    %v749 = vxor.u32 %v748, 2147483648
    %v750 = vmul.f32 %v749, 1.442695
    %v751 = vpow.pop %v750
    %v752 = vadd.f32 %v751, 1.0
    %v753 = vrcp.pop %v752
    %v754 = vmul.f32 1.0, %v753
    %v755 = vtanh.pop %v748
    %v756 = vmul.f32 %v754, %v661
    %758 = vrot.lane.b32.xlu0 %v755, 64
    %v759 = vpop.permute.xlu0 %758
    %v761 = vmul.f32 %v754, %v759
    %763 = vrot.lane.b32.xlu0 %v761, 32
    %v764 = vpop.permute.xlu0 %763
    %v766 = vadd.f32 %v756, %v764
    %v767 = vtanh.pop %v766
    %769 = vrot.lane.b32.xlu0 %v767, 64
    %v770 = vpop.permute.xlu0 %769
    %v772 = vmul.f32 %v754, %v770
    %774 = vrot.lane.b32.xlu0 %v772, 32
    %v775 = vpop.permute.xlu0 %774
    %s777 = scalar_lea.vmem [#allocation4], 8
    %778 = vst.msk [vmem:[%s777] sm:$0x3] %vm357, %v775
    %s779 = scalar_lea.vmem [#allocation5], 10
    %v780 = vld [vmem:[%s779] sm:$0x3]
    %v781 = vsel %vm250, %v775, 0
    %783 = vmatprep.subr.mxu0 0.0
    %784 = vmatpush1.msra.mxu0 %v243
    %785 = vmatprep.subr.mxu0 0.0
    %786 = vmatpush1.msra.mxu0 %v244
    %787 = vmatprep.subr.mxu0 0.0
    %788 = vmatpush1.msra.mxu0 %v245
    %789 = vmatprep.subr.mxu0 0.0
    %790 = vmatpush1.msra.mxu0 %v246
    %791 = vmatprep.subr.mxu0 0.0
    %792 = vmatpush1.msra.mxu0 0.0
    %793 = vmatprep.subr.mxu0 0.0
    %794 = vmatpush1.msra.mxu0 0.0
    %795 = vmatprep.subr.mxu0 0.0
    %796 = vmatpush1.msra.mxu0 0.0
    %797 = vmatprep.subr.mxu0 0.0
    %798 = vmatpush1.msra.mxu0 0.0
    %799 = vmatprep.subr.mxu0 0.0
    %800 = vmatpush1.msra.mxu0 0.0
    %801 = vmatprep.subr.mxu0 0.0
    %802 = vmatpush1.msra.mxu0 0.0
    %803 = vmatprep.subr.mxu0 0.0
    %804 = vmatpush1.msra.mxu0 0.0
    %805 = vmatprep.subr.mxu0 0.0
    %806 = vmatpush1.msra.mxu0 0.0
    %807 = vmatprep.subr.mxu0 0.0
    %808 = vmatpush1.msra.mxu0 0.0
    %809 = vmatprep.subr.mxu0 0.0
    %810 = vmatpush1.msra.mxu0 0.0
    %811 = vmatprep.subr.mxu0 0.0
    %812 = vmatpush1.msra.mxu0 0.0
    %813 = vmatprep.subr.mxu0 0.0
    %814 = vmatpush1.msra.mxu0 0.0
    %815 = vmatprep.subr.mxu0 0.0
    %816 = vmatpush1.msra.mxu0 0.0
    %817 = vmatprep.subr.mxu0 0.0
    %818 = vmatpush1.msra.mxu0 0.0
    %819 = vmatprep.subr.mxu0 0.0
    %820 = vmatpush1.msra.mxu0 0.0
    %821 = vmatprep.subr.mxu0 0.0
    %822 = vmatpush1.msra.mxu0 0.0
    %823 = vmatprep.subr.mxu0 0.0
    %824 = vmatpush1.msra.mxu0 0.0
    %825 = vmatprep.subr.mxu0 0.0
    %826 = vmatpush1.msra.mxu0 0.0
    %827 = vmatprep.subr.mxu0 0.0
    %828 = vmatpush1.msra.mxu0 0.0
    %829 = vmatprep.subr.mxu0 0.0
    %830 = vmatpush1.msra.mxu0 0.0
    %831 = vmatprep.subr.mxu0 0.0
    %832 = vmatpush1.msra.mxu0 0.0
    %833 = vmatprep.subr.mxu0 0.0
    %834 = vmatpush1.msra.mxu0 0.0
    %835 = vmatprep.subr.mxu0 0.0
    %836 = vmatpush1.msra.mxu0 0.0
    %837 = vmatprep.subr.mxu0 0.0
    %838 = vmatpush1.msra.mxu0 0.0
    %839 = vmatprep.subr.mxu0 0.0
    %840 = vmatpush1.msra.mxu0 0.0
    %841 = vmatprep.subr.mxu0 0.0
    %842 = vmatpush1.msra.mxu0 0.0
    %843 = vmatprep.subr.mxu0 0.0
    %844 = vmatpush1.msra.mxu0 0.0
    %845 = vmatprep.subr.mxu0 0.0
    %846 = vmatpush1.msra.mxu0 0.0
    %847 = vmatprep.mubr.f32.mxu0 0.0
    %848 = vmatmul.mubr.f32.gmra.mrb[0].mxu0 %v781
    %v849 = vpop.f32.mrb[0].mxu0
    %v850 = vadd.f32 0.0, %v849
    %v851 = vpop.f32.mrb[0].mxu0
    %852 = vdwg.mxu0
    %v853 = vadd.f32 %v780, %v850
    %v854 = vxor.u32 %v853, 2147483648
    %v855 = vmul.f32 %v854, 1.442695
    %v856 = vpow.pop %v855
    %v857 = vadd.f32 %v856, 1.0
    %v858 = vrcp.pop %v857
    %v859 = vmul.f32 1.0, %v858
    %v860 = vtanh.pop %v853
    %v861 = vmul.f32 %v859, %v766
    %863 = vrot.lane.b32.xlu0 %v860, 64
    %v864 = vpop.permute.xlu0 %863
    %v866 = vmul.f32 %v859, %v864
    %868 = vrot.lane.b32.xlu0 %v866, 32
    %v869 = vpop.permute.xlu0 %868
    %v871 = vadd.f32 %v861, %v869
    %v872 = vtanh.pop %v871
    %874 = vrot.lane.b32.xlu0 %v872, 64
    %v875 = vpop.permute.xlu0 %874
    %v877 = vmul.f32 %v859, %v875
    %879 = vrot.lane.b32.xlu0 %v877, 32
    %v880 = vpop.permute.xlu0 %879
    %s882 = scalar_lea.vmem [#allocation4], 10
    %883 = vst.msk [vmem:[%s882] sm:$0x3] %vm357, %v880
    %s884 = scalar_lea.vmem [#allocation5], 12
    %v885 = vld [vmem:[%s884] sm:$0x3]
    %v886 = vsel %vm250, %v880, 0
    %888 = vmatprep.subr.mxu0 0.0
    %889 = vmatpush1.msra.mxu0 %v243
    %890 = vmatprep.subr.mxu0 0.0
    %891 = vmatpush1.msra.mxu0 %v244
    %892 = vmatprep.subr.mxu0 0.0
    %893 = vmatpush1.msra.mxu0 %v245
    %894 = vmatprep.subr.mxu0 0.0
    %895 = vmatpush1.msra.mxu0 %v246
    %896 = vmatprep.subr.mxu0 0.0
    %897 = vmatpush1.msra.mxu0 0.0
    %898 = vmatprep.subr.mxu0 0.0
    %899 = vmatpush1.msra.mxu0 0.0
    %900 = vmatprep.subr.mxu0 0.0
    %901 = vmatpush1.msra.mxu0 0.0
    %902 = vmatprep.subr.mxu0 0.0
    %903 = vmatpush1.msra.mxu0 0.0
    %904 = vmatprep.subr.mxu0 0.0
    %905 = vmatpush1.msra.mxu0 0.0
    %906 = vmatprep.subr.mxu0 0.0
    %907 = vmatpush1.msra.mxu0 0.0
    %908 = vmatprep.subr.mxu0 0.0
    %909 = vmatpush1.msra.mxu0 0.0
    %910 = vmatprep.subr.mxu0 0.0
    %911 = vmatpush1.msra.mxu0 0.0
    %912 = vmatprep.subr.mxu0 0.0
    %913 = vmatpush1.msra.mxu0 0.0
    %914 = vmatprep.subr.mxu0 0.0
    %915 = vmatpush1.msra.mxu0 0.0
    %916 = vmatprep.subr.mxu0 0.0
    %917 = vmatpush1.msra.mxu0 0.0
    %918 = vmatprep.subr.mxu0 0.0
    %919 = vmatpush1.msra.mxu0 0.0
    %920 = vmatprep.subr.mxu0 0.0
    %921 = vmatpush1.msra.mxu0 0.0
    %922 = vmatprep.subr.mxu0 0.0
    %923 = vmatpush1.msra.mxu0 0.0
    %924 = vmatprep.subr.mxu0 0.0
    %925 = vmatpush1.msra.mxu0 0.0
    %926 = vmatprep.subr.mxu0 0.0
    %927 = vmatpush1.msra.mxu0 0.0
    %928 = vmatprep.subr.mxu0 0.0
    %929 = vmatpush1.msra.mxu0 0.0
    %930 = vmatprep.subr.mxu0 0.0
    %931 = vmatpush1.msra.mxu0 0.0
    %932 = vmatprep.subr.mxu0 0.0
    %933 = vmatpush1.msra.mxu0 0.0
    %934 = vmatprep.subr.mxu0 0.0
    %935 = vmatpush1.msra.mxu0 0.0
    %936 = vmatprep.subr.mxu0 0.0
    %937 = vmatpush1.msra.mxu0 0.0
    %938 = vmatprep.subr.mxu0 0.0
    %939 = vmatpush1.msra.mxu0 0.0
    %940 = vmatprep.subr.mxu0 0.0
    %941 = vmatpush1.msra.mxu0 0.0
    %942 = vmatprep.subr.mxu0 0.0
    %943 = vmatpush1.msra.mxu0 0.0
    %944 = vmatprep.subr.mxu0 0.0
    %945 = vmatpush1.msra.mxu0 0.0
    %946 = vmatprep.subr.mxu0 0.0
    %947 = vmatpush1.msra.mxu0 0.0
    %948 = vmatprep.subr.mxu0 0.0
    %949 = vmatpush1.msra.mxu0 0.0
    %950 = vmatprep.subr.mxu0 0.0
    %951 = vmatpush1.msra.mxu0 0.0
    %952 = vmatprep.mubr.f32.mxu0 0.0
    %953 = vmatmul.mubr.f32.gmra.mrb[0].mxu0 %v886
    %v954 = vpop.f32.mrb[0].mxu0
    %v955 = vadd.f32 0.0, %v954
    %v956 = vpop.f32.mrb[0].mxu0
    %957 = vdwg.mxu0
    %v958 = vadd.f32 %v885, %v955
    %v959 = vxor.u32 %v958, 2147483648
    %v960 = vmul.f32 %v959, 1.442695
    %v961 = vpow.pop %v960
    %v962 = vadd.f32 %v961, 1.0
    %v963 = vrcp.pop %v962
    %v964 = vmul.f32 1.0, %v963
    %v965 = vtanh.pop %v958
    %v966 = vmul.f32 %v964, %v871
    %968 = vrot.lane.b32.xlu0 %v965, 64
    %v969 = vpop.permute.xlu0 %968
    %v971 = vmul.f32 %v964, %v969
    %973 = vrot.lane.b32.xlu0 %v971, 32
    %v974 = vpop.permute.xlu0 %973
    %v976 = vadd.f32 %v966, %v974
    %v977 = vtanh.pop %v976
    %979 = vrot.lane.b32.xlu0 %v977, 64
    %v980 = vpop.permute.xlu0 %979
    %v982 = vmul.f32 %v964, %v980
    %984 = vrot.lane.b32.xlu0 %v982, 32
    %v985 = vpop.permute.xlu0 %984
    %s987 = scalar_lea.vmem [#allocation4], 12
    %988 = vst.msk [vmem:[%s987] sm:$0x3] %vm357, %v985
    %s989 = scalar_lea.vmem [#allocation5], 14
    %v990 = vld [vmem:[%s989] sm:$0x3]
    %v991 = vsel %vm250, %v985, 0
    %993 = vmatprep.subr.mxu0 0.0
    %994 = vmatpush1.msra.mxu0 %v243
    %995 = vmatprep.subr.mxu0 0.0
    %996 = vmatpush1.msra.mxu0 %v244
    %997 = vmatprep.subr.mxu0 0.0
    %998 = vmatpush1.msra.mxu0 %v245
    %999 = vmatprep.subr.mxu0 0.0
    %1000 = vmatpush1.msra.mxu0 %v246
    %1001 = vmatprep.subr.mxu0 0.0
    %1002 = vmatpush1.msra.mxu0 0.0
    %1003 = vmatprep.subr.mxu0 0.0
    %1004 = vmatpush1.msra.mxu0 0.0
    %1005 = vmatprep.subr.mxu0 0.0
    %1006 = vmatpush1.msra.mxu0 0.0
    %1007 = vmatprep.subr.mxu0 0.0
    %1008 = vmatpush1.msra.mxu0 0.0
    %1009 = vmatprep.subr.mxu0 0.0
    %1010 = vmatpush1.msra.mxu0 0.0
    %1011 = vmatprep.subr.mxu0 0.0
    %1012 = vmatpush1.msra.mxu0 0.0
    %1013 = vmatprep.subr.mxu0 0.0
    %1014 = vmatpush1.msra.mxu0 0.0
    %1015 = vmatprep.subr.mxu0 0.0
    %1016 = vmatpush1.msra.mxu0 0.0
    %1017 = vmatprep.subr.mxu0 0.0
    %1018 = vmatpush1.msra.mxu0 0.0
    %1019 = vmatprep.subr.mxu0 0.0
    %1020 = vmatpush1.msra.mxu0 0.0
    %1021 = vmatprep.subr.mxu0 0.0
    %1022 = vmatpush1.msra.mxu0 0.0
    %1023 = vmatprep.subr.mxu0 0.0
    %1024 = vmatpush1.msra.mxu0 0.0
    %1025 = vmatprep.subr.mxu0 0.0
    %1026 = vmatpush1.msra.mxu0 0.0
    %1027 = vmatprep.subr.mxu0 0.0
    %1028 = vmatpush1.msra.mxu0 0.0
    %1029 = vmatprep.subr.mxu0 0.0
    %1030 = vmatpush1.msra.mxu0 0.0
    %1031 = vmatprep.subr.mxu0 0.0
    %1032 = vmatpush1.msra.mxu0 0.0
    %1033 = vmatprep.subr.mxu0 0.0
    %1034 = vmatpush1.msra.mxu0 0.0
    %1035 = vmatprep.subr.mxu0 0.0
    %1036 = vmatpush1.msra.mxu0 0.0
    %1037 = vmatprep.subr.mxu0 0.0
    %1038 = vmatpush1.msra.mxu0 0.0
    %1039 = vmatprep.subr.mxu0 0.0
    %1040 = vmatpush1.msra.mxu0 0.0
    %1041 = vmatprep.subr.mxu0 0.0
    %1042 = vmatpush1.msra.mxu0 0.0
    %1043 = vmatprep.subr.mxu0 0.0
    %1044 = vmatpush1.msra.mxu0 0.0
    %1045 = vmatprep.subr.mxu0 0.0
    %1046 = vmatpush1.msra.mxu0 0.0
    %1047 = vmatprep.subr.mxu0 0.0
    %1048 = vmatpush1.msra.mxu0 0.0
    %1049 = vmatprep.subr.mxu0 0.0
    %1050 = vmatpush1.msra.mxu0 0.0
    %1051 = vmatprep.subr.mxu0 0.0
    %1052 = vmatpush1.msra.mxu0 0.0
    %1053 = vmatprep.subr.mxu0 0.0
    %1054 = vmatpush1.msra.mxu0 0.0
    %1055 = vmatprep.subr.mxu0 0.0
    %1056 = vmatpush1.msra.mxu0 0.0
    %1057 = vmatprep.mubr.f32.mxu0 0.0
    %1058 = vmatmul.mubr.f32.gmra.mrb[0].mxu0 %v991
    %v1059 = vpop.f32.mrb[0].mxu0
    %v1060 = vadd.f32 0.0, %v1059
    %v1061 = vpop.f32.mrb[0].mxu0
    %1062 = vdwg.mxu0
    %v1063 = vadd.f32 %v990, %v1060
    %v1064 = vxor.u32 %v1063, 2147483648
    %v1065 = vmul.f32 %v1064, 1.442695
    %v1066 = vpow.pop %v1065
    %v1067 = vadd.f32 %v1066, 1.0
    %v1068 = vrcp.pop %v1067
    %v1069 = vmul.f32 1.0, %v1068
    %v1070 = vtanh.pop %v1063
    %v1071 = vmul.f32 %v1069, %v976
    %1073 = vrot.lane.b32.xlu0 %v1070, 64
    %v1074 = vpop.permute.xlu0 %1073
    %v1076 = vmul.f32 %v1069, %v1074
    %1078 = vrot.lane.b32.xlu0 %v1076, 32
    %v1079 = vpop.permute.xlu0 %1078
    %v1081 = vadd.f32 %v1071, %v1079
    %v1082 = vtanh.pop %v1081
    %1084 = vrot.lane.b32.xlu0 %v1082, 64
    %v1085 = vpop.permute.xlu0 %1084
    %v1087 = vmul.f32 %v1069, %v1085
    %1089 = vrot.lane.b32.xlu0 %v1087, 32
    %v1090 = vpop.permute.xlu0 %1089
    %s1092 = scalar_lea.vmem [#allocation4], 14
    %1093 = vst.msk [vmem:[%s1092] sm:$0x3] %vm357, %v1090
    %1094 = vst.msk [vmem:[#allocation2] sm:$0x3] %vm357, %v1090
    %1096 = vrot.lane.b32.xlu0 %v1081, 96
    %v1097 = vpop.permute.xlu0 %1096
    %1099 = vst.msk [vmem:[#allocation3] sm:$0x3] %vm357, %v1097
    %v1100 = vld [vmem:[#allocation4] sm:$0xff]
    %v1101 = vld [vmem:[#allocation4 + $0x8] sm:$0xff]
    %v1102 = vld [vmem:[#allocation12] sm:$0xff]
    %v1103 = vld [vmem:[#allocation12 + $0x8] sm:$0xff]
    %v1104 = vld [vmem:[#allocation12 + $0x10] sm:$0xff]
    %v1105 = vld [vmem:[#allocation12 + $0x18] sm:$0xff]
    %v1106 = vld [vmem:[%s6] sm:$0x1]
    %v1108 = vlaneseq
    %v1109 = vshrl.u32 %v1108, 7
    %v1110 = vsub.s32 0, %v1109
    %v1111 = vrot.slane %v1106, %v1110
    %v1114 = vsel %vm250, %v1100, 0
    %v1117 = vsel %vm250, %v1101, 0
    %1119 = vmatprep.subr.mxu0 0.0
    %1120 = vmatpush1.msra.mxu0 %v1102
    %1121 = vmatprep.subr.mxu0 0.0
    %1122 = vmatpush1.msra.mxu0 %v1103
    %1123 = vmatprep.subr.mxu0 0.0
    %1124 = vmatpush1.msra.mxu0 %v1104
    %1125 = vmatprep.subr.mxu0 0.0
    %1126 = vmatpush1.msra.mxu0 %v1105
    %1127 = vmatprep.subr.mxu0 0.0
    %1128 = vmatpush1.msra.mxu0 0.0
    %1129 = vmatprep.subr.mxu0 0.0
    %1130 = vmatpush1.msra.mxu0 0.0
    %1131 = vmatprep.subr.mxu0 0.0
    %1132 = vmatpush1.msra.mxu0 0.0
    %1133 = vmatprep.subr.mxu0 0.0
    %1134 = vmatpush1.msra.mxu0 0.0
    %1135 = vmatprep.subr.mxu0 0.0
    %1136 = vmatpush1.msra.mxu0 0.0
    %1137 = vmatprep.subr.mxu0 0.0
    %1138 = vmatpush1.msra.mxu0 0.0
    %1139 = vmatprep.subr.mxu0 0.0
    %1140 = vmatpush1.msra.mxu0 0.0
    %1141 = vmatprep.subr.mxu0 0.0
    %1142 = vmatpush1.msra.mxu0 0.0
    %1143 = vmatprep.subr.mxu0 0.0
    %1144 = vmatpush1.msra.mxu0 0.0
    %1145 = vmatprep.subr.mxu0 0.0
    %1146 = vmatpush1.msra.mxu0 0.0
    %1147 = vmatprep.subr.mxu0 0.0
    %1148 = vmatpush1.msra.mxu0 0.0
    %1149 = vmatprep.subr.mxu0 0.0
    %1150 = vmatpush1.msra.mxu0 0.0
    %1151 = vmatprep.subr.mxu0 0.0
    %1152 = vmatpush1.msra.mxu0 0.0
    %1153 = vmatprep.subr.mxu0 0.0
    %1154 = vmatpush1.msra.mxu0 0.0
    %1155 = vmatprep.subr.mxu0 0.0
    %1156 = vmatpush1.msra.mxu0 0.0
    %1157 = vmatprep.subr.mxu0 0.0
    %1158 = vmatpush1.msra.mxu0 0.0
    %1159 = vmatprep.subr.mxu0 0.0
    %1160 = vmatpush1.msra.mxu0 0.0
    %1161 = vmatprep.subr.mxu0 0.0
    %1162 = vmatpush1.msra.mxu0 0.0
    %1163 = vmatprep.subr.mxu0 0.0
    %1164 = vmatpush1.msra.mxu0 0.0
    %1165 = vmatprep.subr.mxu0 0.0
    %1166 = vmatpush1.msra.mxu0 0.0
    %1167 = vmatprep.subr.mxu0 0.0
    %1168 = vmatpush1.msra.mxu0 0.0
    %1169 = vmatprep.subr.mxu0 0.0
    %1170 = vmatpush1.msra.mxu0 0.0
    %1171 = vmatprep.subr.mxu0 0.0
    %1172 = vmatpush1.msra.mxu0 0.0
    %1173 = vmatprep.subr.mxu0 0.0
    %1174 = vmatpush1.msra.mxu0 0.0
    %1175 = vmatprep.subr.mxu0 0.0
    %1176 = vmatpush1.msra.mxu0 0.0
    %1177 = vmatprep.subr.mxu0 0.0
    %1178 = vmatpush1.msra.mxu0 0.0
    %1179 = vmatprep.subr.mxu0 0.0
    %1180 = vmatpush1.msra.mxu0 0.0
    %1181 = vmatprep.subr.mxu0 0.0
    %1182 = vmatpush1.msra.mxu0 0.0
    %1183 = vmatprep.mubr.f32.mxu0 0.0
    %1184 = vmatmul.mubr.f32.gmra.mrb[0].mxu0 %v1114
    %v1185 = vpop.f32.mrb[0].mxu0
    %v1186 = vadd.f32 %v1111, %v1185
    %v1187 = vpop.f32.mrb[0].mxu0
    %1188 = vmatprep.mubr.f32.mxu0 0.0
    %1189 = vmatmul.mubr.f32.gmra.mrb[0].mxu0 %v1117
    %v1190 = vpop.f32.mrb[0].mxu0
    %v1191 = vadd.f32 %v1111, %v1190
    %v1192 = vpop.f32.mrb[0].mxu0
    %1193 = vdwg.mxu0
    %1194 = vst [vmem:[#allocation5] sm:$0xff] %v1186
    %1195 = vst [vmem:[#allocation5 + $0x8] sm:$0xff] %v1191
    %v1196 = vld [vmem:[#allocation14] sm:$0xff]
    %v1197 = vld [vmem:[#allocation14 + $0x8] sm:$0xff]
    %v1198 = vld [vmem:[#allocation14 + $0x10] sm:$0xff]
    %v1199 = vld [vmem:[#allocation14 + $0x18] sm:$0xff]
    %s1200 = scalar_lea.vmem [#allocation2], 2
    %v1201 = vld [vmem:[%s1200] sm:$0x3]
    %s1202 = scalar_lea.vmem [#allocation3], 2
    %v1203 = vld [vmem:[%s1202] sm:$0x3]
    %v1204 = vld [vmem:[#allocation5] sm:$0x3]
    %v1206 = vsel %vm250, %v1201, 0
    %1208 = vmatprep.subr.mxu0 0.0
    %1209 = vmatpush1.msra.mxu0 %v1196
    %1210 = vmatprep.subr.mxu0 0.0
    %1211 = vmatpush1.msra.mxu0 %v1197
    %1212 = vmatprep.subr.mxu0 0.0
    %1213 = vmatpush1.msra.mxu0 %v1198
    %1214 = vmatprep.subr.mxu0 0.0
    %1215 = vmatpush1.msra.mxu0 %v1199
    %1216 = vmatprep.subr.mxu0 0.0
    %1217 = vmatpush1.msra.mxu0 0.0
    %1218 = vmatprep.subr.mxu0 0.0
    %1219 = vmatpush1.msra.mxu0 0.0
    %1220 = vmatprep.subr.mxu0 0.0
    %1221 = vmatpush1.msra.mxu0 0.0
    %1222 = vmatprep.subr.mxu0 0.0
    %1223 = vmatpush1.msra.mxu0 0.0
    %1224 = vmatprep.subr.mxu0 0.0
    %1225 = vmatpush1.msra.mxu0 0.0
    %1226 = vmatprep.subr.mxu0 0.0
    %1227 = vmatpush1.msra.mxu0 0.0
    %1228 = vmatprep.subr.mxu0 0.0
    %1229 = vmatpush1.msra.mxu0 0.0
    %1230 = vmatprep.subr.mxu0 0.0
    %1231 = vmatpush1.msra.mxu0 0.0
    %1232 = vmatprep.subr.mxu0 0.0
    %1233 = vmatpush1.msra.mxu0 0.0
    %1234 = vmatprep.subr.mxu0 0.0
    %1235 = vmatpush1.msra.mxu0 0.0
    %1236 = vmatprep.subr.mxu0 0.0
    %1237 = vmatpush1.msra.mxu0 0.0
    %1238 = vmatprep.subr.mxu0 0.0
    %1239 = vmatpush1.msra.mxu0 0.0
    %1240 = vmatprep.subr.mxu0 0.0
    %1241 = vmatpush1.msra.mxu0 0.0
    %1242 = vmatprep.subr.mxu0 0.0
    %1243 = vmatpush1.msra.mxu0 0.0
    %1244 = vmatprep.subr.mxu0 0.0
    %1245 = vmatpush1.msra.mxu0 0.0
    %1246 = vmatprep.subr.mxu0 0.0
    %1247 = vmatpush1.msra.mxu0 0.0
    %1248 = vmatprep.subr.mxu0 0.0
    %1249 = vmatpush1.msra.mxu0 0.0
    %1250 = vmatprep.subr.mxu0 0.0
    %1251 = vmatpush1.msra.mxu0 0.0
    %1252 = vmatprep.subr.mxu0 0.0
    %1253 = vmatpush1.msra.mxu0 0.0
    %1254 = vmatprep.subr.mxu0 0.0
    %1255 = vmatpush1.msra.mxu0 0.0
    %1256 = vmatprep.subr.mxu0 0.0
    %1257 = vmatpush1.msra.mxu0 0.0
    %1258 = vmatprep.subr.mxu0 0.0
    %1259 = vmatpush1.msra.mxu0 0.0
    %1260 = vmatprep.subr.mxu0 0.0
    %1261 = vmatpush1.msra.mxu0 0.0
    %1262 = vmatprep.subr.mxu0 0.0
    %1263 = vmatpush1.msra.mxu0 0.0
    %1264 = vmatprep.subr.mxu0 0.0
    %1265 = vmatpush1.msra.mxu0 0.0
    %1266 = vmatprep.subr.mxu0 0.0
    %1267 = vmatpush1.msra.mxu0 0.0
    %1268 = vmatprep.subr.mxu0 0.0
    %1269 = vmatpush1.msra.mxu0 0.0
    %1270 = vmatprep.subr.mxu0 0.0
    %1271 = vmatpush1.msra.mxu0 0.0
    %1272 = vmatprep.mubr.f32.mxu0 0.0
    %1273 = vmatmul.mubr.f32.gmra.mrb[0].mxu0 %v1206
    %v1274 = vpop.f32.mrb[0].mxu0
    %v1275 = vadd.f32 0.0, %v1274
    %v1276 = vpop.f32.mrb[0].mxu0
    %1277 = vdwg.mxu0
    %v1278 = vadd.f32 %v1204, %v1275
    %v1279 = vxor.u32 %v1278, 2147483648
    %v1280 = vmul.f32 %v1279, 1.442695
    %v1281 = vpow.pop %v1280
    %v1282 = vadd.f32 %v1281, 1.0
    %v1283 = vrcp.pop %v1282
    %v1284 = vmul.f32 1.0, %v1283
    %v1285 = vtanh.pop %v1278
    %1287 = vrot.lane.b32.xlu0 %v1203, 32
    %v1288 = vpop.permute.xlu0 %1287
    %v1290 = vmul.f32 %v1284, %v1288
    %1292 = vrot.lane.b32.xlu0 %v1285, 64
    %v1293 = vpop.permute.xlu0 %1292
    %v1295 = vmul.f32 %v1284, %v1293
    %1297 = vrot.lane.b32.xlu0 %v1295, 32
    %v1298 = vpop.permute.xlu0 %1297
    %v1300 = vadd.f32 %v1290, %v1298
    %v1301 = vtanh.pop %v1300
    %1303 = vrot.lane.b32.xlu0 %v1301, 64
    %v1304 = vpop.permute.xlu0 %1303
    %v1306 = vmul.f32 %v1284, %v1304
    %1308 = vrot.lane.b32.xlu0 %v1306, 32
    %v1309 = vpop.permute.xlu0 %1308
    %1311 = vst.msk [vmem:[#allocation4] sm:$0x3] %vm357, %v1309
    %v1312 = vld [vmem:[%s359] sm:$0x3]
    %v1313 = vsel %vm250, %v1309, 0
    %1315 = vmatprep.subr.mxu0 0.0
    %1316 = vmatpush1.msra.mxu0 %v1196
    %1317 = vmatprep.subr.mxu0 0.0
    %1318 = vmatpush1.msra.mxu0 %v1197
    %1319 = vmatprep.subr.mxu0 0.0
    %1320 = vmatpush1.msra.mxu0 %v1198
    %1321 = vmatprep.subr.mxu0 0.0
    %1322 = vmatpush1.msra.mxu0 %v1199
    %1323 = vmatprep.subr.mxu0 0.0
    %1324 = vmatpush1.msra.mxu0 0.0
    %1325 = vmatprep.subr.mxu0 0.0
    %1326 = vmatpush1.msra.mxu0 0.0
    %1327 = vmatprep.subr.mxu0 0.0
    %1328 = vmatpush1.msra.mxu0 0.0
    %1329 = vmatprep.subr.mxu0 0.0
    %1330 = vmatpush1.msra.mxu0 0.0
    %1331 = vmatprep.subr.mxu0 0.0
    %1332 = vmatpush1.msra.mxu0 0.0
    %1333 = vmatprep.subr.mxu0 0.0
    %1334 = vmatpush1.msra.mxu0 0.0
    %1335 = vmatprep.subr.mxu0 0.0
    %1336 = vmatpush1.msra.mxu0 0.0
    %1337 = vmatprep.subr.mxu0 0.0
    %1338 = vmatpush1.msra.mxu0 0.0
    %1339 = vmatprep.subr.mxu0 0.0
    %1340 = vmatpush1.msra.mxu0 0.0
    %1341 = vmatprep.subr.mxu0 0.0
    %1342 = vmatpush1.msra.mxu0 0.0
    %1343 = vmatprep.subr.mxu0 0.0
    %1344 = vmatpush1.msra.mxu0 0.0
    %1345 = vmatprep.subr.mxu0 0.0
    %1346 = vmatpush1.msra.mxu0 0.0
    %1347 = vmatprep.subr.mxu0 0.0
    %1348 = vmatpush1.msra.mxu0 0.0
    %1349 = vmatprep.subr.mxu0 0.0
    %1350 = vmatpush1.msra.mxu0 0.0
    %1351 = vmatprep.subr.mxu0 0.0
    %1352 = vmatpush1.msra.mxu0 0.0
    %1353 = vmatprep.subr.mxu0 0.0
    %1354 = vmatpush1.msra.mxu0 0.0
    %1355 = vmatprep.subr.mxu0 0.0
    %1356 = vmatpush1.msra.mxu0 0.0
    %1357 = vmatprep.subr.mxu0 0.0
    %1358 = vmatpush1.msra.mxu0 0.0
    %1359 = vmatprep.subr.mxu0 0.0
    %1360 = vmatpush1.msra.mxu0 0.0
    %1361 = vmatprep.subr.mxu0 0.0
    %1362 = vmatpush1.msra.mxu0 0.0
    %1363 = vmatprep.subr.mxu0 0.0
    %1364 = vmatpush1.msra.mxu0 0.0
    %1365 = vmatprep.subr.mxu0 0.0
    %1366 = vmatpush1.msra.mxu0 0.0
    %1367 = vmatprep.subr.mxu0 0.0
    %1368 = vmatpush1.msra.mxu0 0.0
    %1369 = vmatprep.subr.mxu0 0.0
    %1370 = vmatpush1.msra.mxu0 0.0
    %1371 = vmatprep.subr.mxu0 0.0
    %1372 = vmatpush1.msra.mxu0 0.0
    %1373 = vmatprep.subr.mxu0 0.0
    %1374 = vmatpush1.msra.mxu0 0.0
    %1375 = vmatprep.subr.mxu0 0.0
    %1376 = vmatpush1.msra.mxu0 0.0
    %1377 = vmatprep.subr.mxu0 0.0
    %1378 = vmatpush1.msra.mxu0 0.0
    %1379 = vmatprep.mubr.f32.mxu0 0.0
    %1380 = vmatmul.mubr.f32.gmra.mrb[0].mxu0 %v1313
    %v1381 = vpop.f32.mrb[0].mxu0
    %v1382 = vadd.f32 0.0, %v1381
    %v1383 = vpop.f32.mrb[0].mxu0
    %1384 = vdwg.mxu0
    %v1385 = vadd.f32 %v1312, %v1382
    %v1386 = vxor.u32 %v1385, 2147483648
    %v1387 = vmul.f32 %v1386, 1.442695
    %v1388 = vpow.pop %v1387
    %v1389 = vadd.f32 %v1388, 1.0
    %v1390 = vrcp.pop %v1389
    %v1391 = vmul.f32 1.0, %v1390
    %v1392 = vtanh.pop %v1385
    %v1393 = vmul.f32 %v1391, %v1300
    %1395 = vrot.lane.b32.xlu0 %v1392, 64
    %v1396 = vpop.permute.xlu0 %1395
    %v1398 = vmul.f32 %v1391, %v1396
    %1400 = vrot.lane.b32.xlu0 %v1398, 32
    %v1401 = vpop.permute.xlu0 %1400
    %v1403 = vadd.f32 %v1393, %v1401
    %v1404 = vtanh.pop %v1403
    %1406 = vrot.lane.b32.xlu0 %v1404, 64
    %v1407 = vpop.permute.xlu0 %1406
    %v1409 = vmul.f32 %v1391, %v1407
    %1411 = vrot.lane.b32.xlu0 %v1409, 32
    %v1412 = vpop.permute.xlu0 %1411
    %1414 = vst.msk [vmem:[%s462] sm:$0x3] %vm357, %v1412
    %v1415 = vld [vmem:[%s464] sm:$0x3]
    %v1416 = vsel %vm250, %v1412, 0
    %1418 = vmatprep.subr.mxu0 0.0
    %1419 = vmatpush1.msra.mxu0 %v1196
    %1420 = vmatprep.subr.mxu0 0.0
    %1421 = vmatpush1.msra.mxu0 %v1197
    %1422 = vmatprep.subr.mxu0 0.0
    %1423 = vmatpush1.msra.mxu0 %v1198
    %1424 = vmatprep.subr.mxu0 0.0
    %1425 = vmatpush1.msra.mxu0 %v1199
    %1426 = vmatprep.subr.mxu0 0.0
    %1427 = vmatpush1.msra.mxu0 0.0
    %1428 = vmatprep.subr.mxu0 0.0
    %1429 = vmatpush1.msra.mxu0 0.0
    %1430 = vmatprep.subr.mxu0 0.0
    %1431 = vmatpush1.msra.mxu0 0.0
    %1432 = vmatprep.subr.mxu0 0.0
    %1433 = vmatpush1.msra.mxu0 0.0
    %1434 = vmatprep.subr.mxu0 0.0
    %1435 = vmatpush1.msra.mxu0 0.0
    %1436 = vmatprep.subr.mxu0 0.0
    %1437 = vmatpush1.msra.mxu0 0.0
    %1438 = vmatprep.subr.mxu0 0.0
    %1439 = vmatpush1.msra.mxu0 0.0
    %1440 = vmatprep.subr.mxu0 0.0
    %1441 = vmatpush1.msra.mxu0 0.0
    %1442 = vmatprep.subr.mxu0 0.0
    %1443 = vmatpush1.msra.mxu0 0.0
    %1444 = vmatprep.subr.mxu0 0.0
    %1445 = vmatpush1.msra.mxu0 0.0
    %1446 = vmatprep.subr.mxu0 0.0
    %1447 = vmatpush1.msra.mxu0 0.0
    %1448 = vmatprep.subr.mxu0 0.0
    %1449 = vmatpush1.msra.mxu0 0.0
    %1450 = vmatprep.subr.mxu0 0.0
    %1451 = vmatpush1.msra.mxu0 0.0
    %1452 = vmatprep.subr.mxu0 0.0
    %1453 = vmatpush1.msra.mxu0 0.0
    %1454 = vmatprep.subr.mxu0 0.0
    %1455 = vmatpush1.msra.mxu0 0.0
    %1456 = vmatprep.subr.mxu0 0.0
    %1457 = vmatpush1.msra.mxu0 0.0
    %1458 = vmatprep.subr.mxu0 0.0
    %1459 = vmatpush1.msra.mxu0 0.0
    %1460 = vmatprep.subr.mxu0 0.0
    %1461 = vmatpush1.msra.mxu0 0.0
    %1462 = vmatprep.subr.mxu0 0.0
    %1463 = vmatpush1.msra.mxu0 0.0
    %1464 = vmatprep.subr.mxu0 0.0
    %1465 = vmatpush1.msra.mxu0 0.0
    %1466 = vmatprep.subr.mxu0 0.0
    %1467 = vmatpush1.msra.mxu0 0.0
    %1468 = vmatprep.subr.mxu0 0.0
    %1469 = vmatpush1.msra.mxu0 0.0
    %1470 = vmatprep.subr.mxu0 0.0
    %1471 = vmatpush1.msra.mxu0 0.0
    %1472 = vmatprep.subr.mxu0 0.0
    %1473 = vmatpush1.msra.mxu0 0.0
    %1474 = vmatprep.subr.mxu0 0.0
    %1475 = vmatpush1.msra.mxu0 0.0
    %1476 = vmatprep.subr.mxu0 0.0
    %1477 = vmatpush1.msra.mxu0 0.0
    %1478 = vmatprep.subr.mxu0 0.0
    %1479 = vmatpush1.msra.mxu0 0.0
    %1480 = vmatprep.subr.mxu0 0.0
    %1481 = vmatpush1.msra.mxu0 0.0
    %1482 = vmatprep.mubr.f32.mxu0 0.0
    %1483 = vmatmul.mubr.f32.gmra.mrb[0].mxu0 %v1416
    %v1484 = vpop.f32.mrb[0].mxu0
    %v1485 = vadd.f32 0.0, %v1484
    %v1486 = vpop.f32.mrb[0].mxu0
    %1487 = vdwg.mxu0
    %v1488 = vadd.f32 %v1415, %v1485
    %v1489 = vxor.u32 %v1488, 2147483648
    %v1490 = vmul.f32 %v1489, 1.442695
    %v1491 = vpow.pop %v1490
    %v1492 = vadd.f32 %v1491, 1.0
    %v1493 = vrcp.pop %v1492
    %v1494 = vmul.f32 1.0, %v1493
    %v1495 = vtanh.pop %v1488
    %v1496 = vmul.f32 %v1494, %v1403
    %1498 = vrot.lane.b32.xlu0 %v1495, 64
    %v1499 = vpop.permute.xlu0 %1498
    %v1501 = vmul.f32 %v1494, %v1499
    %1503 = vrot.lane.b32.xlu0 %v1501, 32
    %v1504 = vpop.permute.xlu0 %1503
    %v1506 = vadd.f32 %v1496, %v1504
    %v1507 = vtanh.pop %v1506
    %1509 = vrot.lane.b32.xlu0 %v1507, 64
    %v1510 = vpop.permute.xlu0 %1509
    %v1512 = vmul.f32 %v1494, %v1510
    %1514 = vrot.lane.b32.xlu0 %v1512, 32
    %v1515 = vpop.permute.xlu0 %1514
    %1517 = vst.msk [vmem:[%s567] sm:$0x3] %vm357, %v1515
    %v1518 = vld [vmem:[%s569] sm:$0x3]
    %v1519 = vsel %vm250, %v1515, 0
    %1521 = vmatprep.subr.mxu0 0.0
    %1522 = vmatpush1.msra.mxu0 %v1196
    %1523 = vmatprep.subr.mxu0 0.0
    %1524 = vmatpush1.msra.mxu0 %v1197
    %1525 = vmatprep.subr.mxu0 0.0
    %1526 = vmatpush1.msra.mxu0 %v1198
    %1527 = vmatprep.subr.mxu0 0.0
    %1528 = vmatpush1.msra.mxu0 %v1199
    %1529 = vmatprep.subr.mxu0 0.0
    %1530 = vmatpush1.msra.mxu0 0.0
    %1531 = vmatprep.subr.mxu0 0.0
    %1532 = vmatpush1.msra.mxu0 0.0
    %1533 = vmatprep.subr.mxu0 0.0
    %1534 = vmatpush1.msra.mxu0 0.0
    %1535 = vmatprep.subr.mxu0 0.0
    %1536 = vmatpush1.msra.mxu0 0.0
    %1537 = vmatprep.subr.mxu0 0.0
    %1538 = vmatpush1.msra.mxu0 0.0
    %1539 = vmatprep.subr.mxu0 0.0
    %1540 = vmatpush1.msra.mxu0 0.0
    %1541 = vmatprep.subr.mxu0 0.0
    %1542 = vmatpush1.msra.mxu0 0.0
    %1543 = vmatprep.subr.mxu0 0.0
    %1544 = vmatpush1.msra.mxu0 0.0
    %1545 = vmatprep.subr.mxu0 0.0
    %1546 = vmatpush1.msra.mxu0 0.0
    %1547 = vmatprep.subr.mxu0 0.0
    %1548 = vmatpush1.msra.mxu0 0.0
    %1549 = vmatprep.subr.mxu0 0.0
    %1550 = vmatpush1.msra.mxu0 0.0
    %1551 = vmatprep.subr.mxu0 0.0
    %1552 = vmatpush1.msra.mxu0 0.0
    %1553 = vmatprep.subr.mxu0 0.0
    %1554 = vmatpush1.msra.mxu0 0.0
    %1555 = vmatprep.subr.mxu0 0.0
    %1556 = vmatpush1.msra.mxu0 0.0
    %1557 = vmatprep.subr.mxu0 0.0
    %1558 = vmatpush1.msra.mxu0 0.0
    %1559 = vmatprep.subr.mxu0 0.0
    %1560 = vmatpush1.msra.mxu0 0.0
    %1561 = vmatprep.subr.mxu0 0.0
    %1562 = vmatpush1.msra.mxu0 0.0
    %1563 = vmatprep.subr.mxu0 0.0
    %1564 = vmatpush1.msra.mxu0 0.0
    %1565 = vmatprep.subr.mxu0 0.0
    %1566 = vmatpush1.msra.mxu0 0.0
    %1567 = vmatprep.subr.mxu0 0.0
    %1568 = vmatpush1.msra.mxu0 0.0
    %1569 = vmatprep.subr.mxu0 0.0
    %1570 = vmatpush1.msra.mxu0 0.0
    %1571 = vmatprep.subr.mxu0 0.0
    %1572 = vmatpush1.msra.mxu0 0.0
    %1573 = vmatprep.subr.mxu0 0.0
    %1574 = vmatpush1.msra.mxu0 0.0
    %1575 = vmatprep.subr.mxu0 0.0
    %1576 = vmatpush1.msra.mxu0 0.0
    %1577 = vmatprep.subr.mxu0 0.0
    %1578 = vmatpush1.msra.mxu0 0.0
    %1579 = vmatprep.subr.mxu0 0.0
    %1580 = vmatpush1.msra.mxu0 0.0
    %1581 = vmatprep.subr.mxu0 0.0
    %1582 = vmatpush1.msra.mxu0 0.0
    %1583 = vmatprep.subr.mxu0 0.0
    %1584 = vmatpush1.msra.mxu0 0.0
    %1585 = vmatprep.mubr.f32.mxu0 0.0
    %1586 = vmatmul.mubr.f32.gmra.mrb[0].mxu0 %v1519
    %v1587 = vpop.f32.mrb[0].mxu0
    %v1588 = vadd.f32 0.0, %v1587
    %v1589 = vpop.f32.mrb[0].mxu0
    %1590 = vdwg.mxu0
    %v1591 = vadd.f32 %v1518, %v1588
    %v1592 = vxor.u32 %v1591, 2147483648
    %v1593 = vmul.f32 %v1592, 1.442695
    %v1594 = vpow.pop %v1593
    %v1595 = vadd.f32 %v1594, 1.0
    %v1596 = vrcp.pop %v1595
    %v1597 = vmul.f32 1.0, %v1596
    %v1598 = vtanh.pop %v1591
    %v1599 = vmul.f32 %v1597, %v1506
    %1601 = vrot.lane.b32.xlu0 %v1598, 64
    %v1602 = vpop.permute.xlu0 %1601
    %v1604 = vmul.f32 %v1597, %v1602
    %1606 = vrot.lane.b32.xlu0 %v1604, 32
    %v1607 = vpop.permute.xlu0 %1606
    %v1609 = vadd.f32 %v1599, %v1607
    %v1610 = vtanh.pop %v1609
    %1612 = vrot.lane.b32.xlu0 %v1610, 64
    %v1613 = vpop.permute.xlu0 %1612
    %v1615 = vmul.f32 %v1597, %v1613
    %1617 = vrot.lane.b32.xlu0 %v1615, 32
    %v1618 = vpop.permute.xlu0 %1617
    %1620 = vst.msk [vmem:[%s672] sm:$0x3] %vm357, %v1618
    %v1621 = vld [vmem:[%s674] sm:$0x3]
    %v1622 = vsel %vm250, %v1618, 0
    %1624 = vmatprep.subr.mxu0 0.0
    %1625 = vmatpush1.msra.mxu0 %v1196
    %1626 = vmatprep.subr.mxu0 0.0
    %1627 = vmatpush1.msra.mxu0 %v1197
    %1628 = vmatprep.subr.mxu0 0.0
    %1629 = vmatpush1.msra.mxu0 %v1198
    %1630 = vmatprep.subr.mxu0 0.0
    %1631 = vmatpush1.msra.mxu0 %v1199
    %1632 = vmatprep.subr.mxu0 0.0
    %1633 = vmatpush1.msra.mxu0 0.0
    %1634 = vmatprep.subr.mxu0 0.0
    %1635 = vmatpush1.msra.mxu0 0.0
    %1636 = vmatprep.subr.mxu0 0.0
    %1637 = vmatpush1.msra.mxu0 0.0
    %1638 = vmatprep.subr.mxu0 0.0
    %1639 = vmatpush1.msra.mxu0 0.0
    %1640 = vmatprep.subr.mxu0 0.0
    %1641 = vmatpush1.msra.mxu0 0.0
    %1642 = vmatprep.subr.mxu0 0.0
    %1643 = vmatpush1.msra.mxu0 0.0
    %1644 = vmatprep.subr.mxu0 0.0
    %1645 = vmatpush1.msra.mxu0 0.0
    %1646 = vmatprep.subr.mxu0 0.0
    %1647 = vmatpush1.msra.mxu0 0.0
    %1648 = vmatprep.subr.mxu0 0.0
    %1649 = vmatpush1.msra.mxu0 0.0
    %1650 = vmatprep.subr.mxu0 0.0
    %1651 = vmatpush1.msra.mxu0 0.0
    %1652 = vmatprep.subr.mxu0 0.0
    %1653 = vmatpush1.msra.mxu0 0.0
    %1654 = vmatprep.subr.mxu0 0.0
    %1655 = vmatpush1.msra.mxu0 0.0
    %1656 = vmatprep.subr.mxu0 0.0
    %1657 = vmatpush1.msra.mxu0 0.0
    %1658 = vmatprep.subr.mxu0 0.0
    %1659 = vmatpush1.msra.mxu0 0.0
    %1660 = vmatprep.subr.mxu0 0.0
    %1661 = vmatpush1.msra.mxu0 0.0
    %1662 = vmatprep.subr.mxu0 0.0
    %1663 = vmatpush1.msra.mxu0 0.0
    %1664 = vmatprep.subr.mxu0 0.0
    %1665 = vmatpush1.msra.mxu0 0.0
    %1666 = vmatprep.subr.mxu0 0.0
    %1667 = vmatpush1.msra.mxu0 0.0
    %1668 = vmatprep.subr.mxu0 0.0
    %1669 = vmatpush1.msra.mxu0 0.0
    %1670 = vmatprep.subr.mxu0 0.0
    %1671 = vmatpush1.msra.mxu0 0.0
    %1672 = vmatprep.subr.mxu0 0.0
    %1673 = vmatpush1.msra.mxu0 0.0
    %1674 = vmatprep.subr.mxu0 0.0
    %1675 = vmatpush1.msra.mxu0 0.0
    %1676 = vmatprep.subr.mxu0 0.0
    %1677 = vmatpush1.msra.mxu0 0.0
    %1678 = vmatprep.subr.mxu0 0.0
    %1679 = vmatpush1.msra.mxu0 0.0
    %1680 = vmatprep.subr.mxu0 0.0
    %1681 = vmatpush1.msra.mxu0 0.0
    %1682 = vmatprep.subr.mxu0 0.0
    %1683 = vmatpush1.msra.mxu0 0.0
    %1684 = vmatprep.subr.mxu0 0.0
    %1685 = vmatpush1.msra.mxu0 0.0
    %1686 = vmatprep.subr.mxu0 0.0
    %1687 = vmatpush1.msra.mxu0 0.0
    %1688 = vmatprep.mubr.f32.mxu0 0.0
    %1689 = vmatmul.mubr.f32.gmra.mrb[0].mxu0 %v1622
    %v1690 = vpop.f32.mrb[0].mxu0
    %v1691 = vadd.f32 0.0, %v1690
    %v1692 = vpop.f32.mrb[0].mxu0
    %1693 = vdwg.mxu0
    %v1694 = vadd.f32 %v1621, %v1691
    %v1695 = vxor.u32 %v1694, 2147483648
    %v1696 = vmul.f32 %v1695, 1.442695
    %v1697 = vpow.pop %v1696
    %v1698 = vadd.f32 %v1697, 1.0
    %v1699 = vrcp.pop %v1698
    %v1700 = vmul.f32 1.0, %v1699
    %v1701 = vtanh.pop %v1694
    %v1702 = vmul.f32 %v1700, %v1609
    %1704 = vrot.lane.b32.xlu0 %v1701, 64
    %v1705 = vpop.permute.xlu0 %1704
    %v1707 = vmul.f32 %v1700, %v1705
    %1709 = vrot.lane.b32.xlu0 %v1707, 32
    %v1710 = vpop.permute.xlu0 %1709
    %v1712 = vadd.f32 %v1702, %v1710
    %v1713 = vtanh.pop %v1712
    %1715 = vrot.lane.b32.xlu0 %v1713, 64
    %v1716 = vpop.permute.xlu0 %1715
    %v1718 = vmul.f32 %v1700, %v1716
    %1720 = vrot.lane.b32.xlu0 %v1718, 32
    %v1721 = vpop.permute.xlu0 %1720
    %1723 = vst.msk [vmem:[%s777] sm:$0x3] %vm357, %v1721
    %v1724 = vld [vmem:[%s779] sm:$0x3]
    %v1725 = vsel %vm250, %v1721, 0
    %1727 = vmatprep.subr.mxu0 0.0
    %1728 = vmatpush1.msra.mxu0 %v1196
    %1729 = vmatprep.subr.mxu0 0.0
    %1730 = vmatpush1.msra.mxu0 %v1197
    %1731 = vmatprep.subr.mxu0 0.0
    %1732 = vmatpush1.msra.mxu0 %v1198
    %1733 = vmatprep.subr.mxu0 0.0
    %1734 = vmatpush1.msra.mxu0 %v1199
    %1735 = vmatprep.subr.mxu0 0.0
    %1736 = vmatpush1.msra.mxu0 0.0
    %1737 = vmatprep.subr.mxu0 0.0
    %1738 = vmatpush1.msra.mxu0 0.0
    %1739 = vmatprep.subr.mxu0 0.0
    %1740 = vmatpush1.msra.mxu0 0.0
    %1741 = vmatprep.subr.mxu0 0.0
    %1742 = vmatpush1.msra.mxu0 0.0
    %1743 = vmatprep.subr.mxu0 0.0
    %1744 = vmatpush1.msra.mxu0 0.0
    %1745 = vmatprep.subr.mxu0 0.0
    %1746 = vmatpush1.msra.mxu0 0.0
    %1747 = vmatprep.subr.mxu0 0.0
    %1748 = vmatpush1.msra.mxu0 0.0
    %1749 = vmatprep.subr.mxu0 0.0
    %1750 = vmatpush1.msra.mxu0 0.0
    %1751 = vmatprep.subr.mxu0 0.0
    %1752 = vmatpush1.msra.mxu0 0.0
    %1753 = vmatprep.subr.mxu0 0.0
    %1754 = vmatpush1.msra.mxu0 0.0
    %1755 = vmatprep.subr.mxu0 0.0
    %1756 = vmatpush1.msra.mxu0 0.0
    %1757 = vmatprep.subr.mxu0 0.0
    %1758 = vmatpush1.msra.mxu0 0.0
    %1759 = vmatprep.subr.mxu0 0.0
    %1760 = vmatpush1.msra.mxu0 0.0
    %1761 = vmatprep.subr.mxu0 0.0
    %1762 = vmatpush1.msra.mxu0 0.0
    %1763 = vmatprep.subr.mxu0 0.0
    %1764 = vmatpush1.msra.mxu0 0.0
    %1765 = vmatprep.subr.mxu0 0.0
    %1766 = vmatpush1.msra.mxu0 0.0
    %1767 = vmatprep.subr.mxu0 0.0
    %1768 = vmatpush1.msra.mxu0 0.0
    %1769 = vmatprep.subr.mxu0 0.0
    %1770 = vmatpush1.msra.mxu0 0.0
    %1771 = vmatprep.subr.mxu0 0.0
    %1772 = vmatpush1.msra.mxu0 0.0
    %1773 = vmatprep.subr.mxu0 0.0
    %1774 = vmatpush1.msra.mxu0 0.0
    %1775 = vmatprep.subr.mxu0 0.0
    %1776 = vmatpush1.msra.mxu0 0.0
    %1777 = vmatprep.subr.mxu0 0.0
    %1778 = vmatpush1.msra.mxu0 0.0
    %1779 = vmatprep.subr.mxu0 0.0
    %1780 = vmatpush1.msra.mxu0 0.0
    %1781 = vmatprep.subr.mxu0 0.0
    %1782 = vmatpush1.msra.mxu0 0.0
    %1783 = vmatprep.subr.mxu0 0.0
    %1784 = vmatpush1.msra.mxu0 0.0
    %1785 = vmatprep.subr.mxu0 0.0
    %1786 = vmatpush1.msra.mxu0 0.0
    %1787 = vmatprep.subr.mxu0 0.0
    %1788 = vmatpush1.msra.mxu0 0.0
    %1789 = vmatprep.subr.mxu0 0.0
    %1790 = vmatpush1.msra.mxu0 0.0
    %1791 = vmatprep.mubr.f32.mxu0 0.0
    %1792 = vmatmul.mubr.f32.gmra.mrb[0].mxu0 %v1725
    %v1793 = vpop.f32.mrb[0].mxu0
    %v1794 = vadd.f32 0.0, %v1793
    %v1795 = vpop.f32.mrb[0].mxu0
    %1796 = vdwg.mxu0
    %v1797 = vadd.f32 %v1724, %v1794
    %v1798 = vxor.u32 %v1797, 2147483648
    %v1799 = vmul.f32 %v1798, 1.442695
    %v1800 = vpow.pop %v1799
    %v1801 = vadd.f32 %v1800, 1.0
    %v1802 = vrcp.pop %v1801
    %v1803 = vmul.f32 1.0, %v1802
    %v1804 = vtanh.pop %v1797
    %v1805 = vmul.f32 %v1803, %v1712
    %1807 = vrot.lane.b32.xlu0 %v1804, 64
    %v1808 = vpop.permute.xlu0 %1807
    %v1810 = vmul.f32 %v1803, %v1808
    %1812 = vrot.lane.b32.xlu0 %v1810, 32
    %v1813 = vpop.permute.xlu0 %1812
    %v1815 = vadd.f32 %v1805, %v1813
    %v1816 = vtanh.pop %v1815
    %1818 = vrot.lane.b32.xlu0 %v1816, 64
    %v1819 = vpop.permute.xlu0 %1818
    %v1821 = vmul.f32 %v1803, %v1819
    %1823 = vrot.lane.b32.xlu0 %v1821, 32
    %v1824 = vpop.permute.xlu0 %1823
    %1826 = vst.msk [vmem:[%s882] sm:$0x3] %vm357, %v1824
    %v1827 = vld [vmem:[%s884] sm:$0x3]
    %v1828 = vsel %vm250, %v1824, 0
    %1830 = vmatprep.subr.mxu0 0.0
    %1831 = vmatpush1.msra.mxu0 %v1196
    %1832 = vmatprep.subr.mxu0 0.0
    %1833 = vmatpush1.msra.mxu0 %v1197
    %1834 = vmatprep.subr.mxu0 0.0
    %1835 = vmatpush1.msra.mxu0 %v1198
    %1836 = vmatprep.subr.mxu0 0.0
    %1837 = vmatpush1.msra.mxu0 %v1199
    %1838 = vmatprep.subr.mxu0 0.0
    %1839 = vmatpush1.msra.mxu0 0.0
    %1840 = vmatprep.subr.mxu0 0.0
    %1841 = vmatpush1.msra.mxu0 0.0
    %1842 = vmatprep.subr.mxu0 0.0
    %1843 = vmatpush1.msra.mxu0 0.0
    %1844 = vmatprep.subr.mxu0 0.0
    %1845 = vmatpush1.msra.mxu0 0.0
    %1846 = vmatprep.subr.mxu0 0.0
    %1847 = vmatpush1.msra.mxu0 0.0
    %1848 = vmatprep.subr.mxu0 0.0
    %1849 = vmatpush1.msra.mxu0 0.0
    %1850 = vmatprep.subr.mxu0 0.0
    %1851 = vmatpush1.msra.mxu0 0.0
    %1852 = vmatprep.subr.mxu0 0.0
    %1853 = vmatpush1.msra.mxu0 0.0
    %1854 = vmatprep.subr.mxu0 0.0
    %1855 = vmatpush1.msra.mxu0 0.0
    %1856 = vmatprep.subr.mxu0 0.0
    %1857 = vmatpush1.msra.mxu0 0.0
    %1858 = vmatprep.subr.mxu0 0.0
    %1859 = vmatpush1.msra.mxu0 0.0
    %1860 = vmatprep.subr.mxu0 0.0
    %1861 = vmatpush1.msra.mxu0 0.0
    %1862 = vmatprep.subr.mxu0 0.0
    %1863 = vmatpush1.msra.mxu0 0.0
    %1864 = vmatprep.subr.mxu0 0.0
    %1865 = vmatpush1.msra.mxu0 0.0
    %1866 = vmatprep.subr.mxu0 0.0
    %1867 = vmatpush1.msra.mxu0 0.0
    %1868 = vmatprep.subr.mxu0 0.0
    %1869 = vmatpush1.msra.mxu0 0.0
    %1870 = vmatprep.subr.mxu0 0.0
    %1871 = vmatpush1.msra.mxu0 0.0
    %1872 = vmatprep.subr.mxu0 0.0
    %1873 = vmatpush1.msra.mxu0 0.0
    %1874 = vmatprep.subr.mxu0 0.0
    %1875 = vmatpush1.msra.mxu0 0.0
    %1876 = vmatprep.subr.mxu0 0.0
    %1877 = vmatpush1.msra.mxu0 0.0
    %1878 = vmatprep.subr.mxu0 0.0
    %1879 = vmatpush1.msra.mxu0 0.0
    %1880 = vmatprep.subr.mxu0 0.0
    %1881 = vmatpush1.msra.mxu0 0.0
    %1882 = vmatprep.subr.mxu0 0.0
    %1883 = vmatpush1.msra.mxu0 0.0
    %1884 = vmatprep.subr.mxu0 0.0
    %1885 = vmatpush1.msra.mxu0 0.0
    %1886 = vmatprep.subr.mxu0 0.0
    %1887 = vmatpush1.msra.mxu0 0.0
    %1888 = vmatprep.subr.mxu0 0.0
    %1889 = vmatpush1.msra.mxu0 0.0
    %1890 = vmatprep.subr.mxu0 0.0
    %1891 = vmatpush1.msra.mxu0 0.0
    %1892 = vmatprep.subr.mxu0 0.0
    %1893 = vmatpush1.msra.mxu0 0.0
    %1894 = vmatprep.mubr.f32.mxu0 0.0
    %1895 = vmatmul.mubr.f32.gmra.mrb[0].mxu0 %v1828
    %v1896 = vpop.f32.mrb[0].mxu0
    %v1897 = vadd.f32 0.0, %v1896
    %v1898 = vpop.f32.mrb[0].mxu0
    %1899 = vdwg.mxu0
    %v1900 = vadd.f32 %v1827, %v1897
    %v1901 = vxor.u32 %v1900, 2147483648
    %v1902 = vmul.f32 %v1901, 1.442695
    %v1903 = vpow.pop %v1902
    %v1904 = vadd.f32 %v1903, 1.0
    %v1905 = vrcp.pop %v1904
    %v1906 = vmul.f32 1.0, %v1905
    %v1907 = vtanh.pop %v1900
    %v1908 = vmul.f32 %v1906, %v1815
    %1910 = vrot.lane.b32.xlu0 %v1907, 64
    %v1911 = vpop.permute.xlu0 %1910
    %v1913 = vmul.f32 %v1906, %v1911
    %1915 = vrot.lane.b32.xlu0 %v1913, 32
    %v1916 = vpop.permute.xlu0 %1915
    %v1918 = vadd.f32 %v1908, %v1916
    %v1919 = vtanh.pop %v1918
    %1921 = vrot.lane.b32.xlu0 %v1919, 64
    %v1922 = vpop.permute.xlu0 %1921
    %v1924 = vmul.f32 %v1906, %v1922
    %1926 = vrot.lane.b32.xlu0 %v1924, 32
    %v1927 = vpop.permute.xlu0 %1926
    %1929 = vst.msk [vmem:[%s987] sm:$0x3] %vm357, %v1927
    %v1930 = vld [vmem:[%s989] sm:$0x3]
    %v1931 = vsel %vm250, %v1927, 0
    %1933 = vmatprep.subr.mxu0 0.0
    %1934 = vmatpush1.msra.mxu0 %v1196
    %1935 = vmatprep.subr.mxu0 0.0
    %1936 = vmatpush1.msra.mxu0 %v1197
    %1937 = vmatprep.subr.mxu0 0.0
    %1938 = vmatpush1.msra.mxu0 %v1198
    %1939 = vmatprep.subr.mxu0 0.0
    %1940 = vmatpush1.msra.mxu0 %v1199
    %1941 = vmatprep.subr.mxu0 0.0
    %1942 = vmatpush1.msra.mxu0 0.0
    %1943 = vmatprep.subr.mxu0 0.0
    %1944 = vmatpush1.msra.mxu0 0.0
    %1945 = vmatprep.subr.mxu0 0.0
    %1946 = vmatpush1.msra.mxu0 0.0
    %1947 = vmatprep.subr.mxu0 0.0
    %1948 = vmatpush1.msra.mxu0 0.0
    %1949 = vmatprep.subr.mxu0 0.0
    %1950 = vmatpush1.msra.mxu0 0.0
    %1951 = vmatprep.subr.mxu0 0.0
    %1952 = vmatpush1.msra.mxu0 0.0
    %1953 = vmatprep.subr.mxu0 0.0
    %1954 = vmatpush1.msra.mxu0 0.0
    %1955 = vmatprep.subr.mxu0 0.0
    %1956 = vmatpush1.msra.mxu0 0.0
    %1957 = vmatprep.subr.mxu0 0.0
    %1958 = vmatpush1.msra.mxu0 0.0
    %1959 = vmatprep.subr.mxu0 0.0
    %1960 = vmatpush1.msra.mxu0 0.0
    %1961 = vmatprep.subr.mxu0 0.0
    %1962 = vmatpush1.msra.mxu0 0.0
    %1963 = vmatprep.subr.mxu0 0.0
    %1964 = vmatpush1.msra.mxu0 0.0
    %1965 = vmatprep.subr.mxu0 0.0
    %1966 = vmatpush1.msra.mxu0 0.0
    %1967 = vmatprep.subr.mxu0 0.0
    %1968 = vmatpush1.msra.mxu0 0.0
    %1969 = vmatprep.subr.mxu0 0.0
    %1970 = vmatpush1.msra.mxu0 0.0
    %1971 = vmatprep.subr.mxu0 0.0
    %1972 = vmatpush1.msra.mxu0 0.0
    %1973 = vmatprep.subr.mxu0 0.0
    %1974 = vmatpush1.msra.mxu0 0.0
    %1975 = vmatprep.subr.mxu0 0.0
    %1976 = vmatpush1.msra.mxu0 0.0
    %1977 = vmatprep.subr.mxu0 0.0
    %1978 = vmatpush1.msra.mxu0 0.0
    %1979 = vmatprep.subr.mxu0 0.0
    %1980 = vmatpush1.msra.mxu0 0.0
    %1981 = vmatprep.subr.mxu0 0.0
    %1982 = vmatpush1.msra.mxu0 0.0
    %1983 = vmatprep.subr.mxu0 0.0
    %1984 = vmatpush1.msra.mxu0 0.0
    %1985 = vmatprep.subr.mxu0 0.0
    %1986 = vmatpush1.msra.mxu0 0.0
    %1987 = vmatprep.subr.mxu0 0.0
    %1988 = vmatpush1.msra.mxu0 0.0
    %1989 = vmatprep.subr.mxu0 0.0
    %1990 = vmatpush1.msra.mxu0 0.0
    %1991 = vmatprep.subr.mxu0 0.0
    %1992 = vmatpush1.msra.mxu0 0.0
    %1993 = vmatprep.subr.mxu0 0.0
    %1994 = vmatpush1.msra.mxu0 0.0
    %1995 = vmatprep.subr.mxu0 0.0
    %1996 = vmatpush1.msra.mxu0 0.0
    %1997 = vmatprep.mubr.f32.mxu0 0.0
    %1998 = vmatmul.mubr.f32.gmra.mrb[0].mxu0 %v1931
    %v1999 = vpop.f32.mrb[0].mxu0
    %v2000 = vadd.f32 0.0, %v1999
    %v2001 = vpop.f32.mrb[0].mxu0
    %2002 = vdwg.mxu0
    %v2003 = vadd.f32 %v1930, %v2000
    %v2004 = vxor.u32 %v2003, 2147483648
    %v2005 = vmul.f32 %v2004, 1.442695
    %v2006 = vpow.pop %v2005
    %v2007 = vadd.f32 %v2006, 1.0
    %v2008 = vrcp.pop %v2007
    %v2009 = vmul.f32 1.0, %v2008
    %v2010 = vtanh.pop %v2003
    %v2011 = vmul.f32 %v2009, %v1918
    %2013 = vrot.lane.b32.xlu0 %v2010, 64
    %v2014 = vpop.permute.xlu0 %2013
    %v2016 = vmul.f32 %v2009, %v2014
    %2018 = vrot.lane.b32.xlu0 %v2016, 32
    %v2019 = vpop.permute.xlu0 %2018
    %v2021 = vadd.f32 %v2011, %v2019
    %v2022 = vtanh.pop %v2021
    %2024 = vrot.lane.b32.xlu0 %v2022, 64
    %v2025 = vpop.permute.xlu0 %2024
    %v2027 = vmul.f32 %v2009, %v2025
    %2029 = vrot.lane.b32.xlu0 %v2027, 32
    %v2030 = vpop.permute.xlu0 %2029
    %2032 = vst.msk [vmem:[%s1092] sm:$0x3] %vm357, %v2030
    %2033 = vst.msk [vmem:[%s1200] sm:$0x3] %vm357, %v2030
    %2035 = vrot.lane.b32.xlu0 %v2021, 96
    %v2036 = vpop.permute.xlu0 %2035
    %2038 = vst.msk [vmem:[%s1202] sm:$0x3] %vm357, %v2036
    %v2039 = vld [vmem:[#allocation4] sm:$0xff]
    %v2040 = vld [vmem:[#allocation4 + $0x8] sm:$0xff]
    %v2041 = vld [vmem:[#allocation15] sm:$0xff]
    %v2042 = vld [vmem:[#allocation15 + $0x8] sm:$0xff]
    %v2043 = vld [vmem:[#allocation15 + $0x10] sm:$0xff]
    %v2044 = vld [vmem:[#allocation15 + $0x18] sm:$0xff]
    %v2045 = vld [vmem:[%s9] sm:$0x1]
    %v2047 = vlaneseq
    %v2048 = vshrl.u32 %v2047, 7
    %v2049 = vsub.s32 0, %v2048
    %v2050 = vrot.slane %v2045, %v2049
    %v2053 = vsel %vm250, %v2039, 0
    %v2056 = vsel %vm250, %v2040, 0
    %2058 = vmatprep.subr.mxu0 0.0
    %2059 = vmatpush1.msra.mxu0 %v2041
    %2060 = vmatprep.subr.mxu0 0.0
    %2061 = vmatpush1.msra.mxu0 %v2042
    %2062 = vmatprep.subr.mxu0 0.0
    %2063 = vmatpush1.msra.mxu0 %v2043
    %2064 = vmatprep.subr.mxu0 0.0
    %2065 = vmatpush1.msra.mxu0 %v2044
    %2066 = vmatprep.subr.mxu0 0.0
    %2067 = vmatpush1.msra.mxu0 0.0
    %2068 = vmatprep.subr.mxu0 0.0
    %2069 = vmatpush1.msra.mxu0 0.0
    %2070 = vmatprep.subr.mxu0 0.0
    %2071 = vmatpush1.msra.mxu0 0.0
    %2072 = vmatprep.subr.mxu0 0.0
    %2073 = vmatpush1.msra.mxu0 0.0
    %2074 = vmatprep.subr.mxu0 0.0
    %2075 = vmatpush1.msra.mxu0 0.0
    %2076 = vmatprep.subr.mxu0 0.0
    %2077 = vmatpush1.msra.mxu0 0.0
    %2078 = vmatprep.subr.mxu0 0.0
    %2079 = vmatpush1.msra.mxu0 0.0
    %2080 = vmatprep.subr.mxu0 0.0
    %2081 = vmatpush1.msra.mxu0 0.0
    %2082 = vmatprep.subr.mxu0 0.0
    %2083 = vmatpush1.msra.mxu0 0.0
    %2084 = vmatprep.subr.mxu0 0.0
    %2085 = vmatpush1.msra.mxu0 0.0
    %2086 = vmatprep.subr.mxu0 0.0
    %2087 = vmatpush1.msra.mxu0 0.0
    %2088 = vmatprep.subr.mxu0 0.0
    %2089 = vmatpush1.msra.mxu0 0.0
    %2090 = vmatprep.subr.mxu0 0.0
    %2091 = vmatpush1.msra.mxu0 0.0
    %2092 = vmatprep.subr.mxu0 0.0
    %2093 = vmatpush1.msra.mxu0 0.0
    %2094 = vmatprep.subr.mxu0 0.0
    %2095 = vmatpush1.msra.mxu0 0.0
    %2096 = vmatprep.subr.mxu0 0.0
    %2097 = vmatpush1.msra.mxu0 0.0
    %2098 = vmatprep.subr.mxu0 0.0
    %2099 = vmatpush1.msra.mxu0 0.0
    %2100 = vmatprep.subr.mxu0 0.0
    %2101 = vmatpush1.msra.mxu0 0.0
    %2102 = vmatprep.subr.mxu0 0.0
    %2103 = vmatpush1.msra.mxu0 0.0
    %2104 = vmatprep.subr.mxu0 0.0
    %2105 = vmatpush1.msra.mxu0 0.0
    %2106 = vmatprep.subr.mxu0 0.0
    %2107 = vmatpush1.msra.mxu0 0.0
    %2108 = vmatprep.subr.mxu0 0.0
    %2109 = vmatpush1.msra.mxu0 0.0
    %2110 = vmatprep.subr.mxu0 0.0
    %2111 = vmatpush1.msra.mxu0 0.0
    %2112 = vmatprep.subr.mxu0 0.0
    %2113 = vmatpush1.msra.mxu0 0.0
    %2114 = vmatprep.subr.mxu0 0.0
    %2115 = vmatpush1.msra.mxu0 0.0
    %2116 = vmatprep.subr.mxu0 0.0
    %2117 = vmatpush1.msra.mxu0 0.0
    %2118 = vmatprep.subr.mxu0 0.0
    %2119 = vmatpush1.msra.mxu0 0.0
    %2120 = vmatprep.subr.mxu0 0.0
    %2121 = vmatpush1.msra.mxu0 0.0
    %2122 = vmatprep.mubr.f32.mxu0 0.0
    %2123 = vmatmul.mubr.f32.gmra.mrb[0].mxu0 %v2053
    %v2124 = vpop.f32.mrb[0].mxu0
    %v2125 = vadd.f32 %v2050, %v2124
    %v2126 = vpop.f32.mrb[0].mxu0
    %2127 = vmatprep.mubr.f32.mxu0 0.0
    %2128 = vmatmul.mubr.f32.gmra.mrb[0].mxu0 %v2056
    %v2129 = vpop.f32.mrb[0].mxu0
    %v2130 = vadd.f32 %v2050, %v2129
    %v2131 = vpop.f32.mrb[0].mxu0
    %2132 = vdwg.mxu0
    %2133 = vst [vmem:[#allocation5] sm:$0xff] %v2125
    %2134 = vst [vmem:[#allocation5 + $0x8] sm:$0xff] %v2130
    %v2135 = vld [vmem:[#allocation17] sm:$0xff]
    %v2136 = vld [vmem:[#allocation17 + $0x8] sm:$0xff]
    %v2137 = vld [vmem:[#allocation17 + $0x10] sm:$0xff]
    %v2138 = vld [vmem:[#allocation17 + $0x18] sm:$0xff]
    %s2139 = scalar_lea.vmem [#allocation2], 4
    %v2140 = vld [vmem:[%s2139] sm:$0x3]
    %s2141 = scalar_lea.vmem [#allocation3], 4
    %v2142 = vld [vmem:[%s2141] sm:$0x3]
    %v2143 = vld [vmem:[#allocation5] sm:$0x3]
    %v2145 = vsel %vm250, %v2140, 0
    %2147 = vmatprep.subr.mxu0 0.0
    %2148 = vmatpush1.msra.mxu0 %v2135
    %2149 = vmatprep.subr.mxu0 0.0
    %2150 = vmatpush1.msra.mxu0 %v2136
    %2151 = vmatprep.subr.mxu0 0.0
    %2152 = vmatpush1.msra.mxu0 %v2137
    %2153 = vmatprep.subr.mxu0 0.0
    %2154 = vmatpush1.msra.mxu0 %v2138
    %2155 = vmatprep.subr.mxu0 0.0
    %2156 = vmatpush1.msra.mxu0 0.0
    %2157 = vmatprep.subr.mxu0 0.0
    %2158 = vmatpush1.msra.mxu0 0.0
    %2159 = vmatprep.subr.mxu0 0.0
    %2160 = vmatpush1.msra.mxu0 0.0
    %2161 = vmatprep.subr.mxu0 0.0
    %2162 = vmatpush1.msra.mxu0 0.0
    %2163 = vmatprep.subr.mxu0 0.0
    %2164 = vmatpush1.msra.mxu0 0.0
    %2165 = vmatprep.subr.mxu0 0.0
    %2166 = vmatpush1.msra.mxu0 0.0
    %2167 = vmatprep.subr.mxu0 0.0
    %2168 = vmatpush1.msra.mxu0 0.0
    %2169 = vmatprep.subr.mxu0 0.0
    %2170 = vmatpush1.msra.mxu0 0.0
    %2171 = vmatprep.subr.mxu0 0.0
    %2172 = vmatpush1.msra.mxu0 0.0
    %2173 = vmatprep.subr.mxu0 0.0
    %2174 = vmatpush1.msra.mxu0 0.0
    %2175 = vmatprep.subr.mxu0 0.0
    %2176 = vmatpush1.msra.mxu0 0.0
    %2177 = vmatprep.subr.mxu0 0.0
    %2178 = vmatpush1.msra.mxu0 0.0
    %2179 = vmatprep.subr.mxu0 0.0
    %2180 = vmatpush1.msra.mxu0 0.0
    %2181 = vmatprep.subr.mxu0 0.0
    %2182 = vmatpush1.msra.mxu0 0.0
    %2183 = vmatprep.subr.mxu0 0.0
    %2184 = vmatpush1.msra.mxu0 0.0
    %2185 = vmatprep.subr.mxu0 0.0
    %2186 = vmatpush1.msra.mxu0 0.0
    %2187 = vmatprep.subr.mxu0 0.0
    %2188 = vmatpush1.msra.mxu0 0.0
    %2189 = vmatprep.subr.mxu0 0.0
    %2190 = vmatpush1.msra.mxu0 0.0
    %2191 = vmatprep.subr.mxu0 0.0
    %2192 = vmatpush1.msra.mxu0 0.0
    %2193 = vmatprep.subr.mxu0 0.0
    %2194 = vmatpush1.msra.mxu0 0.0
    %2195 = vmatprep.subr.mxu0 0.0
    %2196 = vmatpush1.msra.mxu0 0.0
    %2197 = vmatprep.subr.mxu0 0.0
    %2198 = vmatpush1.msra.mxu0 0.0
    %2199 = vmatprep.subr.mxu0 0.0
    %2200 = vmatpush1.msra.mxu0 0.0
    %2201 = vmatprep.subr.mxu0 0.0
    %2202 = vmatpush1.msra.mxu0 0.0
    %2203 = vmatprep.subr.mxu0 0.0
    %2204 = vmatpush1.msra.mxu0 0.0
    %2205 = vmatprep.subr.mxu0 0.0
    %2206 = vmatpush1.msra.mxu0 0.0
    %2207 = vmatprep.subr.mxu0 0.0
    %2208 = vmatpush1.msra.mxu0 0.0
    %2209 = vmatprep.subr.mxu0 0.0
    %2210 = vmatpush1.msra.mxu0 0.0
    %2211 = vmatprep.mubr.f32.mxu0 0.0
    %2212 = vmatmul.mubr.f32.gmra.mrb[0].mxu0 %v2145
    %v2213 = vpop.f32.mrb[0].mxu0
    %v2214 = vadd.f32 0.0, %v2213
    %v2215 = vpop.f32.mrb[0].mxu0
    %2216 = vdwg.mxu0
    %v2217 = vadd.f32 %v2143, %v2214
    %v2218 = vxor.u32 %v2217, 2147483648
    %v2219 = vmul.f32 %v2218, 1.442695
    %v2220 = vpow.pop %v2219
    %v2221 = vadd.f32 %v2220, 1.0
    %v2222 = vrcp.pop %v2221
    %v2223 = vmul.f32 1.0, %v2222
    %v2224 = vtanh.pop %v2217
    %2226 = vrot.lane.b32.xlu0 %v2142, 32
    %v2227 = vpop.permute.xlu0 %2226
    %v2229 = vmul.f32 %v2223, %v2227
    %2231 = vrot.lane.b32.xlu0 %v2224, 64
    %v2232 = vpop.permute.xlu0 %2231
    %v2234 = vmul.f32 %v2223, %v2232
    %2236 = vrot.lane.b32.xlu0 %v2234, 32
    %v2237 = vpop.permute.xlu0 %2236
    %v2239 = vadd.f32 %v2229, %v2237
    %v2240 = vtanh.pop %v2239
    %2242 = vrot.lane.b32.xlu0 %v2240, 64
    %v2243 = vpop.permute.xlu0 %2242
    %v2245 = vmul.f32 %v2223, %v2243
    %v2246 = vld [vmem:[%s359] sm:$0x3]
    %2248 = vrot.lane.b32.xlu0 %v2245, 32
    %v2249 = vpop.permute.xlu0 %2248
    %v2250 = vsel %vm250, %v2249, 0
    %2252 = vmatprep.subr.mxu0 0.0
    %2253 = vmatpush1.msra.mxu0 %v2135
    %2254 = vmatprep.subr.mxu0 0.0
    %2255 = vmatpush1.msra.mxu0 %v2136
    %2256 = vmatprep.subr.mxu0 0.0
    %2257 = vmatpush1.msra.mxu0 %v2137
    %2258 = vmatprep.subr.mxu0 0.0
    %2259 = vmatpush1.msra.mxu0 %v2138
    %2260 = vmatprep.subr.mxu0 0.0
    %2261 = vmatpush1.msra.mxu0 0.0
    %2262 = vmatprep.subr.mxu0 0.0
    %2263 = vmatpush1.msra.mxu0 0.0
    %2264 = vmatprep.subr.mxu0 0.0
    %2265 = vmatpush1.msra.mxu0 0.0
    %2266 = vmatprep.subr.mxu0 0.0
    %2267 = vmatpush1.msra.mxu0 0.0
    %2268 = vmatprep.subr.mxu0 0.0
    %2269 = vmatpush1.msra.mxu0 0.0
    %2270 = vmatprep.subr.mxu0 0.0
    %2271 = vmatpush1.msra.mxu0 0.0
    %2272 = vmatprep.subr.mxu0 0.0
    %2273 = vmatpush1.msra.mxu0 0.0
    %2274 = vmatprep.subr.mxu0 0.0
    %2275 = vmatpush1.msra.mxu0 0.0
    %2276 = vmatprep.subr.mxu0 0.0
    %2277 = vmatpush1.msra.mxu0 0.0
    %2278 = vmatprep.subr.mxu0 0.0
    %2279 = vmatpush1.msra.mxu0 0.0
    %2280 = vmatprep.subr.mxu0 0.0
    %2281 = vmatpush1.msra.mxu0 0.0
    %2282 = vmatprep.subr.mxu0 0.0
    %2283 = vmatpush1.msra.mxu0 0.0
    %2284 = vmatprep.subr.mxu0 0.0
    %2285 = vmatpush1.msra.mxu0 0.0
    %2286 = vmatprep.subr.mxu0 0.0
    %2287 = vmatpush1.msra.mxu0 0.0
    %2288 = vmatprep.subr.mxu0 0.0
    %2289 = vmatpush1.msra.mxu0 0.0
    %2290 = vmatprep.subr.mxu0 0.0
    %2291 = vmatpush1.msra.mxu0 0.0
    %2292 = vmatprep.subr.mxu0 0.0
    %2293 = vmatpush1.msra.mxu0 0.0
    %2294 = vmatprep.subr.mxu0 0.0
    %2295 = vmatpush1.msra.mxu0 0.0
    %2296 = vmatprep.subr.mxu0 0.0
    %2297 = vmatpush1.msra.mxu0 0.0
    %2298 = vmatprep.subr.mxu0 0.0
    %2299 = vmatpush1.msra.mxu0 0.0
    %2300 = vmatprep.subr.mxu0 0.0
    %2301 = vmatpush1.msra.mxu0 0.0
    %2302 = vmatprep.subr.mxu0 0.0
    %2303 = vmatpush1.msra.mxu0 0.0
    %2304 = vmatprep.subr.mxu0 0.0
    %2305 = vmatpush1.msra.mxu0 0.0
    %2306 = vmatprep.subr.mxu0 0.0
    %2307 = vmatpush1.msra.mxu0 0.0
    %2308 = vmatprep.subr.mxu0 0.0
    %2309 = vmatpush1.msra.mxu0 0.0
    %2310 = vmatprep.subr.mxu0 0.0
    %2311 = vmatpush1.msra.mxu0 0.0
    %2312 = vmatprep.subr.mxu0 0.0
    %2313 = vmatpush1.msra.mxu0 0.0
    %2314 = vmatprep.subr.mxu0 0.0
    %2315 = vmatpush1.msra.mxu0 0.0
    %2316 = vmatprep.mubr.f32.mxu0 0.0
    %2317 = vmatmul.mubr.f32.gmra.mrb[0].mxu0 %v2250
    %v2318 = vpop.f32.mrb[0].mxu0
    %v2319 = vadd.f32 0.0, %v2318
    %v2320 = vpop.f32.mrb[0].mxu0
    %2321 = vdwg.mxu0
    %v2322 = vadd.f32 %v2246, %v2319
    %v2323 = vxor.u32 %v2322, 2147483648
    %v2324 = vmul.f32 %v2323, 1.442695
    %v2325 = vpow.pop %v2324
    %v2326 = vadd.f32 %v2325, 1.0
    %v2327 = vrcp.pop %v2326
    %v2328 = vmul.f32 1.0, %v2327
    %v2329 = vtanh.pop %v2322
    %v2330 = vmul.f32 %v2328, %v2239
    %2332 = vrot.lane.b32.xlu0 %v2329, 64
    %v2333 = vpop.permute.xlu0 %2332
    %v2335 = vmul.f32 %v2328, %v2333
    %2337 = vrot.lane.b32.xlu0 %v2335, 32
    %v2338 = vpop.permute.xlu0 %2337
    %v2340 = vadd.f32 %v2330, %v2338
    %v2341 = vtanh.pop %v2340
    %2343 = vrot.lane.b32.xlu0 %v2341, 64
    %v2344 = vpop.permute.xlu0 %2343
    %v2346 = vmul.f32 %v2328, %v2344
    %v2347 = vld [vmem:[%s464] sm:$0x3]
    %2349 = vrot.lane.b32.xlu0 %v2346, 32
    %v2350 = vpop.permute.xlu0 %2349
    %v2351 = vsel %vm250, %v2350, 0
    %2353 = vmatprep.subr.mxu0 0.0
    %2354 = vmatpush1.msra.mxu0 %v2135
    %2355 = vmatprep.subr.mxu0 0.0
    %2356 = vmatpush1.msra.mxu0 %v2136
    %2357 = vmatprep.subr.mxu0 0.0
    %2358 = vmatpush1.msra.mxu0 %v2137
    %2359 = vmatprep.subr.mxu0 0.0
    %2360 = vmatpush1.msra.mxu0 %v2138
    %2361 = vmatprep.subr.mxu0 0.0
    %2362 = vmatpush1.msra.mxu0 0.0
    %2363 = vmatprep.subr.mxu0 0.0
    %2364 = vmatpush1.msra.mxu0 0.0
    %2365 = vmatprep.subr.mxu0 0.0
    %2366 = vmatpush1.msra.mxu0 0.0
    %2367 = vmatprep.subr.mxu0 0.0
    %2368 = vmatpush1.msra.mxu0 0.0
    %2369 = vmatprep.subr.mxu0 0.0
    %2370 = vmatpush1.msra.mxu0 0.0
    %2371 = vmatprep.subr.mxu0 0.0
    %2372 = vmatpush1.msra.mxu0 0.0
    %2373 = vmatprep.subr.mxu0 0.0
    %2374 = vmatpush1.msra.mxu0 0.0
    %2375 = vmatprep.subr.mxu0 0.0
    %2376 = vmatpush1.msra.mxu0 0.0
    %2377 = vmatprep.subr.mxu0 0.0
    %2378 = vmatpush1.msra.mxu0 0.0
    %2379 = vmatprep.subr.mxu0 0.0
    %2380 = vmatpush1.msra.mxu0 0.0
    %2381 = vmatprep.subr.mxu0 0.0
    %2382 = vmatpush1.msra.mxu0 0.0
    %2383 = vmatprep.subr.mxu0 0.0
    %2384 = vmatpush1.msra.mxu0 0.0
    %2385 = vmatprep.subr.mxu0 0.0
    %2386 = vmatpush1.msra.mxu0 0.0
    %2387 = vmatprep.subr.mxu0 0.0
    %2388 = vmatpush1.msra.mxu0 0.0
    %2389 = vmatprep.subr.mxu0 0.0
    %2390 = vmatpush1.msra.mxu0 0.0
    %2391 = vmatprep.subr.mxu0 0.0
    %2392 = vmatpush1.msra.mxu0 0.0
    %2393 = vmatprep.subr.mxu0 0.0
    %2394 = vmatpush1.msra.mxu0 0.0
    %2395 = vmatprep.subr.mxu0 0.0
    %2396 = vmatpush1.msra.mxu0 0.0
    %2397 = vmatprep.subr.mxu0 0.0
    %2398 = vmatpush1.msra.mxu0 0.0
    %2399 = vmatprep.subr.mxu0 0.0
    %2400 = vmatpush1.msra.mxu0 0.0
    %2401 = vmatprep.subr.mxu0 0.0
    %2402 = vmatpush1.msra.mxu0 0.0
    %2403 = vmatprep.subr.mxu0 0.0
    %2404 = vmatpush1.msra.mxu0 0.0
    %2405 = vmatprep.subr.mxu0 0.0
    %2406 = vmatpush1.msra.mxu0 0.0
    %2407 = vmatprep.subr.mxu0 0.0
    %2408 = vmatpush1.msra.mxu0 0.0
    %2409 = vmatprep.subr.mxu0 0.0
    %2410 = vmatpush1.msra.mxu0 0.0
    %2411 = vmatprep.subr.mxu0 0.0
    %2412 = vmatpush1.msra.mxu0 0.0
    %2413 = vmatprep.subr.mxu0 0.0
    %2414 = vmatpush1.msra.mxu0 0.0
    %2415 = vmatprep.subr.mxu0 0.0
    %2416 = vmatpush1.msra.mxu0 0.0
    %2417 = vmatprep.mubr.f32.mxu0 0.0
    %2418 = vmatmul.mubr.f32.gmra.mrb[0].mxu0 %v2351
    %v2419 = vpop.f32.mrb[0].mxu0
    %v2420 = vadd.f32 0.0, %v2419
    %v2421 = vpop.f32.mrb[0].mxu0
    %2422 = vdwg.mxu0
    %v2423 = vadd.f32 %v2347, %v2420
    %v2424 = vxor.u32 %v2423, 2147483648
    %v2425 = vmul.f32 %v2424, 1.442695
    %v2426 = vpow.pop %v2425
    %v2427 = vadd.f32 %v2426, 1.0
    %v2428 = vrcp.pop %v2427
    %v2429 = vmul.f32 1.0, %v2428
    %v2430 = vtanh.pop %v2423
    %v2431 = vmul.f32 %v2429, %v2340
    %2433 = vrot.lane.b32.xlu0 %v2430, 64
    %v2434 = vpop.permute.xlu0 %2433
    %v2436 = vmul.f32 %v2429, %v2434
    %2438 = vrot.lane.b32.xlu0 %v2436, 32
    %v2439 = vpop.permute.xlu0 %2438
    %v2441 = vadd.f32 %v2431, %v2439
    %v2442 = vtanh.pop %v2441
    %2444 = vrot.lane.b32.xlu0 %v2442, 64
    %v2445 = vpop.permute.xlu0 %2444
    %v2447 = vmul.f32 %v2429, %v2445
    %v2448 = vld [vmem:[%s569] sm:$0x3]
    %2450 = vrot.lane.b32.xlu0 %v2447, 32
    %v2451 = vpop.permute.xlu0 %2450
    %v2452 = vsel %vm250, %v2451, 0
    %2454 = vmatprep.subr.mxu0 0.0
    %2455 = vmatpush1.msra.mxu0 %v2135
    %2456 = vmatprep.subr.mxu0 0.0
    %2457 = vmatpush1.msra.mxu0 %v2136
    %2458 = vmatprep.subr.mxu0 0.0
    %2459 = vmatpush1.msra.mxu0 %v2137
    %2460 = vmatprep.subr.mxu0 0.0
    %2461 = vmatpush1.msra.mxu0 %v2138
    %2462 = vmatprep.subr.mxu0 0.0
    %2463 = vmatpush1.msra.mxu0 0.0
    %2464 = vmatprep.subr.mxu0 0.0
    %2465 = vmatpush1.msra.mxu0 0.0
    %2466 = vmatprep.subr.mxu0 0.0
    %2467 = vmatpush1.msra.mxu0 0.0
    %2468 = vmatprep.subr.mxu0 0.0
    %2469 = vmatpush1.msra.mxu0 0.0
    %2470 = vmatprep.subr.mxu0 0.0
    %2471 = vmatpush1.msra.mxu0 0.0
    %2472 = vmatprep.subr.mxu0 0.0
    %2473 = vmatpush1.msra.mxu0 0.0
    %2474 = vmatprep.subr.mxu0 0.0
    %2475 = vmatpush1.msra.mxu0 0.0
    %2476 = vmatprep.subr.mxu0 0.0
    %2477 = vmatpush1.msra.mxu0 0.0
    %2478 = vmatprep.subr.mxu0 0.0
    %2479 = vmatpush1.msra.mxu0 0.0
    %2480 = vmatprep.subr.mxu0 0.0
    %2481 = vmatpush1.msra.mxu0 0.0
    %2482 = vmatprep.subr.mxu0 0.0
    %2483 = vmatpush1.msra.mxu0 0.0
    %2484 = vmatprep.subr.mxu0 0.0
    %2485 = vmatpush1.msra.mxu0 0.0
    %2486 = vmatprep.subr.mxu0 0.0
    %2487 = vmatpush1.msra.mxu0 0.0
    %2488 = vmatprep.subr.mxu0 0.0
    %2489 = vmatpush1.msra.mxu0 0.0
    %2490 = vmatprep.subr.mxu0 0.0
    %2491 = vmatpush1.msra.mxu0 0.0
    %2492 = vmatprep.subr.mxu0 0.0
    %2493 = vmatpush1.msra.mxu0 0.0
    %2494 = vmatprep.subr.mxu0 0.0
    %2495 = vmatpush1.msra.mxu0 0.0
    %2496 = vmatprep.subr.mxu0 0.0
    %2497 = vmatpush1.msra.mxu0 0.0
    %2498 = vmatprep.subr.mxu0 0.0
    %2499 = vmatpush1.msra.mxu0 0.0
    %2500 = vmatprep.subr.mxu0 0.0
    %2501 = vmatpush1.msra.mxu0 0.0
    %2502 = vmatprep.subr.mxu0 0.0
    %2503 = vmatpush1.msra.mxu0 0.0
    %2504 = vmatprep.subr.mxu0 0.0
    %2505 = vmatpush1.msra.mxu0 0.0
    %2506 = vmatprep.subr.mxu0 0.0
    %2507 = vmatpush1.msra.mxu0 0.0
    %2508 = vmatprep.subr.mxu0 0.0
    %2509 = vmatpush1.msra.mxu0 0.0
    %2510 = vmatprep.subr.mxu0 0.0
    %2511 = vmatpush1.msra.mxu0 0.0
    %2512 = vmatprep.subr.mxu0 0.0
    %2513 = vmatpush1.msra.mxu0 0.0
    %2514 = vmatprep.subr.mxu0 0.0
    %2515 = vmatpush1.msra.mxu0 0.0
    %2516 = vmatprep.subr.mxu0 0.0
    %2517 = vmatpush1.msra.mxu0 0.0
    %2518 = vmatprep.mubr.f32.mxu0 0.0
    %2519 = vmatmul.mubr.f32.gmra.mrb[0].mxu0 %v2452
    %v2520 = vpop.f32.mrb[0].mxu0
    %v2521 = vadd.f32 0.0, %v2520
    %v2522 = vpop.f32.mrb[0].mxu0
    %2523 = vdwg.mxu0
    %v2524 = vadd.f32 %v2448, %v2521
    %v2525 = vxor.u32 %v2524, 2147483648
    %v2526 = vmul.f32 %v2525, 1.442695
    %v2527 = vpow.pop %v2526
    %v2528 = vadd.f32 %v2527, 1.0
    %v2529 = vrcp.pop %v2528
    %v2530 = vmul.f32 1.0, %v2529
    %v2531 = vtanh.pop %v2524
    %v2532 = vmul.f32 %v2530, %v2441
    %2534 = vrot.lane.b32.xlu0 %v2531, 64
    %v2535 = vpop.permute.xlu0 %2534
    %v2537 = vmul.f32 %v2530, %v2535
    %2539 = vrot.lane.b32.xlu0 %v2537, 32
    %v2540 = vpop.permute.xlu0 %2539
    %v2542 = vadd.f32 %v2532, %v2540
    %v2543 = vtanh.pop %v2542
    %2545 = vrot.lane.b32.xlu0 %v2543, 64
    %v2546 = vpop.permute.xlu0 %2545
    %v2548 = vmul.f32 %v2530, %v2546
    %v2549 = vld [vmem:[%s674] sm:$0x3]
    %2551 = vrot.lane.b32.xlu0 %v2548, 32
    %v2552 = vpop.permute.xlu0 %2551
    %v2553 = vsel %vm250, %v2552, 0
    %2555 = vmatprep.subr.mxu0 0.0
    %2556 = vmatpush1.msra.mxu0 %v2135
    %2557 = vmatprep.subr.mxu0 0.0
    %2558 = vmatpush1.msra.mxu0 %v2136
    %2559 = vmatprep.subr.mxu0 0.0
    %2560 = vmatpush1.msra.mxu0 %v2137
    %2561 = vmatprep.subr.mxu0 0.0
    %2562 = vmatpush1.msra.mxu0 %v2138
    %2563 = vmatprep.subr.mxu0 0.0
    %2564 = vmatpush1.msra.mxu0 0.0
    %2565 = vmatprep.subr.mxu0 0.0
    %2566 = vmatpush1.msra.mxu0 0.0
    %2567 = vmatprep.subr.mxu0 0.0
    %2568 = vmatpush1.msra.mxu0 0.0
    %2569 = vmatprep.subr.mxu0 0.0
    %2570 = vmatpush1.msra.mxu0 0.0
    %2571 = vmatprep.subr.mxu0 0.0
    %2572 = vmatpush1.msra.mxu0 0.0
    %2573 = vmatprep.subr.mxu0 0.0
    %2574 = vmatpush1.msra.mxu0 0.0
    %2575 = vmatprep.subr.mxu0 0.0
    %2576 = vmatpush1.msra.mxu0 0.0
    %2577 = vmatprep.subr.mxu0 0.0
    %2578 = vmatpush1.msra.mxu0 0.0
    %2579 = vmatprep.subr.mxu0 0.0
    %2580 = vmatpush1.msra.mxu0 0.0
    %2581 = vmatprep.subr.mxu0 0.0
    %2582 = vmatpush1.msra.mxu0 0.0
    %2583 = vmatprep.subr.mxu0 0.0
    %2584 = vmatpush1.msra.mxu0 0.0
    %2585 = vmatprep.subr.mxu0 0.0
    %2586 = vmatpush1.msra.mxu0 0.0
    %2587 = vmatprep.subr.mxu0 0.0
    %2588 = vmatpush1.msra.mxu0 0.0
    %2589 = vmatprep.subr.mxu0 0.0
    %2590 = vmatpush1.msra.mxu0 0.0
    %2591 = vmatprep.subr.mxu0 0.0
    %2592 = vmatpush1.msra.mxu0 0.0
    %2593 = vmatprep.subr.mxu0 0.0
    %2594 = vmatpush1.msra.mxu0 0.0
    %2595 = vmatprep.subr.mxu0 0.0
    %2596 = vmatpush1.msra.mxu0 0.0
    %2597 = vmatprep.subr.mxu0 0.0
    %2598 = vmatpush1.msra.mxu0 0.0
    %2599 = vmatprep.subr.mxu0 0.0
    %2600 = vmatpush1.msra.mxu0 0.0
    %2601 = vmatprep.subr.mxu0 0.0
    %2602 = vmatpush1.msra.mxu0 0.0
    %2603 = vmatprep.subr.mxu0 0.0
    %2604 = vmatpush1.msra.mxu0 0.0
    %2605 = vmatprep.subr.mxu0 0.0
    %2606 = vmatpush1.msra.mxu0 0.0
    %2607 = vmatprep.subr.mxu0 0.0
    %2608 = vmatpush1.msra.mxu0 0.0
    %2609 = vmatprep.subr.mxu0 0.0
    %2610 = vmatpush1.msra.mxu0 0.0
    %2611 = vmatprep.subr.mxu0 0.0
    %2612 = vmatpush1.msra.mxu0 0.0
    %2613 = vmatprep.subr.mxu0 0.0
    %2614 = vmatpush1.msra.mxu0 0.0
    %2615 = vmatprep.subr.mxu0 0.0
    %2616 = vmatpush1.msra.mxu0 0.0
    %2617 = vmatprep.subr.mxu0 0.0
    %2618 = vmatpush1.msra.mxu0 0.0
    %2619 = vmatprep.mubr.f32.mxu0 0.0
    %2620 = vmatmul.mubr.f32.gmra.mrb[0].mxu0 %v2553
    %v2621 = vpop.f32.mrb[0].mxu0
    %v2622 = vadd.f32 0.0, %v2621
    %v2623 = vpop.f32.mrb[0].mxu0
    %2624 = vdwg.mxu0
    %v2625 = vadd.f32 %v2549, %v2622
    %v2626 = vxor.u32 %v2625, 2147483648
    %v2627 = vmul.f32 %v2626, 1.442695
    %v2628 = vpow.pop %v2627
    %v2629 = vadd.f32 %v2628, 1.0
    %v2630 = vrcp.pop %v2629
    %v2631 = vmul.f32 1.0, %v2630
    %v2632 = vtanh.pop %v2625
    %v2633 = vmul.f32 %v2631, %v2542
    %2635 = vrot.lane.b32.xlu0 %v2632, 64
    %v2636 = vpop.permute.xlu0 %2635
    %v2638 = vmul.f32 %v2631, %v2636
    %2640 = vrot.lane.b32.xlu0 %v2638, 32
    %v2641 = vpop.permute.xlu0 %2640
    %v2643 = vadd.f32 %v2633, %v2641
    %v2644 = vtanh.pop %v2643
    %2646 = vrot.lane.b32.xlu0 %v2644, 64
    %v2647 = vpop.permute.xlu0 %2646
    %v2649 = vmul.f32 %v2631, %v2647
    %v2650 = vld [vmem:[%s779] sm:$0x3]
    %2652 = vrot.lane.b32.xlu0 %v2649, 32
    %v2653 = vpop.permute.xlu0 %2652
    %v2654 = vsel %vm250, %v2653, 0
    %2656 = vmatprep.subr.mxu0 0.0
    %2657 = vmatpush1.msra.mxu0 %v2135
    %2658 = vmatprep.subr.mxu0 0.0
    %2659 = vmatpush1.msra.mxu0 %v2136
    %2660 = vmatprep.subr.mxu0 0.0
    %2661 = vmatpush1.msra.mxu0 %v2137
    %2662 = vmatprep.subr.mxu0 0.0
    %2663 = vmatpush1.msra.mxu0 %v2138
    %2664 = vmatprep.subr.mxu0 0.0
    %2665 = vmatpush1.msra.mxu0 0.0
    %2666 = vmatprep.subr.mxu0 0.0
    %2667 = vmatpush1.msra.mxu0 0.0
    %2668 = vmatprep.subr.mxu0 0.0
    %2669 = vmatpush1.msra.mxu0 0.0
    %2670 = vmatprep.subr.mxu0 0.0
    %2671 = vmatpush1.msra.mxu0 0.0
    %2672 = vmatprep.subr.mxu0 0.0
    %2673 = vmatpush1.msra.mxu0 0.0
    %2674 = vmatprep.subr.mxu0 0.0
    %2675 = vmatpush1.msra.mxu0 0.0
    %2676 = vmatprep.subr.mxu0 0.0
    %2677 = vmatpush1.msra.mxu0 0.0
    %2678 = vmatprep.subr.mxu0 0.0
    %2679 = vmatpush1.msra.mxu0 0.0
    %2680 = vmatprep.subr.mxu0 0.0
    %2681 = vmatpush1.msra.mxu0 0.0
    %2682 = vmatprep.subr.mxu0 0.0
    %2683 = vmatpush1.msra.mxu0 0.0
    %2684 = vmatprep.subr.mxu0 0.0
    %2685 = vmatpush1.msra.mxu0 0.0
    %2686 = vmatprep.subr.mxu0 0.0
    %2687 = vmatpush1.msra.mxu0 0.0
    %2688 = vmatprep.subr.mxu0 0.0
    %2689 = vmatpush1.msra.mxu0 0.0
    %2690 = vmatprep.subr.mxu0 0.0
    %2691 = vmatpush1.msra.mxu0 0.0
    %2692 = vmatprep.subr.mxu0 0.0
    %2693 = vmatpush1.msra.mxu0 0.0
    %2694 = vmatprep.subr.mxu0 0.0
    %2695 = vmatpush1.msra.mxu0 0.0
    %2696 = vmatprep.subr.mxu0 0.0
    %2697 = vmatpush1.msra.mxu0 0.0
    %2698 = vmatprep.subr.mxu0 0.0
    %2699 = vmatpush1.msra.mxu0 0.0
    %2700 = vmatprep.subr.mxu0 0.0
    %2701 = vmatpush1.msra.mxu0 0.0
    %2702 = vmatprep.subr.mxu0 0.0
    %2703 = vmatpush1.msra.mxu0 0.0
    %2704 = vmatprep.subr.mxu0 0.0
    %2705 = vmatpush1.msra.mxu0 0.0
    %2706 = vmatprep.subr.mxu0 0.0
    %2707 = vmatpush1.msra.mxu0 0.0
    %2708 = vmatprep.subr.mxu0 0.0
    %2709 = vmatpush1.msra.mxu0 0.0
    %2710 = vmatprep.subr.mxu0 0.0
    %2711 = vmatpush1.msra.mxu0 0.0
    %2712 = vmatprep.subr.mxu0 0.0
    %2713 = vmatpush1.msra.mxu0 0.0
    %2714 = vmatprep.subr.mxu0 0.0
    %2715 = vmatpush1.msra.mxu0 0.0
    %2716 = vmatprep.subr.mxu0 0.0
    %2717 = vmatpush1.msra.mxu0 0.0
    %2718 = vmatprep.subr.mxu0 0.0
    %2719 = vmatpush1.msra.mxu0 0.0
    %2720 = vmatprep.mubr.f32.mxu0 0.0
    %2721 = vmatmul.mubr.f32.gmra.mrb[0].mxu0 %v2654
    %v2722 = vpop.f32.mrb[0].mxu0
    %v2723 = vadd.f32 0.0, %v2722
    %v2724 = vpop.f32.mrb[0].mxu0
    %2725 = vdwg.mxu0
    %v2726 = vadd.f32 %v2650, %v2723
    %v2727 = vxor.u32 %v2726, 2147483648
    %v2728 = vmul.f32 %v2727, 1.442695
    %v2729 = vpow.pop %v2728
    %v2730 = vadd.f32 %v2729, 1.0
    %v2731 = vrcp.pop %v2730
    %v2732 = vmul.f32 1.0, %v2731
    %v2733 = vtanh.pop %v2726
    %v2734 = vmul.f32 %v2732, %v2643
    %2736 = vrot.lane.b32.xlu0 %v2733, 64
    %v2737 = vpop.permute.xlu0 %2736
    %v2739 = vmul.f32 %v2732, %v2737
    %2741 = vrot.lane.b32.xlu0 %v2739, 32
    %v2742 = vpop.permute.xlu0 %2741
    %v2744 = vadd.f32 %v2734, %v2742
    %v2745 = vtanh.pop %v2744
    %2747 = vrot.lane.b32.xlu0 %v2745, 64
    %v2748 = vpop.permute.xlu0 %2747
    %v2750 = vmul.f32 %v2732, %v2748
    %v2751 = vld [vmem:[%s884] sm:$0x3]
    %2753 = vrot.lane.b32.xlu0 %v2750, 32
    %v2754 = vpop.permute.xlu0 %2753
    %v2755 = vsel %vm250, %v2754, 0
    %2757 = vmatprep.subr.mxu0 0.0
    %2758 = vmatpush1.msra.mxu0 %v2135
    %2759 = vmatprep.subr.mxu0 0.0
    %2760 = vmatpush1.msra.mxu0 %v2136
    %2761 = vmatprep.subr.mxu0 0.0
    %2762 = vmatpush1.msra.mxu0 %v2137
    %2763 = vmatprep.subr.mxu0 0.0
    %2764 = vmatpush1.msra.mxu0 %v2138
    %2765 = vmatprep.subr.mxu0 0.0
    %2766 = vmatpush1.msra.mxu0 0.0
    %2767 = vmatprep.subr.mxu0 0.0
    %2768 = vmatpush1.msra.mxu0 0.0
    %2769 = vmatprep.subr.mxu0 0.0
    %2770 = vmatpush1.msra.mxu0 0.0
    %2771 = vmatprep.subr.mxu0 0.0
    %2772 = vmatpush1.msra.mxu0 0.0
    %2773 = vmatprep.subr.mxu0 0.0
    %2774 = vmatpush1.msra.mxu0 0.0
    %2775 = vmatprep.subr.mxu0 0.0
    %2776 = vmatpush1.msra.mxu0 0.0
    %2777 = vmatprep.subr.mxu0 0.0
    %2778 = vmatpush1.msra.mxu0 0.0
    %2779 = vmatprep.subr.mxu0 0.0
    %2780 = vmatpush1.msra.mxu0 0.0
    %2781 = vmatprep.subr.mxu0 0.0
    %2782 = vmatpush1.msra.mxu0 0.0
    %2783 = vmatprep.subr.mxu0 0.0
    %2784 = vmatpush1.msra.mxu0 0.0
    %2785 = vmatprep.subr.mxu0 0.0
    %2786 = vmatpush1.msra.mxu0 0.0
    %2787 = vmatprep.subr.mxu0 0.0
    %2788 = vmatpush1.msra.mxu0 0.0
    %2789 = vmatprep.subr.mxu0 0.0
    %2790 = vmatpush1.msra.mxu0 0.0
    %2791 = vmatprep.subr.mxu0 0.0
    %2792 = vmatpush1.msra.mxu0 0.0
    %2793 = vmatprep.subr.mxu0 0.0
    %2794 = vmatpush1.msra.mxu0 0.0
    %2795 = vmatprep.subr.mxu0 0.0
    %2796 = vmatpush1.msra.mxu0 0.0
    %2797 = vmatprep.subr.mxu0 0.0
    %2798 = vmatpush1.msra.mxu0 0.0
    %2799 = vmatprep.subr.mxu0 0.0
    %2800 = vmatpush1.msra.mxu0 0.0
    %2801 = vmatprep.subr.mxu0 0.0
    %2802 = vmatpush1.msra.mxu0 0.0
    %2803 = vmatprep.subr.mxu0 0.0
    %2804 = vmatpush1.msra.mxu0 0.0
    %2805 = vmatprep.subr.mxu0 0.0
    %2806 = vmatpush1.msra.mxu0 0.0
    %2807 = vmatprep.subr.mxu0 0.0
    %2808 = vmatpush1.msra.mxu0 0.0
    %2809 = vmatprep.subr.mxu0 0.0
    %2810 = vmatpush1.msra.mxu0 0.0
    %2811 = vmatprep.subr.mxu0 0.0
    %2812 = vmatpush1.msra.mxu0 0.0
    %2813 = vmatprep.subr.mxu0 0.0
    %2814 = vmatpush1.msra.mxu0 0.0
    %2815 = vmatprep.subr.mxu0 0.0
    %2816 = vmatpush1.msra.mxu0 0.0
    %2817 = vmatprep.subr.mxu0 0.0
    %2818 = vmatpush1.msra.mxu0 0.0
    %2819 = vmatprep.subr.mxu0 0.0
    %2820 = vmatpush1.msra.mxu0 0.0
    %2821 = vmatprep.mubr.f32.mxu0 0.0
    %2822 = vmatmul.mubr.f32.gmra.mrb[0].mxu0 %v2755
    %v2823 = vpop.f32.mrb[0].mxu0
    %v2824 = vadd.f32 0.0, %v2823
    %v2825 = vpop.f32.mrb[0].mxu0
    %2826 = vdwg.mxu0
    %v2827 = vadd.f32 %v2751, %v2824
    %v2828 = vxor.u32 %v2827, 2147483648
    %v2829 = vmul.f32 %v2828, 1.442695
    %v2830 = vpow.pop %v2829
    %v2831 = vadd.f32 %v2830, 1.0
    %v2832 = vrcp.pop %v2831
    %v2833 = vmul.f32 1.0, %v2832
    %v2834 = vtanh.pop %v2827
    %v2835 = vmul.f32 %v2833, %v2744
    %2837 = vrot.lane.b32.xlu0 %v2834, 64
    %v2838 = vpop.permute.xlu0 %2837
    %v2840 = vmul.f32 %v2833, %v2838
    %2842 = vrot.lane.b32.xlu0 %v2840, 32
    %v2843 = vpop.permute.xlu0 %2842
    %v2845 = vadd.f32 %v2835, %v2843
    %v2846 = vtanh.pop %v2845
    %2848 = vrot.lane.b32.xlu0 %v2846, 64
    %v2849 = vpop.permute.xlu0 %2848
    %v2851 = vmul.f32 %v2833, %v2849
    %v2852 = vld [vmem:[%s989] sm:$0x3]
    %2854 = vrot.lane.b32.xlu0 %v2851, 32
    %v2855 = vpop.permute.xlu0 %2854
    %v2856 = vsel %vm250, %v2855, 0
    %2858 = vmatprep.subr.mxu0 0.0
    %2859 = vmatpush1.msra.mxu0 %v2135
    %2860 = vmatprep.subr.mxu0 0.0
    %2861 = vmatpush1.msra.mxu0 %v2136
    %2862 = vmatprep.subr.mxu0 0.0
    %2863 = vmatpush1.msra.mxu0 %v2137
    %2864 = vmatprep.subr.mxu0 0.0
    %2865 = vmatpush1.msra.mxu0 %v2138
    %2866 = vmatprep.subr.mxu0 0.0
    %2867 = vmatpush1.msra.mxu0 0.0
    %2868 = vmatprep.subr.mxu0 0.0
    %2869 = vmatpush1.msra.mxu0 0.0
    %2870 = vmatprep.subr.mxu0 0.0
    %2871 = vmatpush1.msra.mxu0 0.0
    %2872 = vmatprep.subr.mxu0 0.0
    %2873 = vmatpush1.msra.mxu0 0.0
    %2874 = vmatprep.subr.mxu0 0.0
    %2875 = vmatpush1.msra.mxu0 0.0
    %2876 = vmatprep.subr.mxu0 0.0
    %2877 = vmatpush1.msra.mxu0 0.0
    %2878 = vmatprep.subr.mxu0 0.0
    %2879 = vmatpush1.msra.mxu0 0.0
    %2880 = vmatprep.subr.mxu0 0.0
    %2881 = vmatpush1.msra.mxu0 0.0
    %2882 = vmatprep.subr.mxu0 0.0
    %2883 = vmatpush1.msra.mxu0 0.0
    %2884 = vmatprep.subr.mxu0 0.0
    %2885 = vmatpush1.msra.mxu0 0.0
    %2886 = vmatprep.subr.mxu0 0.0
    %2887 = vmatpush1.msra.mxu0 0.0
    %2888 = vmatprep.subr.mxu0 0.0
    %2889 = vmatpush1.msra.mxu0 0.0
    %2890 = vmatprep.subr.mxu0 0.0
    %2891 = vmatpush1.msra.mxu0 0.0
    %2892 = vmatprep.subr.mxu0 0.0
    %2893 = vmatpush1.msra.mxu0 0.0
    %2894 = vmatprep.subr.mxu0 0.0
    %2895 = vmatpush1.msra.mxu0 0.0
    %2896 = vmatprep.subr.mxu0 0.0
    %2897 = vmatpush1.msra.mxu0 0.0
    %2898 = vmatprep.subr.mxu0 0.0
    %2899 = vmatpush1.msra.mxu0 0.0
    %2900 = vmatprep.subr.mxu0 0.0
    %2901 = vmatpush1.msra.mxu0 0.0
    %2902 = vmatprep.subr.mxu0 0.0
    %2903 = vmatpush1.msra.mxu0 0.0
    %2904 = vmatprep.subr.mxu0 0.0
    %2905 = vmatpush1.msra.mxu0 0.0
    %2906 = vmatprep.subr.mxu0 0.0
    %2907 = vmatpush1.msra.mxu0 0.0
    %2908 = vmatprep.subr.mxu0 0.0
    %2909 = vmatpush1.msra.mxu0 0.0
    %2910 = vmatprep.subr.mxu0 0.0
    %2911 = vmatpush1.msra.mxu0 0.0
    %2912 = vmatprep.subr.mxu0 0.0
    %2913 = vmatpush1.msra.mxu0 0.0
    %2914 = vmatprep.subr.mxu0 0.0
    %2915 = vmatpush1.msra.mxu0 0.0
    %2916 = vmatprep.subr.mxu0 0.0
    %2917 = vmatpush1.msra.mxu0 0.0
    %2918 = vmatprep.subr.mxu0 0.0
    %2919 = vmatpush1.msra.mxu0 0.0
    %2920 = vmatprep.subr.mxu0 0.0
    %2921 = vmatpush1.msra.mxu0 0.0
    %2922 = vmatprep.mubr.f32.mxu0 0.0
    %2923 = vmatmul.mubr.f32.gmra.mrb[0].mxu0 %v2856
    %v2924 = vpop.f32.mrb[0].mxu0
    %v2925 = vadd.f32 0.0, %v2924
    %v2926 = vpop.f32.mrb[0].mxu0
    %2927 = vdwg.mxu0
    %v2928 = vadd.f32 %v2852, %v2925
    %v2929 = vxor.u32 %v2928, 2147483648
    %v2930 = vmul.f32 %v2929, 1.442695
    %v2931 = vpow.pop %v2930
    %v2932 = vadd.f32 %v2931, 1.0
    %v2933 = vrcp.pop %v2932
    %v2934 = vmul.f32 1.0, %v2933
    %v2935 = vtanh.pop %v2928
    %v2936 = vmul.f32 %v2934, %v2845
    %2938 = vrot.lane.b32.xlu0 %v2935, 64
    %v2939 = vpop.permute.xlu0 %2938
    %v2941 = vmul.f32 %v2934, %v2939
    %2943 = vrot.lane.b32.xlu0 %v2941, 32
    %v2944 = vpop.permute.xlu0 %2943
    %v2946 = vadd.f32 %v2936, %v2944
    %v2947 = vtanh.pop %v2946
    %2949 = vrot.lane.b32.xlu0 %v2947, 64
    %v2950 = vpop.permute.xlu0 %2949
    %v2952 = vmul.f32 %v2934, %v2950
    %2954 = vrot.lane.b32.xlu0 %v2952, 32
    %v2955 = vpop.permute.xlu0 %2954
    %2957 = vst.msk [vmem:[%s2139] sm:$0x3] %vm357, %v2955
    %2959 = vrot.lane.b32.xlu0 %v2946, 96
    %v2960 = vpop.permute.xlu0 %2959
    %2962 = vst.msk [vmem:[%s2141] sm:$0x3] %vm357, %v2960
    // Predicated region
    $region82: #{tpu_custom_call.1} parent=1 // pred_check
      %p2963 = pneg %p137
    $region83: #{tpu_custom_call.1} parent=1 // pred_check_branch
      %2965 = sbr.rel (%p2963) target = $region85
    $region84: #{tpu_custom_call.1} parent=1 // pred_region
      %v2966 = vld [vmem:[%s2139] sm:$0x3]
      %v2967 = vld [vmem:[%s10] sm:$0xff]
      %v2968 = vld [vmem:[%s10 + $0x8] sm:$0xff]
      %v2969 = vld [vmem:[%s10 + $0x10] sm:$0xff]
      %v2970 = vld [vmem:[%s10 + $0x18] sm:$0xff]
      %v2971 = vld [vmem:[%s11] sm:$0x1]
      %v2973 = vlaneseq
      %v2974 = vshrl.u32 %v2973, 7
      %v2975 = vsub.s32 0, %v2974
      %v2976 = vrot.slane %v2971, %v2975
      %v2979 = vsel %vm250, %v2966, 0
      %2981 = vmatprep.subr.mxu0 0.0
      %2982 = vmatpush1.msra.mxu0 %v2967
      %2983 = vmatprep.subr.mxu0 0.0
      %2984 = vmatpush1.msra.mxu0 %v2968
      %2985 = vmatprep.subr.mxu0 0.0
      %2986 = vmatpush1.msra.mxu0 %v2969
      %2987 = vmatprep.subr.mxu0 0.0
      %2988 = vmatpush1.msra.mxu0 %v2970
      %2989 = vmatprep.subr.mxu0 0.0
      %2990 = vmatpush1.msra.mxu0 0.0
      %2991 = vmatprep.subr.mxu0 0.0
      %2992 = vmatpush1.msra.mxu0 0.0
      %2993 = vmatprep.subr.mxu0 0.0
      %2994 = vmatpush1.msra.mxu0 0.0
      %2995 = vmatprep.subr.mxu0 0.0
      %2996 = vmatpush1.msra.mxu0 0.0
      %2997 = vmatprep.subr.mxu0 0.0
      %2998 = vmatpush1.msra.mxu0 0.0
      %2999 = vmatprep.subr.mxu0 0.0
      %3000 = vmatpush1.msra.mxu0 0.0
      %3001 = vmatprep.subr.mxu0 0.0
      %3002 = vmatpush1.msra.mxu0 0.0
      %3003 = vmatprep.subr.mxu0 0.0
      %3004 = vmatpush1.msra.mxu0 0.0
      %3005 = vmatprep.subr.mxu0 0.0
      %3006 = vmatpush1.msra.mxu0 0.0
      %3007 = vmatprep.subr.mxu0 0.0
      %3008 = vmatpush1.msra.mxu0 0.0
      %3009 = vmatprep.subr.mxu0 0.0
      %3010 = vmatpush1.msra.mxu0 0.0
      %3011 = vmatprep.subr.mxu0 0.0
      %3012 = vmatpush1.msra.mxu0 0.0
      %3013 = vmatprep.subr.mxu0 0.0
      %3014 = vmatpush1.msra.mxu0 0.0
      %3015 = vmatprep.subr.mxu0 0.0
      %3016 = vmatpush1.msra.mxu0 0.0
      %3017 = vmatprep.subr.mxu0 0.0
      %3018 = vmatpush1.msra.mxu0 0.0
      %3019 = vmatprep.subr.mxu0 0.0
      %3020 = vmatpush1.msra.mxu0 0.0
      %3021 = vmatprep.subr.mxu0 0.0
      %3022 = vmatpush1.msra.mxu0 0.0
      %3023 = vmatprep.subr.mxu0 0.0
      %3024 = vmatpush1.msra.mxu0 0.0
      %3025 = vmatprep.subr.mxu0 0.0
      %3026 = vmatpush1.msra.mxu0 0.0
      %3027 = vmatprep.subr.mxu0 0.0
      %3028 = vmatpush1.msra.mxu0 0.0
      %3029 = vmatprep.subr.mxu0 0.0
      %3030 = vmatpush1.msra.mxu0 0.0
      %3031 = vmatprep.subr.mxu0 0.0
      %3032 = vmatpush1.msra.mxu0 0.0
      %3033 = vmatprep.subr.mxu0 0.0
      %3034 = vmatpush1.msra.mxu0 0.0
      %3035 = vmatprep.subr.mxu0 0.0
      %3036 = vmatpush1.msra.mxu0 0.0
      %3037 = vmatprep.subr.mxu0 0.0
      %3038 = vmatpush1.msra.mxu0 0.0
      %3039 = vmatprep.subr.mxu0 0.0
      %3040 = vmatpush1.msra.mxu0 0.0
      %3041 = vmatprep.subr.mxu0 0.0
      %3042 = vmatpush1.msra.mxu0 0.0
      %3043 = vmatprep.subr.mxu0 0.0
      %3044 = vmatpush1.msra.mxu0 0.0
      %3045 = vmatprep.mubr.f32.mxu0 0.0
      %3046 = vmatmul.mubr.f32.gmra.mrb[0].mxu0 %v2979
      %v3047 = vpop.f32.mrb[0].mxu0
      %v3048 = vadd.f32 %v2976, %v3047
      %v3049 = vpop.f32.mrb[0].mxu0
      %3050 = vdwg.mxu0
      %v3051 = vmax.f32 %v3048, 0.0
      %v3052 = vmul.f32 %v3051, %v3051
      %v3053 = vsel %vm357, %v3052, 0.0
      %3054 = vadd.xlane.f32.xlu0 %v3053
      %v3055 = vpop.xlane.xlu0 %3054
      %v3056 = vrsqrt.pop %v3055
      %v3057 = vmul.f32 %v3051, %v3056
      %3058 = vst.msk [vmem:[#allocation18] sm:$0x3] %vm357, %v3057
    $region85: #{tpu_custom_call.1} parent=1 // pred_fallthru
      _
    // Predicated region
    $region86: #{tpu_custom_call.1} parent=1 // pred_check
      _
    $region87: #{tpu_custom_call.1} parent=1 // pred_check_branch
      %3060 = sbr.rel (0) target = $region89
    $region88: #{tpu_custom_call.1} parent=1 // pred_region
      %s3062 = ssub.s32 32, 32
      %3063 = vsyncadd [#allocation8], %s3062
      %s3065 = sshll.u32 [#allocation18], 4
      %s3066 = int_to_ptr.vmem [resolvable:$true] %s3065
      %3068 = dma.vmem_to_hbm [thread:$0]  %s3066, 32, %s12, [#allocation8]
    $region89: #{tpu_custom_call.1} parent=1 // pred_fallthru
      _
    // Predicated region
    $region90: #{tpu_custom_call.1} parent=1 // pred_check
      _
    $region91: #{tpu_custom_call.1} parent=1 // pred_check_branch
      %3070 = sbr.rel (0) target = $region93
    $region92: #{tpu_custom_call.1} parent=1 // pred_region
      %3071 = dma.done [#allocation8], 32
    $region93: #{tpu_custom_call.1} parent=1 // pred_fallthru
      _
    %3072 = vsyncpa [#allocation7], 1
    %3073 = vsyncpa [#allocation10], 1
    %3074 = vsyncpa [#allocation13], 1
    %3075 = vsyncpa [#allocation16], 1
    %3076 = vsyncpa [#allocation8], 1

</llo_original>
